<compile_context>
chip_gen: v6e
topology: v6e:2x2x1
jax: 0.10.0
libtpu: 0.0.40
codegen_flags: <defaults>
</compile_context>

<pallas_src>
import jax
import jax.numpy as jnp
from jax.experimental import pallas as pl
from jax.experimental.pallas import tpu as pltpu


def _round_up(x, m):
    return ((x + m - 1) // m) * m


def _leaky_relu(v, slope=0.2):
    return jnp.where(v >= 0, v, slope * v)


def _choose_tiling(B, max_tile_b=512):
    """Pad the batch to whole 128-lane vregs and pick a batch tile.

    Batch rides the lane axis, so 128 is the natural padding granule (one vreg
    is 128 lanes regardless, so a tiny batch wastes no compute).  When the
    padded batch allows, emit at least 2 grid tiles so v7x's two TensorCores
    both get work, while keeping each tile <= max_tile_b rows for low per-step
    overhead.
    """
    b_pad = _round_up(max(B, 1), 128)
    n128 = b_pad // 128
    if n128 == 1:
        return b_pad, b_pad
    max_128 = max(1, max_tile_b // 128)
    n_tiles = max(2, -(-n128 // max_128))          # >=2 tiles when possible
    tile_b = 128 * (-(-n128 // n_tiles))           # multiple of 128
    b_pad = _round_up(b_pad, tile_b)               # grid divides exactly
    return b_pad, tile_b


def discriminator_kernel(xT_ref, w1T_ref, b1_ref, w2T_ref, b2_ref,
                         w3T_ref, b3_ref, w4T_ref, b4_ref, out_ref):
    """One batch tile.  Activations are (hidden, tile_b): batch on lanes."""
    # Layer 1 (the torch.cat is pre-folded into xT / w1T), f32 accumulation.
    h = jnp.dot(w1T_ref[...], xT_ref[...],
                preferred_element_type=jnp.float32) + b1_ref[...]
    h = _leaky_relu(h)

    # Layer 2 (+ Dropout(0.4) is identity in eval-mode forward).
    # TODO(synk): training-mode dropout would use pltpu.prng_seed /
    # pltpu.prng_random_bits with inverted-dropout scaling 1/0.6.
    h = jnp.dot(w2T_ref[...], h.astype(jnp.bfloat16),
                preferred_element_type=jnp.float32) + b2_ref[...]
    h = _leaky_relu(h)

    # Layer 3 (+ Dropout identity).
    h = jnp.dot(w3T_ref[...], h.astype(jnp.bfloat16),
                preferred_element_type=jnp.float32) + b3_ref[...]
    h = _leaky_relu(h)

    # Head Linear(512, 1): w4 is packed as an (8, 512) LHS with the real row in
    # sublane 0, so the MXU result's row 0 is already the lane-major logit row
    # -- no (tile_b, 1) column, no transpose, lane-dense epilogue and store.
    logits = jnp.dot(w4T_ref[...], h.astype(jnp.bfloat16),
                     preferred_element_type=jnp.float32)[0:1, :] + b4_ref[...]

    # Exact, numerically stable sigmoid: exp argument is always <= 0.
    e = jnp.exp(-jnp.abs(logits))
    inv = 1.0 / (1.0 + e)
    out_ref[...] = jnp.where(logits >= 0, inv, e * inv)


def init_params(key, in_dim, hidden=512):
    """Deterministic PyTorch-Linear-style init (uniform +/- 1/sqrt(fan_in))."""
    dims = [(in_dim, hidden), (hidden, hidden), (hidden, hidden), (hidden, 1)]
    params = []
    for (fan_in, fan_out) in dims:
        key, kw, kb = jax.random.split(key, 3)
        bound = 1.0 / jnp.sqrt(jnp.float32(fan_in))
        w = jax.random.uniform(kw, (fan_in, fan_out), jnp.float32, -bound, bound)
        b = jax.random.uniform(kb, (1, fan_out), jnp.float32, -bound, bound)
        params += [w, b]
    return params


def prepare_params(params, img_dim, mu_dim, hidden=512):
    """One-time repack of PyTorch-layout weights into the kernel layout.

    Hoisted out of the per-call forward: the pad / transpose / bf16 cast of
    ~2.7 MB of f32 weights otherwise runs as extra XLA ops on every call and
    rivals the kernel's own HBM traffic at this model size.
    """
    w1, b1, w2, b2, w3, b3, w4, b4 = params
    in_dim = img_dim + mu_dim
    assert w1.shape == (in_dim, hidden), (w1.shape, in_dim, hidden)
    k_pad = _round_up(in_dim, 128)

    # Transposed layout: activations are (hidden, batch), so every weight is
    # stored as W^T (bf16 MXU operand); biases become f32 columns.
    w1T = jnp.pad(w1, ((0, k_pad - in_dim), (0, 0))).T.astype(jnp.bfloat16)
    w2T = w2.T.astype(jnp.bfloat16)
    w3T = w3.T.astype(jnp.bfloat16)
    # Head weight packed to a full 8-sublane MXU LHS granule (rows 1..7 zero).
    w4T = jnp.pad(w4.reshape(1, hidden), ((0, 7), (0, 0))).astype(jnp.bfloat16)
    b1c = b1.reshape(hidden, 1).astype(jnp.float32)
    b2c = b2.reshape(hidden, 1).astype(jnp.float32)
    b3c = b3.reshape(hidden, 1).astype(jnp.float32)
    b4c = b4.reshape(1, 1).astype(jnp.float32)
    # TODO(synk): fp8 (v7x) / int8+scale (v5e/v6e) weight storage would halve
    # the dominant weight DMA if the accuracy budget allows.
    return {"in_dim": in_dim, "k_pad": k_pad, "hidden": hidden,
            "tensors": (w1T, b1c, w2T, b2c, w3T, b3c, w4T, b4c)}


def discriminator_forward(img, mu, prepared, *, max_tile_b=512):
    """img: (B, C, H, W) float32 (NCHW), mu: (B, 1, mu_dim) float32 -> (B,1,1)."""
    B = img.shape[0]
    # The PyTorch Linear dimensions only line up when mu.shape[1] == 1.
    assert mu.ndim == 3 and mu.shape[1] == 1, "kernel requires mu.shape[1] == 1"

    in_dim = prepared["in_dim"]
    k_pad = prepared["k_pad"]
    hidden = prepared["hidden"]
    img_flat = img.reshape(B, -1)
    mu_flat = mu.reshape(B, -1)
    assert img_flat.shape[1] + mu_flat.shape[1] == in_dim

    b_pad, tile_b = _choose_tiling(B, max_tile_b)
    n_tiles = b_pad // tile_b

    # Per-call activation prep only (weights are pre-packed): fold the
    # torch.cat, zero-pad K to a lane multiple and batch to the tile grid,
    # transpose so batch rides the lane axis, and cast to bf16.
    x = jnp.concatenate([img_flat, mu_flat], axis=1).astype(jnp.float32)
    x = jnp.pad(x, ((0, b_pad - B), (0, k_pad - in_dim)))
    xT = x.T.astype(jnp.bfloat16)                         # (k_pad, b_pad)

    w1T, b1c, w2T, b2c, w3T, b3c, w4T, b4c = prepared["tensors"]

    def const_spec(shape):
        # Constant index_map => fetched once, VMEM-resident across batch tiles.
        return pl.BlockSpec(shape, lambda i: (0, 0))

    out = pl.pallas_call(
        discriminator_kernel,
        out_shape=jax.ShapeDtypeStruct((1, b_pad), jnp.float32),
        grid=(n_tiles,),
        in_specs=[
            pl.BlockSpec((k_pad, tile_b), lambda i: (0, i)),  # xT batch tile
            const_spec((hidden, k_pad)),                      # w1^T
            const_spec((hidden, 1)),                          # b1
            const_spec((hidden, hidden)),                     # w2^T
            const_spec((hidden, 1)),                          # b2
            const_spec((hidden, hidden)),                     # w3^T
            const_spec((hidden, 1)),                          # b3
            const_spec((8, hidden)),                          # w4 (row 0 real)
            const_spec((1, 1)),                               # b4
        ],
        out_specs=pl.BlockSpec((1, tile_b), lambda i: (0, i)),   # lane-dense
        compiler_params=pltpu.CompilerParams(
            dimension_semantics=("parallel",),    # shard batch tiles across TCs
            vmem_limit_bytes=32 * 1024 * 1024),   # safe on v5e/v6e/v7x
    )(xT, w1T, b1c, w2T, b2c, w3T, b3c, w4T, b4c)

    return out[0, :B].reshape(B, 1, 1)             # (B, 1, 1) as in PyTorch


def _reference_forward(img, mu, params):
    B = img.shape[0]
    d_in = jnp.concatenate(
        [img.reshape(B, mu.shape[1], -1), mu], axis=2).reshape(B, -1)
    w1, b1, w2, b2, w3, b3, w4, b4 = params
    h = _leaky_relu(d_in @ w1 + b1)
    h = _leaky_relu(h @ w2 + b2)
    h = _leaky_relu(h @ w3 + b3)
    return jax.nn.sigmoid(h @ w4 + b4).reshape(B, mu.shape[1], 1)


if __name__ == "__main__":
    # Small shapes consistent with the module: img_shape=(1,16,16), mu_dim=32, B=2.
    B = 2
    img_shape = (1, 16, 16)
    mu_dim = 32
    img_dim = 1 * 16 * 16
    in_dim = img_dim + mu_dim            # 288

    key = jax.random.PRNGKey(0)
    k_img, k_mu, k_params = jax.random.split(key, 3)
    img = jax.random.normal(k_img, (B,) + img_shape, jnp.float32)
    mu = jax.random.normal(k_mu, (B, 1, mu_dim), jnp.float32)
    params = init_params(k_params, in_dim)
    prepared = prepare_params(params, img_dim, mu_dim)   # one-time weight pack

    out = discriminator_forward(img, mu, prepared)
    out = jax.block_until_ready(out)

    ref = _reference_forward(img, mu, params)
    assert out.shape == (B, 1, 1), out.shape
    # bf16 matmul operands (f32 accumulation, exact sigmoid) -> loose tolerance.
    assert jnp.allclose(out, ref, atol=2e-2, rtol=2e-2), (out, ref)

    print("KERNEL_OK")
</pallas_src>

<mosaic_0001>
module attributes {stable_mosaic.version = 11 : i64} {
  func.func @discriminator_kernel(%arg0: i32, %arg1: memref<384x128xbf16, #tpu.memory_space<vmem>>, %arg2: memref<512x384xbf16, #tpu.memory_space<vmem>>, %arg3: memref<512x1xf32, #tpu.memory_space<vmem>>, %arg4: memref<512x512xbf16, #tpu.memory_space<vmem>>, %arg5: memref<512x1xf32, #tpu.memory_space<vmem>>, %arg6: memref<512x512xbf16, #tpu.memory_space<vmem>>, %arg7: memref<512x1xf32, #tpu.memory_space<vmem>>, %arg8: memref<8x512xbf16, #tpu.memory_space<vmem>>, %arg9: memref<1x1xf32, #tpu.memory_space<vmem>>, %arg10: memref<1x128xf32, #tpu.memory_space<vmem>>) attributes {dimension_semantics = [#tpu.dimension_semantics<parallel>], iteration_bounds = array<i64: 1>, scalar_prefetch = 0 : i64, scratch_operands = 0 : i64, tpu.core_type = #tpu.core_type<tc>, window_params = [{transform_indices = @transform_0, window_bounds = array<i64: 384, 128>}, {pipeline_mode = #tpu.pipeline_mode<synchronous>, transform_indices = @transform_1, window_bounds = array<i64: 512, 384>}, {pipeline_mode = #tpu.pipeline_mode<synchronous>, transform_indices = @transform_2, window_bounds = array<i64: 512, 1>}, {pipeline_mode = #tpu.pipeline_mode<synchronous>, transform_indices = @transform_3, window_bounds = array<i64: 512, 512>}, {pipeline_mode = #tpu.pipeline_mode<synchronous>, transform_indices = @transform_4, window_bounds = array<i64: 512, 1>}, {pipeline_mode = #tpu.pipeline_mode<synchronous>, transform_indices = @transform_5, window_bounds = array<i64: 512, 512>}, {pipeline_mode = #tpu.pipeline_mode<synchronous>, transform_indices = @transform_6, window_bounds = array<i64: 512, 1>}, {pipeline_mode = #tpu.pipeline_mode<synchronous>, transform_indices = @transform_7, window_bounds = array<i64: 8, 512>}, {pipeline_mode = #tpu.pipeline_mode<synchronous>, transform_indices = @transform_8, window_bounds = array<i64: 1, 1>}, {transform_indices = @transform_9, window_bounds = array<i64: 1, 128>}]} {
    %c0 = arith.constant 0 : index
    %c0_0 = arith.constant 0 : index
    %0 = vector.load %arg2[%c0, %c0_0] : memref<512x384xbf16, #tpu.memory_space<vmem>>, vector<512x384xbf16>
    %c0_1 = arith.constant 0 : index
    %c0_2 = arith.constant 0 : index
    %1 = vector.load %arg1[%c0_1, %c0_2] : memref<384x128xbf16, #tpu.memory_space<vmem>>, vector<384x128xbf16>
    %cst = arith.constant dense<0.000000e+00> : vector<512x128xf32>
    %2 = tpu.matmul %0, %1, %cst {dimension_numbers = #tpu.dot_dimension_numbers<[1], [0], [0], [1], [0, 0, 1, 1], [], []>} : vector<512x384xbf16>, vector<384x128xbf16>, vector<512x128xf32> -> vector<512x128xf32>
    %c0_3 = arith.constant 0 : index
    %c0_4 = arith.constant 0 : index
    %3 = vector.load %arg3[%c0_3, %c0_4] : memref<512x1xf32, #tpu.memory_space<vmem>>, vector<512x1xf32>
    %4 = vector.broadcast %3 : vector<512x1xf32> to vector<512x128xf32>
    %5 = arith.addf %2, %4 : vector<512x128xf32>
    %cst_5 = arith.constant 0.000000e+00 : f32
    %6 = vector.broadcast %cst_5 : f32 to vector<512x128xf32>
    %7 = arith.cmpf oge, %5, %6 : vector<512x128xf32>
    %cst_6 = arith.constant 2.000000e-01 : f32
    %8 = vector.broadcast %cst_6 : f32 to vector<512x128xf32>
    %9 = arith.mulf %8, %5 : vector<512x128xf32>
    %10 = arith.select %7, %5, %9 : vector<512x128xi1>, vector<512x128xf32>
    %c0_7 = arith.constant 0 : index
    %c0_8 = arith.constant 0 : index
    %11 = vector.load %arg4[%c0_7, %c0_8] : memref<512x512xbf16, #tpu.memory_space<vmem>>, vector<512x512xbf16>
    %12 = arith.truncf %10 : vector<512x128xf32> to vector<512x128xbf16>
    %cst_9 = arith.constant dense<0.000000e+00> : vector<512x128xf32>
    %13 = tpu.matmul %11, %12, %cst_9 {dimension_numbers = #tpu.dot_dimension_numbers<[1], [0], [0], [1], [0, 0, 1, 1], [], []>} : vector<512x512xbf16>, vector<512x128xbf16>, vector<512x128xf32> -> vector<512x128xf32>
    %c0_10 = arith.constant 0 : index
    %c0_11 = arith.constant 0 : index
    %14 = vector.load %arg5[%c0_10, %c0_11] : memref<512x1xf32, #tpu.memory_space<vmem>>, vector<512x1xf32>
    %15 = vector.broadcast %14 : vector<512x1xf32> to vector<512x128xf32>
    %16 = arith.addf %13, %15 : vector<512x128xf32>
    %cst_12 = arith.constant 0.000000e+00 : f32
    %17 = vector.broadcast %cst_12 : f32 to vector<512x128xf32>
    %18 = arith.cmpf oge, %16, %17 : vector<512x128xf32>
    %cst_13 = arith.constant 2.000000e-01 : f32
    %19 = vector.broadcast %cst_13 : f32 to vector<512x128xf32>
    %20 = arith.mulf %19, %16 : vector<512x128xf32>
    %21 = arith.select %18, %16, %20 : vector<512x128xi1>, vector<512x128xf32>
    %c0_14 = arith.constant 0 : index
    %c0_15 = arith.constant 0 : index
    %22 = vector.load %arg6[%c0_14, %c0_15] : memref<512x512xbf16, #tpu.memory_space<vmem>>, vector<512x512xbf16>
    %23 = arith.truncf %21 : vector<512x128xf32> to vector<512x128xbf16>
    %cst_16 = arith.constant dense<0.000000e+00> : vector<512x128xf32>
    %24 = tpu.matmul %22, %23, %cst_16 {dimension_numbers = #tpu.dot_dimension_numbers<[1], [0], [0], [1], [0, 0, 1, 1], [], []>} : vector<512x512xbf16>, vector<512x128xbf16>, vector<512x128xf32> -> vector<512x128xf32>
    %c0_17 = arith.constant 0 : index
    %c0_18 = arith.constant 0 : index
    %25 = vector.load %arg7[%c0_17, %c0_18] : memref<512x1xf32, #tpu.memory_space<vmem>>, vector<512x1xf32>
    %26 = vector.broadcast %25 : vector<512x1xf32> to vector<512x128xf32>
    %27 = arith.addf %24, %26 : vector<512x128xf32>
    %cst_19 = arith.constant 0.000000e+00 : f32
    %28 = vector.broadcast %cst_19 : f32 to vector<512x128xf32>
    %29 = arith.cmpf oge, %27, %28 : vector<512x128xf32>
    %cst_20 = arith.constant 2.000000e-01 : f32
    %30 = vector.broadcast %cst_20 : f32 to vector<512x128xf32>
    %31 = arith.mulf %30, %27 : vector<512x128xf32>
    %32 = arith.select %29, %27, %31 : vector<512x128xi1>, vector<512x128xf32>
    %c0_21 = arith.constant 0 : index
    %c0_22 = arith.constant 0 : index
    %33 = vector.load %arg8[%c0_21, %c0_22] : memref<8x512xbf16, #tpu.memory_space<vmem>>, vector<8x512xbf16>
    %34 = arith.truncf %32 : vector<512x128xf32> to vector<512x128xbf16>
    %cst_23 = arith.constant dense<0.000000e+00> : vector<8x128xf32>
    %35 = tpu.matmul %33, %34, %cst_23 {dimension_numbers = #tpu.dot_dimension_numbers<[1], [0], [0], [1], [0, 0, 1, 1], [], []>} : vector<8x512xbf16>, vector<512x128xbf16>, vector<8x128xf32> -> vector<8x128xf32>
    %36 = vector.extract_strided_slice %35 {offsets = [0, 0], sizes = [1, 128], strides = [1, 1]} : vector<8x128xf32> to vector<1x128xf32>
    %c0_24 = arith.constant 0 : index
    %c0_25 = arith.constant 0 : index
    %37 = vector.load %arg9[%c0_24, %c0_25] : memref<1x1xf32, #tpu.memory_space<vmem>>, vector<1x1xf32>
    %38 = vector.broadcast %37 : vector<1x1xf32> to vector<1x128xf32>
    %39 = arith.addf %36, %38 : vector<1x128xf32>
    %40 = math.absf %39 : vector<1x128xf32>
    %cst_26 = arith.constant 0.000000e+00 : f32
    %41 = vector.broadcast %cst_26 : f32 to vector<1x128xf32>
    %42 = arith.subf %41, %40 : vector<1x128xf32>
    %43 = math.exp %42 : vector<1x128xf32>
    %cst_27 = arith.constant 1.000000e+00 : f32
    %44 = vector.broadcast %cst_27 : f32 to vector<1x128xf32>
    %45 = arith.addf %44, %43 : vector<1x128xf32>
    %cst_28 = arith.constant 1.000000e+00 : f32
    %46 = vector.broadcast %cst_28 : f32 to vector<1x128xf32>
    %47 = arith.divf %46, %45 : vector<1x128xf32>
    %cst_29 = arith.constant 0.000000e+00 : f32
    %48 = vector.broadcast %cst_29 : f32 to vector<1x128xf32>
    %49 = arith.cmpf oge, %39, %48 : vector<1x128xf32>
    %50 = arith.mulf %43, %47 : vector<1x128xf32>
    %51 = arith.select %49, %47, %50 : vector<1x128xi1>, vector<1x128xf32>
    %c0_30 = arith.constant 0 : index
    %c0_31 = arith.constant 0 : index
    %52 = vector.load %arg10[%c0_30, %c0_31] : memref<1x128xf32, #tpu.memory_space<vmem>>, vector<1x128xf32>
    tpu.vector_store %arg10[%c0_30, %c0_31], %51 {strides = array<i32>} : memref<1x128xf32, #tpu.memory_space<vmem>>, vector<1x128xf32>,
    return
  }
  func.func @transform_0(%arg0: i32) -> (i32, i32) {
    %c0_i32 = arith.constant 0 : i32
    %c0_i32_0 = arith.constant 0 : i32
    return %c0_i32, %arg0 : i32, i32
  }
  func.func @transform_1(%arg0: i32) -> (i32, i32) {
    %c0_i32 = arith.constant 0 : i32
    %c0_i32_0 = arith.constant 0 : i32
    %c0_i32_1 = arith.constant 0 : i32
    return %c0_i32, %c0_i32_0 : i32, i32
  }
  func.func @transform_2(%arg0: i32) -> (i32, i32) {
    %c0_i32 = arith.constant 0 : i32
    %c0_i32_0 = arith.constant 0 : i32
    %c0_i32_1 = arith.constant 0 : i32
    return %c0_i32, %c0_i32_0 : i32, i32
  }
  func.func @transform_3(%arg0: i32) -> (i32, i32) {
    %c0_i32 = arith.constant 0 : i32
    %c0_i32_0 = arith.constant 0 : i32
    %c0_i32_1 = arith.constant 0 : i32
    return %c0_i32, %c0_i32_0 : i32, i32
  }
  func.func @transform_4(%arg0: i32) -> (i32, i32) {
    %c0_i32 = arith.constant 0 : i32
    %c0_i32_0 = arith.constant 0 : i32
    %c0_i32_1 = arith.constant 0 : i32
    return %c0_i32, %c0_i32_0 : i32, i32
  }
  func.func @transform_5(%arg0: i32) -> (i32, i32) {
    %c0_i32 = arith.constant 0 : i32
    %c0_i32_0 = arith.constant 0 : i32
    %c0_i32_1 = arith.constant 0 : i32
    return %c0_i32, %c0_i32_0 : i32, i32
  }
  func.func @transform_6(%arg0: i32) -> (i32, i32) {
    %c0_i32 = arith.constant 0 : i32
    %c0_i32_0 = arith.constant 0 : i32
    %c0_i32_1 = arith.constant 0 : i32
    return %c0_i32, %c0_i32_0 : i32, i32
  }
  func.func @transform_7(%arg0: i32) -> (i32, i32) {
    %c0_i32 = arith.constant 0 : i32
    %c0_i32_0 = arith.constant 0 : i32
    %c0_i32_1 = arith.constant 0 : i32
    return %c0_i32, %c0_i32_0 : i32, i32
  }
  func.func @transform_8(%arg0: i32) -> (i32, i32) {
    %c0_i32 = arith.constant 0 : i32
    %c0_i32_0 = arith.constant 0 : i32
    %c0_i32_1 = arith.constant 0 : i32
    return %c0_i32, %c0_i32_0 : i32, i32
  }
  func.func @transform_9(%arg0: i32) -> (i32, i32) {
    %c0_i32 = arith.constant 0 : i32
    %c0_i32_0 = arith.constant 0 : i32
    return %c0_i32, %arg0 : i32, i32
  }
}

</mosaic_0001>

<llo_original>
// kernel: tpu_custom_call.1
$region0: #{tpu_custom_call.1}
  #allocation0 [shape = 'u32[]', space=smem, size = 0x4, offset = 0x4, fixed_abs, tag = 'smem constant byte address 0x4 - core index']
  #allocation1 [shape = 'u32[144,128]{1,0:T(1,128)}', space=vmem, size = 0x12000, scoped, tag = 'internal scratch']
  #allocation2 [shape = 'f32[1,1]{1,0:T(1,128)S(1)}', space=vmem, size = 0x200, scoped, tag = 'scoped memory for tpu_custom_call.1']
  %s0 = inlined_call_operand.vmem [shape: bf16[384,128], index: 0, kind: input, shape index: {}]
  %s1 = inlined_call_operand.hbm [shape: bf16[512,384], index: 1, kind: input, shape index: {}]
  %s2 = inlined_call_operand.vmem [shape: f32[512,1], index: 2, kind: input, shape index: {}]
  %s3 = inlined_call_operand.vmem [shape: bf16[512,512], index: 3, kind: input, shape index: {}]
  %s4 = inlined_call_operand.vmem [shape: f32[512,1], index: 4, kind: input, shape index: {}]
  %s5 = inlined_call_operand.hbm [shape: bf16[512,512], index: 5, kind: input, shape index: {}]
  %s6 = inlined_call_operand.vmem [shape: f32[512,1], index: 6, kind: input, shape index: {}]
  %s7 = inlined_call_operand.vmem [shape: bf16[8,512], index: 7, kind: input, shape index: {}]
  %s8 = inlined_call_operand.<no memory space> [shape: f32[1,1], index: 8, kind: input, shape index: {}]
  %s9 = inlined_call_operand.hbm [shape: f32[1,128], index: 9, kind: output, shape index: {}]
  %s10 = sld [smem:[#allocation0]]
  $region54: #{tpu_custom_call.1} parent=0
    _
  %s12 = ssub.s32 1, %s10
  %s13 = scalar_select 0, %s12, %s10
  %v14 = vstv %s8
  %15 = vst [vmem:[#allocation2] sm:$0x1] %v14
  $region1: #{tpu_custom_call.1} parent=0
    #allocation3 [shape = 'u8[393216]{0}', space=vmem, size = 0x60000, scoped, tag = 'input window, operand 1, single buffered']
    #allocation4 [shape = 's32[1]{0}', space=sflag, size = 0x4, scoped, tag = 'scoped memory for tpu_custom_call.1']
    #allocation5 [shape = 's32[1]{0}', space=sflag, size = 0x4, scoped, tag = 'scoped memory for tpu_custom_call.1']
    #allocation6 [shape = 'u8[524288]{0}', space=vmem, size = 0x80000, scoped, tag = 'input window, operand 5, single buffered']
    #allocation7 [shape = 's32[1]{0}', space=sflag, size = 0x4, scoped, tag = 'scoped memory for tpu_custom_call.1']
    #allocation8 [shape = 'u8[512]{0}', space=vmem, size = 0x400, scoped, tag = 'output window, operand 0, single buffered']
    %16 = vsyncpa [#allocation4], 0
    %17 = vsyncpa [#allocation7], 0
    %18 = vsyncpa [#allocation5], 0
    // Predicated region
    $region2: #{tpu_custom_call.1} parent=1 // pred_check
      _
    $region3: #{tpu_custom_call.1} parent=1 // pred_check_branch
      %20 = sbr.rel (0) target = $region5
    $region4: #{tpu_custom_call.1} parent=1 // pred_region
      _
    $region5: #{tpu_custom_call.1} parent=1 // pred_fallthru
      _
    // Predicated region
    $region6: #{tpu_custom_call.1} parent=1 // pred_check
      _
    $region7: #{tpu_custom_call.1} parent=1 // pred_check_branch
      %22 = sbr.rel (0) target = $region9
    $region8: #{tpu_custom_call.1} parent=1 // pred_region
      %s24 = ssub.s32 12288, 12288
      %25 = vsyncadd [#allocation4], %s24
      %s26 = sshll.u32 [#allocation3], 4
      %s27 = int_to_ptr.vmem [resolvable:$true] %s26
      %32 = dma.hbm_to_vmem [thread:$0]  %s1, 12288, %s27, [#allocation4], 192, 192, 12
    $region9: #{tpu_custom_call.1} parent=1 // pred_fallthru
      _
    // Predicated region
    $region10: #{tpu_custom_call.1} parent=1 // pred_check
      _
    $region11: #{tpu_custom_call.1} parent=1 // pred_check_branch
      %34 = sbr.rel (0) target = $region13
    $region12: #{tpu_custom_call.1} parent=1 // pred_region
      _
    $region13: #{tpu_custom_call.1} parent=1 // pred_fallthru
      _
    // Predicated region
    $region14: #{tpu_custom_call.1} parent=1 // pred_check
      _
    $region15: #{tpu_custom_call.1} parent=1 // pred_check_branch
      %36 = sbr.rel (0) target = $region17
    $region16: #{tpu_custom_call.1} parent=1 // pred_region
      _
    $region17: #{tpu_custom_call.1} parent=1 // pred_fallthru
      _
    // Predicated region
    $region18: #{tpu_custom_call.1} parent=1 // pred_check
      _
    $region19: #{tpu_custom_call.1} parent=1 // pred_check_branch
      %38 = sbr.rel (0) target = $region21
    $region20: #{tpu_custom_call.1} parent=1 // pred_region
      _
    $region21: #{tpu_custom_call.1} parent=1 // pred_fallthru
      _
    // Predicated region
    $region22: #{tpu_custom_call.1} parent=1 // pred_check
      _
    $region23: #{tpu_custom_call.1} parent=1 // pred_check_branch
      %40 = sbr.rel (0) target = $region25
    $region24: #{tpu_custom_call.1} parent=1 // pred_region
      %s42 = ssub.s32 16384, 16384
      %43 = vsyncadd [#allocation7], %s42
      %s44 = sshll.u32 [#allocation6], 4
      %s45 = int_to_ptr.vmem [resolvable:$true] %s44
      %50 = dma.hbm_to_vmem [thread:$0]  %s5, 16384, %s45, [#allocation7], 256, 256, 16
    $region25: #{tpu_custom_call.1} parent=1 // pred_fallthru
      _
    // Predicated region
    $region26: #{tpu_custom_call.1} parent=1 // pred_check
      _
    $region27: #{tpu_custom_call.1} parent=1 // pred_check_branch
      %52 = sbr.rel (0) target = $region29
    $region28: #{tpu_custom_call.1} parent=1 // pred_region
      _
    $region29: #{tpu_custom_call.1} parent=1 // pred_fallthru
      _
    // Predicated region
    $region30: #{tpu_custom_call.1} parent=1 // pred_check
      _
    $region31: #{tpu_custom_call.1} parent=1 // pred_check_branch
      %54 = sbr.rel (0) target = $region33
    $region32: #{tpu_custom_call.1} parent=1 // pred_region
      _
    $region33: #{tpu_custom_call.1} parent=1 // pred_fallthru
      _
    // Predicated region
    $region34: #{tpu_custom_call.1} parent=1 // pred_check
      _
    $region35: #{tpu_custom_call.1} parent=1 // pred_check_branch
      %56 = sbr.rel (0) target = $region37
    $region36: #{tpu_custom_call.1} parent=1 // pred_region
      _
    $region37: #{tpu_custom_call.1} parent=1 // pred_fallthru
      _
    // Predicated region
    $region38: #{tpu_custom_call.1} parent=1 // pred_check
      _
    $region39: #{tpu_custom_call.1} parent=1 // pred_check_branch
      %58 = sbr.rel (0) target = $region41
    $region40: #{tpu_custom_call.1} parent=1 // pred_region
      %59 = dma.done [#allocation4], 12288
    $region41: #{tpu_custom_call.1} parent=1 // pred_fallthru
      _
    // Predicated region
    $region42: #{tpu_custom_call.1} parent=1 // pred_check
      _
    $region43: #{tpu_custom_call.1} parent=1 // pred_check_branch
      %61 = sbr.rel (0) target = $region45
    $region44: #{tpu_custom_call.1} parent=1 // pred_region
      %62 = dma.done [#allocation7], 16384
    $region45: #{tpu_custom_call.1} parent=1 // pred_fallthru
      _
    %v64 = vld [vmem:[#allocation3] sm:$0xff]
    %v65 = vld [vmem:[#allocation3 + $0x8] sm:$0xf]
    %v66 = vld [vmem:[#allocation3 + $0xc] sm:$0xff]
    %v67 = vld [vmem:[#allocation3 + $0x14] sm:$0xf]
    %v68 = vld [vmem:[#allocation3 + $0x18] sm:$0xff]
    %v69 = vld [vmem:[#allocation3 + $0x20] sm:$0xf]
    %v70 = vld [vmem:[#allocation3 + $0x24] sm:$0xff]
    %v71 = vld [vmem:[#allocation3 + $0x2c] sm:$0xf]
    %v72 = vld [vmem:[#allocation3 + $0x30] sm:$0xff]
    %v73 = vld [vmem:[#allocation3 + $0x38] sm:$0xf]
    %v74 = vld [vmem:[#allocation3 + $0x3c] sm:$0xff]
    %v75 = vld [vmem:[#allocation3 + $0x44] sm:$0xf]
    %v76 = vld [vmem:[#allocation3 + $0x48] sm:$0xff]
    %v77 = vld [vmem:[#allocation3 + $0x50] sm:$0xf]
    %v78 = vld [vmem:[#allocation3 + $0x54] sm:$0xff]
    %v79 = vld [vmem:[#allocation3 + $0x5c] sm:$0xf]
    %v80 = vld [vmem:[#allocation3 + $0x60] sm:$0xff]
    %v81 = vld [vmem:[#allocation3 + $0x68] sm:$0xf]
    %v82 = vld [vmem:[#allocation3 + $0x6c] sm:$0xff]
    %v83 = vld [vmem:[#allocation3 + $0x74] sm:$0xf]
    %v84 = vld [vmem:[#allocation3 + $0x78] sm:$0xff]
    %v85 = vld [vmem:[#allocation3 + $0x80] sm:$0xf]
    %v86 = vld [vmem:[#allocation3 + $0x84] sm:$0xff]
    %v87 = vld [vmem:[#allocation3 + $0x8c] sm:$0xf]
    %v88 = vld [vmem:[#allocation3 + $0x90] sm:$0xff]
    %v89 = vld [vmem:[#allocation3 + $0x98] sm:$0xf]
    %v90 = vld [vmem:[#allocation3 + $0x9c] sm:$0xff]
    %v91 = vld [vmem:[#allocation3 + $0xa4] sm:$0xf]
    %v92 = vld [vmem:[#allocation3 + $0xa8] sm:$0xff]
    %v93 = vld [vmem:[#allocation3 + $0xb0] sm:$0xf]
    %v94 = vld [vmem:[#allocation3 + $0xb4] sm:$0xff]
    %v95 = vld [vmem:[#allocation3 + $0xbc] sm:$0xf]
    %v96 = vld [vmem:[#allocation3 + $0xc0] sm:$0xff]
    %v97 = vld [vmem:[#allocation3 + $0xc8] sm:$0xf]
    %v98 = vld [vmem:[#allocation3 + $0xcc] sm:$0xff]
    %v99 = vld [vmem:[#allocation3 + $0xd4] sm:$0xf]
    %v100 = vld [vmem:[#allocation3 + $0xd8] sm:$0xff]
    %v101 = vld [vmem:[#allocation3 + $0xe0] sm:$0xf]
    %v102 = vld [vmem:[#allocation3 + $0xe4] sm:$0xff]
    %v103 = vld [vmem:[#allocation3 + $0xec] sm:$0xf]
    %v104 = vld [vmem:[#allocation3 + $0xf0] sm:$0xff]
    %v105 = vld [vmem:[#allocation3 + $0xf8] sm:$0xf]
    %v106 = vld [vmem:[#allocation3 + $0xfc] sm:$0xff]
    %v107 = vld [vmem:[#allocation3 + $0x104] sm:$0xf]
    %v108 = vld [vmem:[#allocation3 + $0x108] sm:$0xff]
    %v109 = vld [vmem:[#allocation3 + $0x110] sm:$0xf]
    %v110 = vld [vmem:[#allocation3 + $0x114] sm:$0xff]
    %v111 = vld [vmem:[#allocation3 + $0x11c] sm:$0xf]
    %v112 = vld [vmem:[#allocation3 + $0x120] sm:$0xff]
    %v113 = vld [vmem:[#allocation3 + $0x128] sm:$0xf]
    %v114 = vld [vmem:[#allocation3 + $0x12c] sm:$0xff]
    %v115 = vld [vmem:[#allocation3 + $0x134] sm:$0xf]
    %v116 = vld [vmem:[#allocation3 + $0x138] sm:$0xff]
    %v117 = vld [vmem:[#allocation3 + $0x140] sm:$0xf]
    %v118 = vld [vmem:[#allocation3 + $0x144] sm:$0xff]
    %v119 = vld [vmem:[#allocation3 + $0x14c] sm:$0xf]
    %v120 = vld [vmem:[#allocation3 + $0x150] sm:$0xff]
    %v121 = vld [vmem:[#allocation3 + $0x158] sm:$0xf]
    %v122 = vld [vmem:[#allocation3 + $0x15c] sm:$0xff]
    %v123 = vld [vmem:[#allocation3 + $0x164] sm:$0xf]
    %v124 = vld [vmem:[#allocation3 + $0x168] sm:$0xff]
    %v125 = vld [vmem:[#allocation3 + $0x170] sm:$0xf]
    %v126 = vld [vmem:[#allocation3 + $0x174] sm:$0xff]
    %v127 = vld [vmem:[#allocation3 + $0x17c] sm:$0xf]
    %v128 = vld [vmem:[#allocation3 + $0x180] sm:$0xff]
    %v129 = vld [vmem:[#allocation3 + $0x188] sm:$0xf]
    %v130 = vld [vmem:[#allocation3 + $0x18c] sm:$0xff]
    %v131 = vld [vmem:[#allocation3 + $0x194] sm:$0xf]
    %v132 = vld [vmem:[#allocation3 + $0x198] sm:$0xff]
    %v133 = vld [vmem:[#allocation3 + $0x1a0] sm:$0xf]
    %v134 = vld [vmem:[#allocation3 + $0x1a4] sm:$0xff]
    %v135 = vld [vmem:[#allocation3 + $0x1ac] sm:$0xf]
    %v136 = vld [vmem:[#allocation3 + $0x1b0] sm:$0xff]
    %v137 = vld [vmem:[#allocation3 + $0x1b8] sm:$0xf]
    %v138 = vld [vmem:[#allocation3 + $0x1bc] sm:$0xff]
    %v139 = vld [vmem:[#allocation3 + $0x1c4] sm:$0xf]
    %v140 = vld [vmem:[#allocation3 + $0x1c8] sm:$0xff]
    %v141 = vld [vmem:[#allocation3 + $0x1d0] sm:$0xf]
    %v142 = vld [vmem:[#allocation3 + $0x1d4] sm:$0xff]
    %v143 = vld [vmem:[#allocation3 + $0x1dc] sm:$0xf]
    %v144 = vld [vmem:[#allocation3 + $0x1e0] sm:$0xff]
    %v145 = vld [vmem:[#allocation3 + $0x1e8] sm:$0xf]
    %v146 = vld [vmem:[#allocation3 + $0x1ec] sm:$0xff]
    %v147 = vld [vmem:[#allocation3 + $0x1f4] sm:$0xf]
    %v148 = vld [vmem:[#allocation3 + $0x1f8] sm:$0xff]
    %v149 = vld [vmem:[#allocation3 + $0x200] sm:$0xf]
    %v150 = vld [vmem:[#allocation3 + $0x204] sm:$0xff]
    %v151 = vld [vmem:[#allocation3 + $0x20c] sm:$0xf]
    %v152 = vld [vmem:[#allocation3 + $0x210] sm:$0xff]
    %v153 = vld [vmem:[#allocation3 + $0x218] sm:$0xf]
    %v154 = vld [vmem:[#allocation3 + $0x21c] sm:$0xff]
    %v155 = vld [vmem:[#allocation3 + $0x224] sm:$0xf]
    %v156 = vld [vmem:[#allocation3 + $0x228] sm:$0xff]
    %v157 = vld [vmem:[#allocation3 + $0x230] sm:$0xf]
    %v158 = vld [vmem:[#allocation3 + $0x234] sm:$0xff]
    %v159 = vld [vmem:[#allocation3 + $0x23c] sm:$0xf]
    %v160 = vld [vmem:[#allocation3 + $0x240] sm:$0xff]
    %v161 = vld [vmem:[#allocation3 + $0x248] sm:$0xf]
    %v162 = vld [vmem:[#allocation3 + $0x24c] sm:$0xff]
    %v163 = vld [vmem:[#allocation3 + $0x254] sm:$0xf]
    %v164 = vld [vmem:[#allocation3 + $0x258] sm:$0xff]
    %v165 = vld [vmem:[#allocation3 + $0x260] sm:$0xf]
    %v166 = vld [vmem:[#allocation3 + $0x264] sm:$0xff]
    %v167 = vld [vmem:[#allocation3 + $0x26c] sm:$0xf]
    %v168 = vld [vmem:[#allocation3 + $0x270] sm:$0xff]
    %v169 = vld [vmem:[#allocation3 + $0x278] sm:$0xf]
    %v170 = vld [vmem:[#allocation3 + $0x27c] sm:$0xff]
    %v171 = vld [vmem:[#allocation3 + $0x284] sm:$0xf]
    %v172 = vld [vmem:[#allocation3 + $0x288] sm:$0xff]
    %v173 = vld [vmem:[#allocation3 + $0x290] sm:$0xf]
    %v174 = vld [vmem:[#allocation3 + $0x294] sm:$0xff]
    %v175 = vld [vmem:[#allocation3 + $0x29c] sm:$0xf]
    %v176 = vld [vmem:[#allocation3 + $0x2a0] sm:$0xff]
    %v177 = vld [vmem:[#allocation3 + $0x2a8] sm:$0xf]
    %v178 = vld [vmem:[#allocation3 + $0x2ac] sm:$0xff]
    %v179 = vld [vmem:[#allocation3 + $0x2b4] sm:$0xf]
    %v180 = vld [vmem:[#allocation3 + $0x2b8] sm:$0xff]
    %v181 = vld [vmem:[#allocation3 + $0x2c0] sm:$0xf]
    %v182 = vld [vmem:[#allocation3 + $0x2c4] sm:$0xff]
    %v183 = vld [vmem:[#allocation3 + $0x2cc] sm:$0xf]
    %v184 = vld [vmem:[#allocation3 + $0x2d0] sm:$0xff]
    %v185 = vld [vmem:[#allocation3 + $0x2d8] sm:$0xf]
    %v186 = vld [vmem:[#allocation3 + $0x2dc] sm:$0xff]
    %v187 = vld [vmem:[#allocation3 + $0x2e4] sm:$0xf]
    %v188 = vld [vmem:[#allocation3 + $0x2e8] sm:$0xff]
    %v189 = vld [vmem:[#allocation3 + $0x2f0] sm:$0xf]
    %v190 = vld [vmem:[#allocation3 + $0x2f4] sm:$0xff]
    %v191 = vld [vmem:[#allocation3 + $0x2fc] sm:$0xf]
    %v192 = vld [vmem:[%s0] sm:$0xf]
    %v193 = vld [vmem:[%s0 + $0x4] sm:$0xf]
    %v194 = vld [vmem:[%s0 + $0x8] sm:$0xf]
    %v195 = vld [vmem:[%s0 + $0xc] sm:$0xf]
    %v196 = vld [vmem:[%s0 + $0x10] sm:$0xf]
    %v197 = vld [vmem:[%s0 + $0x14] sm:$0xf]
    %v198 = vld [vmem:[%s0 + $0x18] sm:$0xf]
    %v199 = vld [vmem:[%s0 + $0x1c] sm:$0xf]
    %v200 = vld [vmem:[%s0 + $0x20] sm:$0xf]
    %v201 = vld [vmem:[%s0 + $0x24] sm:$0xf]
    %v202 = vld [vmem:[%s0 + $0x28] sm:$0xf]
    %v203 = vld [vmem:[%s0 + $0x2c] sm:$0xf]
    %v204 = vld [vmem:[%s0 + $0x30] sm:$0xf]
    %v205 = vld [vmem:[%s0 + $0x34] sm:$0xf]
    %v206 = vld [vmem:[%s0 + $0x38] sm:$0xf]
    %v207 = vld [vmem:[%s0 + $0x3c] sm:$0xf]
    %v208 = vld [vmem:[%s0 + $0x40] sm:$0xf]
    %v209 = vld [vmem:[%s0 + $0x44] sm:$0xf]
    %v210 = vld [vmem:[%s0 + $0x48] sm:$0xf]
    %v211 = vld [vmem:[%s0 + $0x4c] sm:$0xf]
    %v212 = vld [vmem:[%s0 + $0x50] sm:$0xf]
    %v213 = vld [vmem:[%s0 + $0x54] sm:$0xf]
    %v214 = vld [vmem:[%s0 + $0x58] sm:$0xf]
    %v215 = vld [vmem:[%s0 + $0x5c] sm:$0xf]
    %v216 = vld [vmem:[%s0 + $0x60] sm:$0xf]
    %v217 = vld [vmem:[%s0 + $0x64] sm:$0xf]
    %v218 = vld [vmem:[%s0 + $0x68] sm:$0xf]
    %v219 = vld [vmem:[%s0 + $0x6c] sm:$0xf]
    %v220 = vld [vmem:[%s0 + $0x70] sm:$0xf]
    %v221 = vld [vmem:[%s0 + $0x74] sm:$0xf]
    %v222 = vld [vmem:[%s0 + $0x78] sm:$0xf]
    %v223 = vld [vmem:[%s0 + $0x7c] sm:$0xf]
    %v224 = vld [vmem:[%s0 + $0x80] sm:$0xf]
    %v225 = vld [vmem:[%s0 + $0x84] sm:$0xf]
    %v226 = vld [vmem:[%s0 + $0x88] sm:$0xf]
    %v227 = vld [vmem:[%s0 + $0x8c] sm:$0xf]
    %v228 = vld [vmem:[%s0 + $0x90] sm:$0xf]
    %v229 = vld [vmem:[%s0 + $0x94] sm:$0xf]
    %v230 = vld [vmem:[%s0 + $0x98] sm:$0xf]
    %v231 = vld [vmem:[%s0 + $0x9c] sm:$0xf]
    %v232 = vld [vmem:[%s0 + $0xa0] sm:$0xf]
    %v233 = vld [vmem:[%s0 + $0xa4] sm:$0xf]
    %v234 = vld [vmem:[%s0 + $0xa8] sm:$0xf]
    %v235 = vld [vmem:[%s0 + $0xac] sm:$0xf]
    %v236 = vld [vmem:[%s0 + $0xb0] sm:$0xf]
    %v237 = vld [vmem:[%s0 + $0xb4] sm:$0xf]
    %v238 = vld [vmem:[%s0 + $0xb8] sm:$0xf]
    %v239 = vld [vmem:[%s0 + $0xbc] sm:$0xf]
    %v240 = vld [vmem:[%s2] sm:$0xff]
    %v241 = vld [vmem:[%s2 + $0x8] sm:$0xff]
    %v242 = vld [vmem:[%s2 + $0x10] sm:$0xff]
    %v243 = vld [vmem:[%s2 + $0x18] sm:$0xff]
    %v244 = vld [vmem:[%s2 + $0x20] sm:$0xff]
    %v245 = vld [vmem:[%s2 + $0x28] sm:$0xff]
    %v246 = vld [vmem:[%s2 + $0x30] sm:$0xff]
    %v247 = vld [vmem:[%s2 + $0x38] sm:$0xff]
    %v248 = vld [vmem:[%s2 + $0x40] sm:$0xff]
    %v249 = vld [vmem:[%s2 + $0x48] sm:$0xff]
    %v250 = vld [vmem:[%s2 + $0x50] sm:$0xff]
    %v251 = vld [vmem:[%s2 + $0x58] sm:$0xff]
    %v252 = vld [vmem:[%s2 + $0x60] sm:$0xff]
    %v253 = vld [vmem:[%s2 + $0x68] sm:$0xff]
    %v254 = vld [vmem:[%s2 + $0x70] sm:$0xff]
    %v255 = vld [vmem:[%s2 + $0x78] sm:$0xff]
    %v256 = vld [vmem:[%s2 + $0x80] sm:$0xff]
    %v257 = vld [vmem:[%s2 + $0x88] sm:$0xff]
    %v258 = vld [vmem:[%s2 + $0x90] sm:$0xff]
    %v259 = vld [vmem:[%s2 + $0x98] sm:$0xff]
    %v260 = vld [vmem:[%s2 + $0xa0] sm:$0xff]
    %v261 = vld [vmem:[%s2 + $0xa8] sm:$0xff]
    %v262 = vld [vmem:[%s2 + $0xb0] sm:$0xff]
    %v263 = vld [vmem:[%s2 + $0xb8] sm:$0xff]
    %v264 = vld [vmem:[%s2 + $0xc0] sm:$0xff]
    %v265 = vld [vmem:[%s2 + $0xc8] sm:$0xff]
    %v266 = vld [vmem:[%s2 + $0xd0] sm:$0xff]
    %v267 = vld [vmem:[%s2 + $0xd8] sm:$0xff]
    %v268 = vld [vmem:[%s2 + $0xe0] sm:$0xff]
    %v269 = vld [vmem:[%s2 + $0xe8] sm:$0xff]
    %v270 = vld [vmem:[%s2 + $0xf0] sm:$0xff]
    %v271 = vld [vmem:[%s2 + $0xf8] sm:$0xff]
    %v272 = vld [vmem:[%s2 + $0x100] sm:$0xff]
    %v273 = vld [vmem:[%s2 + $0x108] sm:$0xff]
    %v274 = vld [vmem:[%s2 + $0x110] sm:$0xff]
    %v275 = vld [vmem:[%s2 + $0x118] sm:$0xff]
    %v276 = vld [vmem:[%s2 + $0x120] sm:$0xff]
    %v277 = vld [vmem:[%s2 + $0x128] sm:$0xff]
    %v278 = vld [vmem:[%s2 + $0x130] sm:$0xff]
    %v279 = vld [vmem:[%s2 + $0x138] sm:$0xff]
    %v280 = vld [vmem:[%s2 + $0x140] sm:$0xff]
    %v281 = vld [vmem:[%s2 + $0x148] sm:$0xff]
    %v282 = vld [vmem:[%s2 + $0x150] sm:$0xff]
    %v283 = vld [vmem:[%s2 + $0x158] sm:$0xff]
    %v284 = vld [vmem:[%s2 + $0x160] sm:$0xff]
    %v285 = vld [vmem:[%s2 + $0x168] sm:$0xff]
    %v286 = vld [vmem:[%s2 + $0x170] sm:$0xff]
    %v287 = vld [vmem:[%s2 + $0x178] sm:$0xff]
    %v288 = vld [vmem:[%s2 + $0x180] sm:$0xff]
    %v289 = vld [vmem:[%s2 + $0x188] sm:$0xff]
    %v290 = vld [vmem:[%s2 + $0x190] sm:$0xff]
    %v291 = vld [vmem:[%s2 + $0x198] sm:$0xff]
    %v292 = vld [vmem:[%s2 + $0x1a0] sm:$0xff]
    %v293 = vld [vmem:[%s2 + $0x1a8] sm:$0xff]
    %v294 = vld [vmem:[%s2 + $0x1b0] sm:$0xff]
    %v295 = vld [vmem:[%s2 + $0x1b8] sm:$0xff]
    %v296 = vld [vmem:[%s2 + $0x1c0] sm:$0xff]
    %v297 = vld [vmem:[%s2 + $0x1c8] sm:$0xff]
    %v298 = vld [vmem:[%s2 + $0x1d0] sm:$0xff]
    %v299 = vld [vmem:[%s2 + $0x1d8] sm:$0xff]
    %v300 = vld [vmem:[%s2 + $0x1e0] sm:$0xff]
    %v301 = vld [vmem:[%s2 + $0x1e8] sm:$0xff]
    %v302 = vld [vmem:[%s2 + $0x1f0] sm:$0xff]
    %v303 = vld [vmem:[%s2 + $0x1f8] sm:$0xff]
    %305 = vset.pattern.permute.xlu0 0
    %306 = vperm.xlu0 %305, %v240
    %v307 = vpop.permute.xlu0 %306
    %310 = vset.pattern.permute.xlu0 0
    %311 = vperm.xlu0 %310, %v241
    %v312 = vpop.permute.xlu0 %311
    %315 = vset.pattern.permute.xlu0 0
    %316 = vperm.xlu0 %315, %v242
    %v317 = vpop.permute.xlu0 %316
    %320 = vset.pattern.permute.xlu0 0
    %321 = vperm.xlu0 %320, %v243
    %v322 = vpop.permute.xlu0 %321
    %325 = vset.pattern.permute.xlu0 0
    %326 = vperm.xlu0 %325, %v244
    %v327 = vpop.permute.xlu0 %326
    %330 = vset.pattern.permute.xlu0 0
    %331 = vperm.xlu0 %330, %v245
    %v332 = vpop.permute.xlu0 %331
    %335 = vset.pattern.permute.xlu0 0
    %336 = vperm.xlu0 %335, %v246
    %v337 = vpop.permute.xlu0 %336
    %340 = vset.pattern.permute.xlu0 0
    %341 = vperm.xlu0 %340, %v247
    %v342 = vpop.permute.xlu0 %341
    %345 = vset.pattern.permute.xlu0 0
    %346 = vperm.xlu0 %345, %v248
    %v347 = vpop.permute.xlu0 %346
    %350 = vset.pattern.permute.xlu0 0
    %351 = vperm.xlu0 %350, %v249
    %v352 = vpop.permute.xlu0 %351
    %355 = vset.pattern.permute.xlu0 0
    %356 = vperm.xlu0 %355, %v250
    %v357 = vpop.permute.xlu0 %356
    %360 = vset.pattern.permute.xlu0 0
    %361 = vperm.xlu0 %360, %v251
    %v362 = vpop.permute.xlu0 %361
    %365 = vset.pattern.permute.xlu0 0
    %366 = vperm.xlu0 %365, %v252
    %v367 = vpop.permute.xlu0 %366
    %370 = vset.pattern.permute.xlu0 0
    %371 = vperm.xlu0 %370, %v253
    %v372 = vpop.permute.xlu0 %371
    %375 = vset.pattern.permute.xlu0 0
    %376 = vperm.xlu0 %375, %v254
    %v377 = vpop.permute.xlu0 %376
    %380 = vset.pattern.permute.xlu0 0
    %381 = vperm.xlu0 %380, %v255
    %v382 = vpop.permute.xlu0 %381
    %385 = vset.pattern.permute.xlu0 0
    %386 = vperm.xlu0 %385, %v256
    %v387 = vpop.permute.xlu0 %386
    %390 = vset.pattern.permute.xlu0 0
    %391 = vperm.xlu0 %390, %v257
    %v392 = vpop.permute.xlu0 %391
    %395 = vset.pattern.permute.xlu0 0
    %396 = vperm.xlu0 %395, %v258
    %v397 = vpop.permute.xlu0 %396
    %400 = vset.pattern.permute.xlu0 0
    %401 = vperm.xlu0 %400, %v259
    %v402 = vpop.permute.xlu0 %401
    %405 = vset.pattern.permute.xlu0 0
    %406 = vperm.xlu0 %405, %v260
    %v407 = vpop.permute.xlu0 %406
    %410 = vset.pattern.permute.xlu0 0
    %411 = vperm.xlu0 %410, %v261
    %v412 = vpop.permute.xlu0 %411
    %415 = vset.pattern.permute.xlu0 0
    %416 = vperm.xlu0 %415, %v262
    %v417 = vpop.permute.xlu0 %416
    %420 = vset.pattern.permute.xlu0 0
    %421 = vperm.xlu0 %420, %v263
    %v422 = vpop.permute.xlu0 %421
    %425 = vset.pattern.permute.xlu0 0
    %426 = vperm.xlu0 %425, %v264
    %v427 = vpop.permute.xlu0 %426
    %430 = vset.pattern.permute.xlu0 0
    %431 = vperm.xlu0 %430, %v265
    %v432 = vpop.permute.xlu0 %431
    %435 = vset.pattern.permute.xlu0 0
    %436 = vperm.xlu0 %435, %v266
    %v437 = vpop.permute.xlu0 %436
    %440 = vset.pattern.permute.xlu0 0
    %441 = vperm.xlu0 %440, %v267
    %v442 = vpop.permute.xlu0 %441
    %445 = vset.pattern.permute.xlu0 0
    %446 = vperm.xlu0 %445, %v268
    %v447 = vpop.permute.xlu0 %446
    %450 = vset.pattern.permute.xlu0 0
    %451 = vperm.xlu0 %450, %v269
    %v452 = vpop.permute.xlu0 %451
    %455 = vset.pattern.permute.xlu0 0
    %456 = vperm.xlu0 %455, %v270
    %v457 = vpop.permute.xlu0 %456
    %460 = vset.pattern.permute.xlu0 0
    %461 = vperm.xlu0 %460, %v271
    %v462 = vpop.permute.xlu0 %461
    %465 = vset.pattern.permute.xlu0 0
    %466 = vperm.xlu0 %465, %v272
    %v467 = vpop.permute.xlu0 %466
    %470 = vset.pattern.permute.xlu0 0
    %471 = vperm.xlu0 %470, %v273
    %v472 = vpop.permute.xlu0 %471
    %475 = vset.pattern.permute.xlu0 0
    %476 = vperm.xlu0 %475, %v274
    %v477 = vpop.permute.xlu0 %476
    %480 = vset.pattern.permute.xlu0 0
    %481 = vperm.xlu0 %480, %v275
    %v482 = vpop.permute.xlu0 %481
    %485 = vset.pattern.permute.xlu0 0
    %486 = vperm.xlu0 %485, %v276
    %v487 = vpop.permute.xlu0 %486
    %490 = vset.pattern.permute.xlu0 0
    %491 = vperm.xlu0 %490, %v277
    %v492 = vpop.permute.xlu0 %491
    %495 = vset.pattern.permute.xlu0 0
    %496 = vperm.xlu0 %495, %v278
    %v497 = vpop.permute.xlu0 %496
    %500 = vset.pattern.permute.xlu0 0
    %501 = vperm.xlu0 %500, %v279
    %v502 = vpop.permute.xlu0 %501
    %505 = vset.pattern.permute.xlu0 0
    %506 = vperm.xlu0 %505, %v280
    %v507 = vpop.permute.xlu0 %506
    %510 = vset.pattern.permute.xlu0 0
    %511 = vperm.xlu0 %510, %v281
    %v512 = vpop.permute.xlu0 %511
    %515 = vset.pattern.permute.xlu0 0
    %516 = vperm.xlu0 %515, %v282
    %v517 = vpop.permute.xlu0 %516
    %520 = vset.pattern.permute.xlu0 0
    %521 = vperm.xlu0 %520, %v283
    %v522 = vpop.permute.xlu0 %521
    %525 = vset.pattern.permute.xlu0 0
    %526 = vperm.xlu0 %525, %v284
    %v527 = vpop.permute.xlu0 %526
    %530 = vset.pattern.permute.xlu0 0
    %531 = vperm.xlu0 %530, %v285
    %v532 = vpop.permute.xlu0 %531
    %535 = vset.pattern.permute.xlu0 0
    %536 = vperm.xlu0 %535, %v286
    %v537 = vpop.permute.xlu0 %536
    %540 = vset.pattern.permute.xlu0 0
    %541 = vperm.xlu0 %540, %v287
    %v542 = vpop.permute.xlu0 %541
    %545 = vset.pattern.permute.xlu0 0
    %546 = vperm.xlu0 %545, %v288
    %v547 = vpop.permute.xlu0 %546
    %550 = vset.pattern.permute.xlu0 0
    %551 = vperm.xlu0 %550, %v289
    %v552 = vpop.permute.xlu0 %551
    %555 = vset.pattern.permute.xlu0 0
    %556 = vperm.xlu0 %555, %v290
    %v557 = vpop.permute.xlu0 %556
    %560 = vset.pattern.permute.xlu0 0
    %561 = vperm.xlu0 %560, %v291
    %v562 = vpop.permute.xlu0 %561
    %565 = vset.pattern.permute.xlu0 0
    %566 = vperm.xlu0 %565, %v292
    %v567 = vpop.permute.xlu0 %566
    %570 = vset.pattern.permute.xlu0 0
    %571 = vperm.xlu0 %570, %v293
    %v572 = vpop.permute.xlu0 %571
    %575 = vset.pattern.permute.xlu0 0
    %576 = vperm.xlu0 %575, %v294
    %v577 = vpop.permute.xlu0 %576
    %580 = vset.pattern.permute.xlu0 0
    %581 = vperm.xlu0 %580, %v295
    %v582 = vpop.permute.xlu0 %581
    %585 = vset.pattern.permute.xlu0 0
    %586 = vperm.xlu0 %585, %v296
    %v587 = vpop.permute.xlu0 %586
    %590 = vset.pattern.permute.xlu0 0
    %591 = vperm.xlu0 %590, %v297
    %v592 = vpop.permute.xlu0 %591
    %595 = vset.pattern.permute.xlu0 0
    %596 = vperm.xlu0 %595, %v298
    %v597 = vpop.permute.xlu0 %596
    %600 = vset.pattern.permute.xlu0 0
    %601 = vperm.xlu0 %600, %v299
    %v602 = vpop.permute.xlu0 %601
    %605 = vset.pattern.permute.xlu0 0
    %606 = vperm.xlu0 %605, %v300
    %v607 = vpop.permute.xlu0 %606
    %610 = vset.pattern.permute.xlu0 0
    %611 = vperm.xlu0 %610, %v301
    %v612 = vpop.permute.xlu0 %611
    %615 = vset.pattern.permute.xlu0 0
    %616 = vperm.xlu0 %615, %v302
    %v617 = vpop.permute.xlu0 %616
    %620 = vset.pattern.permute.xlu0 0
    %621 = vperm.xlu0 %620, %v303
    %v622 = vpop.permute.xlu0 %621
    %v752 = vunpack.c.l.b16 %v64
    %v753 = vunpack.c.h.b16 %v64
    %v754 = vunpack.c.l.b16 %v65
    %v755 = vunpack.c.l.b16 %v66
    %v756 = vunpack.c.h.b16 %v66
    %v757 = vunpack.c.l.b16 %v67
    %v758 = vunpack.c.l.b16 %v68
    %v759 = vunpack.c.h.b16 %v68
    %v760 = vunpack.c.l.b16 %v69
    %v761 = vunpack.c.l.b16 %v70
    %v762 = vunpack.c.h.b16 %v70
    %v763 = vunpack.c.l.b16 %v71
    %v764 = vunpack.c.l.b16 %v72
    %v765 = vunpack.c.h.b16 %v72
    %v766 = vunpack.c.l.b16 %v73
    %v767 = vunpack.c.l.b16 %v74
    %v768 = vunpack.c.h.b16 %v74
    %v769 = vunpack.c.l.b16 %v75
    %v770 = vunpack.c.l.b16 %v76
    %v771 = vunpack.c.h.b16 %v76
    %v772 = vunpack.c.l.b16 %v77
    %v773 = vunpack.c.l.b16 %v78
    %v774 = vunpack.c.h.b16 %v78
    %v775 = vunpack.c.l.b16 %v79
    %v776 = vunpack.c.l.b16 %v80
    %v777 = vunpack.c.h.b16 %v80
    %v778 = vunpack.c.l.b16 %v81
    %v779 = vunpack.c.l.b16 %v82
    %v780 = vunpack.c.h.b16 %v82
    %v781 = vunpack.c.l.b16 %v83
    %v782 = vunpack.c.l.b16 %v84
    %v783 = vunpack.c.h.b16 %v84
    %v784 = vunpack.c.l.b16 %v85
    %v785 = vunpack.c.l.b16 %v86
    %v786 = vunpack.c.h.b16 %v86
    %v787 = vunpack.c.l.b16 %v87
    %v788 = vunpack.c.l.b16 %v88
    %v789 = vunpack.c.h.b16 %v88
    %v790 = vunpack.c.l.b16 %v89
    %v791 = vunpack.c.l.b16 %v90
    %v792 = vunpack.c.h.b16 %v90
    %v793 = vunpack.c.l.b16 %v91
    %v794 = vunpack.c.l.b16 %v92
    %v795 = vunpack.c.h.b16 %v92
    %v796 = vunpack.c.l.b16 %v93
    %v797 = vunpack.c.l.b16 %v94
    %v798 = vunpack.c.h.b16 %v94
    %v799 = vunpack.c.l.b16 %v95
    %v800 = vunpack.c.l.b16 %v96
    %v801 = vunpack.c.h.b16 %v96
    %v802 = vunpack.c.l.b16 %v97
    %v803 = vunpack.c.l.b16 %v98
    %v804 = vunpack.c.h.b16 %v98
    %v805 = vunpack.c.l.b16 %v99
    %v806 = vunpack.c.l.b16 %v100
    %v807 = vunpack.c.h.b16 %v100
    %v808 = vunpack.c.l.b16 %v101
    %v809 = vunpack.c.l.b16 %v102
    %v810 = vunpack.c.h.b16 %v102
    %v811 = vunpack.c.l.b16 %v103
    %v812 = vunpack.c.l.b16 %v104
    %v813 = vunpack.c.h.b16 %v104
    %v814 = vunpack.c.l.b16 %v105
    %v815 = vunpack.c.l.b16 %v106
    %v816 = vunpack.c.h.b16 %v106
    %v817 = vunpack.c.l.b16 %v107
    %v818 = vunpack.c.l.b16 %v108
    %v819 = vunpack.c.h.b16 %v108
    %v820 = vunpack.c.l.b16 %v109
    %v821 = vunpack.c.l.b16 %v110
    %v822 = vunpack.c.h.b16 %v110
    %v823 = vunpack.c.l.b16 %v111
    %v824 = vunpack.c.l.b16 %v112
    %v825 = vunpack.c.h.b16 %v112
    %v826 = vunpack.c.l.b16 %v113
    %v827 = vunpack.c.l.b16 %v114
    %v828 = vunpack.c.h.b16 %v114
    %v829 = vunpack.c.l.b16 %v115
    %v830 = vunpack.c.l.b16 %v116
    %v831 = vunpack.c.h.b16 %v116
    %v832 = vunpack.c.l.b16 %v117
    %v833 = vunpack.c.l.b16 %v118
    %v834 = vunpack.c.h.b16 %v118
    %v835 = vunpack.c.l.b16 %v119
    %v836 = vunpack.c.l.b16 %v120
    %v837 = vunpack.c.h.b16 %v120
    %v838 = vunpack.c.l.b16 %v121
    %v839 = vunpack.c.l.b16 %v122
    %v840 = vunpack.c.h.b16 %v122
    %v841 = vunpack.c.l.b16 %v123
    %v842 = vunpack.c.l.b16 %v124
    %v843 = vunpack.c.h.b16 %v124
    %v844 = vunpack.c.l.b16 %v125
    %v845 = vunpack.c.l.b16 %v126
    %v846 = vunpack.c.h.b16 %v126
    %v847 = vunpack.c.l.b16 %v127
    %v848 = vunpack.c.l.b16 %v128
    %v849 = vunpack.c.h.b16 %v128
    %v850 = vunpack.c.l.b16 %v129
    %v851 = vunpack.c.l.b16 %v130
    %v852 = vunpack.c.h.b16 %v130
    %v853 = vunpack.c.l.b16 %v131
    %v854 = vunpack.c.l.b16 %v132
    %v855 = vunpack.c.h.b16 %v132
    %v856 = vunpack.c.l.b16 %v133
    %v857 = vunpack.c.l.b16 %v134
    %v858 = vunpack.c.h.b16 %v134
    %v859 = vunpack.c.l.b16 %v135
    %v860 = vunpack.c.l.b16 %v136
    %v861 = vunpack.c.h.b16 %v136
    %v862 = vunpack.c.l.b16 %v137
    %v863 = vunpack.c.l.b16 %v138
    %v864 = vunpack.c.h.b16 %v138
    %v865 = vunpack.c.l.b16 %v139
    %v866 = vunpack.c.l.b16 %v140
    %v867 = vunpack.c.h.b16 %v140
    %v868 = vunpack.c.l.b16 %v141
    %v869 = vunpack.c.l.b16 %v142
    %v870 = vunpack.c.h.b16 %v142
    %v871 = vunpack.c.l.b16 %v143
    %v872 = vunpack.c.l.b16 %v144
    %v873 = vunpack.c.h.b16 %v144
    %v874 = vunpack.c.l.b16 %v145
    %v875 = vunpack.c.l.b16 %v146
    %v876 = vunpack.c.h.b16 %v146
    %v877 = vunpack.c.l.b16 %v147
    %v878 = vunpack.c.l.b16 %v148
    %v879 = vunpack.c.h.b16 %v148
    %v880 = vunpack.c.l.b16 %v149
    %v881 = vunpack.c.l.b16 %v150
    %v882 = vunpack.c.h.b16 %v150
    %v883 = vunpack.c.l.b16 %v151
    %v884 = vunpack.c.l.b16 %v152
    %v885 = vunpack.c.h.b16 %v152
    %v886 = vunpack.c.l.b16 %v153
    %v887 = vunpack.c.l.b16 %v154
    %v888 = vunpack.c.h.b16 %v154
    %v889 = vunpack.c.l.b16 %v155
    %v890 = vunpack.c.l.b16 %v156
    %v891 = vunpack.c.h.b16 %v156
    %v892 = vunpack.c.l.b16 %v157
    %v893 = vunpack.c.l.b16 %v158
    %v894 = vunpack.c.h.b16 %v158
    %v895 = vunpack.c.l.b16 %v159
    %v896 = vunpack.c.l.b16 %v160
    %v897 = vunpack.c.h.b16 %v160
    %v898 = vunpack.c.l.b16 %v161
    %v899 = vunpack.c.l.b16 %v162
    %v900 = vunpack.c.h.b16 %v162
    %v901 = vunpack.c.l.b16 %v163
    %v902 = vunpack.c.l.b16 %v164
    %v903 = vunpack.c.h.b16 %v164
    %v904 = vunpack.c.l.b16 %v165
    %v905 = vunpack.c.l.b16 %v166
    %v906 = vunpack.c.h.b16 %v166
    %v907 = vunpack.c.l.b16 %v167
    %v908 = vunpack.c.l.b16 %v168
    %v909 = vunpack.c.h.b16 %v168
    %v910 = vunpack.c.l.b16 %v169
    %v911 = vunpack.c.l.b16 %v170
    %v912 = vunpack.c.h.b16 %v170
    %v913 = vunpack.c.l.b16 %v171
    %v914 = vunpack.c.l.b16 %v172
    %v915 = vunpack.c.h.b16 %v172
    %v916 = vunpack.c.l.b16 %v173
    %v917 = vunpack.c.l.b16 %v174
    %v918 = vunpack.c.h.b16 %v174
    %v919 = vunpack.c.l.b16 %v175
    %v920 = vunpack.c.l.b16 %v176
    %v921 = vunpack.c.h.b16 %v176
    %v922 = vunpack.c.l.b16 %v177
    %v923 = vunpack.c.l.b16 %v178
    %v924 = vunpack.c.h.b16 %v178
    %v925 = vunpack.c.l.b16 %v179
    %v926 = vunpack.c.l.b16 %v180
    %v927 = vunpack.c.h.b16 %v180
    %v928 = vunpack.c.l.b16 %v181
    %v929 = vunpack.c.l.b16 %v182
    %v930 = vunpack.c.h.b16 %v182
    %v931 = vunpack.c.l.b16 %v183
    %v932 = vunpack.c.l.b16 %v184
    %v933 = vunpack.c.h.b16 %v184
    %v934 = vunpack.c.l.b16 %v185
    %v935 = vunpack.c.l.b16 %v186
    %v936 = vunpack.c.h.b16 %v186
    %v937 = vunpack.c.l.b16 %v187
    %v938 = vunpack.c.l.b16 %v188
    %v939 = vunpack.c.h.b16 %v188
    %v940 = vunpack.c.l.b16 %v189
    %v941 = vunpack.c.l.b16 %v190
    %v942 = vunpack.c.h.b16 %v190
    %v943 = vunpack.c.l.b16 %v191
    %v944 = vpack.c.b16 %v755, %v752
    %v945 = vpack.c.b16 %v756, %v753
    %v946 = vpack.c.b16 %v757, %v754
    %v947 = vpack.c.b16 %v761, %v758
    %v948 = vpack.c.b16 %v762, %v759
    %v949 = vpack.c.b16 %v763, %v760
    %v950 = vpack.c.b16 %v767, %v764
    %v951 = vpack.c.b16 %v768, %v765
    %v952 = vpack.c.b16 %v769, %v766
    %v953 = vpack.c.b16 %v773, %v770
    %v954 = vpack.c.b16 %v774, %v771
    %v955 = vpack.c.b16 %v775, %v772
    %v956 = vpack.c.b16 %v779, %v776
    %v957 = vpack.c.b16 %v780, %v777
    %v958 = vpack.c.b16 %v781, %v778
    %v959 = vpack.c.b16 %v785, %v782
    %v960 = vpack.c.b16 %v786, %v783
    %v961 = vpack.c.b16 %v787, %v784
    %v962 = vpack.c.b16 %v791, %v788
    %v963 = vpack.c.b16 %v792, %v789
    %v964 = vpack.c.b16 %v793, %v790
    %v965 = vpack.c.b16 %v797, %v794
    %v966 = vpack.c.b16 %v798, %v795
    %v967 = vpack.c.b16 %v799, %v796
    %v968 = vpack.c.b16 %v803, %v800
    %v969 = vpack.c.b16 %v804, %v801
    %v970 = vpack.c.b16 %v805, %v802
    %v971 = vpack.c.b16 %v809, %v806
    %v972 = vpack.c.b16 %v810, %v807
    %v973 = vpack.c.b16 %v811, %v808
    %v974 = vpack.c.b16 %v815, %v812
    %v975 = vpack.c.b16 %v816, %v813
    %v976 = vpack.c.b16 %v817, %v814
    %v977 = vpack.c.b16 %v821, %v818
    %v978 = vpack.c.b16 %v822, %v819
    %v979 = vpack.c.b16 %v823, %v820
    %v980 = vpack.c.b16 %v827, %v824
    %v981 = vpack.c.b16 %v828, %v825
    %v982 = vpack.c.b16 %v829, %v826
    %v983 = vpack.c.b16 %v833, %v830
    %v984 = vpack.c.b16 %v834, %v831
    %v985 = vpack.c.b16 %v835, %v832
    %v986 = vpack.c.b16 %v839, %v836
    %v987 = vpack.c.b16 %v840, %v837
    %v988 = vpack.c.b16 %v841, %v838
    %v989 = vpack.c.b16 %v845, %v842
    %v990 = vpack.c.b16 %v846, %v843
    %v991 = vpack.c.b16 %v847, %v844
    %v992 = vpack.c.b16 %v851, %v848
    %v993 = vpack.c.b16 %v852, %v849
    %v994 = vpack.c.b16 %v853, %v850
    %v995 = vpack.c.b16 %v857, %v854
    %v996 = vpack.c.b16 %v858, %v855
    %v997 = vpack.c.b16 %v859, %v856
    %v998 = vpack.c.b16 %v863, %v860
    %v999 = vpack.c.b16 %v864, %v861
    %v1000 = vpack.c.b16 %v865, %v862
    %v1001 = vpack.c.b16 %v869, %v866
    %v1002 = vpack.c.b16 %v870, %v867
    %v1003 = vpack.c.b16 %v871, %v868
    %v1004 = vpack.c.b16 %v875, %v872
    %v1005 = vpack.c.b16 %v876, %v873
    %v1006 = vpack.c.b16 %v877, %v874
    %v1007 = vpack.c.b16 %v881, %v878
    %v1008 = vpack.c.b16 %v882, %v879
    %v1009 = vpack.c.b16 %v883, %v880
    %v1010 = vpack.c.b16 %v887, %v884
    %v1011 = vpack.c.b16 %v888, %v885
    %v1012 = vpack.c.b16 %v889, %v886
    %v1013 = vpack.c.b16 %v893, %v890
    %v1014 = vpack.c.b16 %v894, %v891
    %v1015 = vpack.c.b16 %v895, %v892
    %v1016 = vpack.c.b16 %v899, %v896
    %v1017 = vpack.c.b16 %v900, %v897
    %v1018 = vpack.c.b16 %v901, %v898
    %v1019 = vpack.c.b16 %v905, %v902
    %v1020 = vpack.c.b16 %v906, %v903
    %v1021 = vpack.c.b16 %v907, %v904
    %v1022 = vpack.c.b16 %v911, %v908
    %v1023 = vpack.c.b16 %v912, %v909
    %v1024 = vpack.c.b16 %v913, %v910
    %v1025 = vpack.c.b16 %v917, %v914
    %v1026 = vpack.c.b16 %v918, %v915
    %v1027 = vpack.c.b16 %v919, %v916
    %v1028 = vpack.c.b16 %v923, %v920
    %v1029 = vpack.c.b16 %v924, %v921
    %v1030 = vpack.c.b16 %v925, %v922
    %v1031 = vpack.c.b16 %v929, %v926
    %v1032 = vpack.c.b16 %v930, %v927
    %v1033 = vpack.c.b16 %v931, %v928
    %v1034 = vpack.c.b16 %v935, %v932
    %v1035 = vpack.c.b16 %v936, %v933
    %v1036 = vpack.c.b16 %v937, %v934
    %v1037 = vpack.c.b16 %v941, %v938
    %v1038 = vpack.c.b16 %v942, %v939
    %v1039 = vpack.c.b16 %v943, %v940
    %v1184 = vunpack.c.l.b16 %v192
    %v1185 = vunpack.c.l.b16 %v193
    %v1186 = vunpack.c.l.b16 %v194
    %v1187 = vunpack.c.l.b16 %v195
    %v1188 = vunpack.c.l.b16 %v196
    %v1189 = vunpack.c.l.b16 %v197
    %v1190 = vunpack.c.l.b16 %v198
    %v1191 = vunpack.c.l.b16 %v199
    %v1192 = vunpack.c.l.b16 %v200
    %v1193 = vunpack.c.l.b16 %v201
    %v1194 = vunpack.c.l.b16 %v202
    %v1195 = vunpack.c.l.b16 %v203
    %v1196 = vunpack.c.l.b16 %v204
    %v1197 = vunpack.c.l.b16 %v205
    %v1198 = vunpack.c.l.b16 %v206
    %v1199 = vunpack.c.l.b16 %v207
    %v1200 = vunpack.c.l.b16 %v208
    %v1201 = vunpack.c.l.b16 %v209
    %v1202 = vunpack.c.l.b16 %v210
    %v1203 = vunpack.c.l.b16 %v211
    %v1204 = vunpack.c.l.b16 %v212
    %v1205 = vunpack.c.l.b16 %v213
    %v1206 = vunpack.c.l.b16 %v214
    %v1207 = vunpack.c.l.b16 %v215
    %v1208 = vunpack.c.l.b16 %v216
    %v1209 = vunpack.c.l.b16 %v217
    %v1210 = vunpack.c.l.b16 %v218
    %v1211 = vunpack.c.l.b16 %v219
    %v1212 = vunpack.c.l.b16 %v220
    %v1213 = vunpack.c.l.b16 %v221
    %v1214 = vunpack.c.l.b16 %v222
    %v1215 = vunpack.c.l.b16 %v223
    %v1216 = vunpack.c.l.b16 %v224
    %v1217 = vunpack.c.l.b16 %v225
    %v1218 = vunpack.c.l.b16 %v226
    %v1219 = vunpack.c.l.b16 %v227
    %v1220 = vunpack.c.l.b16 %v228
    %v1221 = vunpack.c.l.b16 %v229
    %v1222 = vunpack.c.l.b16 %v230
    %v1223 = vunpack.c.l.b16 %v231
    %v1224 = vunpack.c.l.b16 %v232
    %v1225 = vunpack.c.l.b16 %v233
    %v1226 = vunpack.c.l.b16 %v234
    %v1227 = vunpack.c.l.b16 %v235
    %v1228 = vunpack.c.l.b16 %v236
    %v1229 = vunpack.c.l.b16 %v237
    %v1230 = vunpack.c.l.b16 %v238
    %v1231 = vunpack.c.l.b16 %v239
    %v1232 = vpack.c.b16 %v1185, %v1184
    %v1233 = vpack.c.b16 %v1187, %v1186
    %v1234 = vpack.c.b16 %v1189, %v1188
    %v1235 = vpack.c.b16 %v1191, %v1190
    %v1236 = vpack.c.b16 %v1193, %v1192
    %v1237 = vpack.c.b16 %v1195, %v1194
    %v1238 = vpack.c.b16 %v1197, %v1196
    %v1239 = vpack.c.b16 %v1199, %v1198
    %v1240 = vpack.c.b16 %v1201, %v1200
    %v1241 = vpack.c.b16 %v1203, %v1202
    %v1242 = vpack.c.b16 %v1205, %v1204
    %v1243 = vpack.c.b16 %v1207, %v1206
    %v1244 = vpack.c.b16 %v1209, %v1208
    %v1245 = vpack.c.b16 %v1211, %v1210
    %v1246 = vpack.c.b16 %v1213, %v1212
    %v1247 = vpack.c.b16 %v1215, %v1214
    %v1248 = vpack.c.b16 %v1217, %v1216
    %v1249 = vpack.c.b16 %v1219, %v1218
    %v1250 = vpack.c.b16 %v1221, %v1220
    %v1251 = vpack.c.b16 %v1223, %v1222
    %v1252 = vpack.c.b16 %v1225, %v1224
    %v1253 = vpack.c.b16 %v1227, %v1226
    %v1254 = vpack.c.b16 %v1229, %v1228
    %v1255 = vpack.c.b16 %v1231, %v1230
    %1280 = vmatprep.subr.bf16.mxu0 0
    %1281 = vmatpush1.bf16.msra.mxu0 %v1239
    %1282 = vmatprep.subr.bf16.mxu0 0
    %1283 = vmatpush1.bf16.msra.mxu0 %v1238
    %1284 = vmatprep.subr.bf16.mxu0 0
    %1285 = vmatpush1.bf16.msra.mxu0 %v1237
    %1286 = vmatprep.subr.bf16.mxu0 0
    %1287 = vmatpush1.bf16.msra.mxu0 %v1236
    %1288 = vmatprep.subr.bf16.mxu0 0
    %1289 = vmatpush1.bf16.msra.mxu0 %v1235
    %1290 = vmatprep.subr.bf16.mxu0 0
    %1291 = vmatpush1.bf16.msra.mxu0 %v1234
    %1292 = vmatprep.subr.bf16.mxu0 0
    %1293 = vmatpush1.bf16.msra.mxu0 %v1233
    %1294 = vmatprep.subr.bf16.mxu0 0
    %1295 = vmatpush1.bf16.msra.mxu0 %v1232
    %1296 = vmatprep.subr.bf16.mxu0 0
    %1297 = vmatpush2.bf16.msra.mxu0 %v1247
    %1298 = vmatprep.subr.bf16.mxu0 0
    %1299 = vmatpush2.bf16.msra.mxu0 %v1246
    %1300 = vmatprep.subr.bf16.mxu0 0
    %1301 = vmatpush2.bf16.msra.mxu0 %v1245
    %1302 = vmatprep.subr.bf16.mxu0 0
    %1303 = vmatpush2.bf16.msra.mxu0 %v1244
    %1304 = vmatprep.subr.bf16.mxu0 0
    %1305 = vmatpush2.bf16.msra.mxu0 %v1243
    %1306 = vmatprep.subr.bf16.mxu0 0
    %1307 = vmatpush2.bf16.msra.mxu0 %v1242
    %1308 = vmatprep.subr.bf16.mxu0 0
    %1309 = vmatpush2.bf16.msra.mxu0 %v1241
    %1310 = vmatprep.subr.bf16.mxu0 0
    %1311 = vmatpush2.bf16.msra.mxu0 %v1240
    %1312 = vmatprep.mubr.bf16.mxu0 %v945
    %1313 = vmatmul.mubr.bf16.gmra.mxu0 %v944
    %v1314 = vpop.f32.mrf.mxu0
    %v1315 = vadd.f32 %v307, %v1314
    %v1316 = vpop.f32.mrf.mxu0
    %v1317 = vpop.f32.mrf.mxu0
    %v1318 = vadd.f32 %v312, %v1317
    %v1319 = vpop.f32.mrf.mxu0
    %1320 = vmatprep.mubr.bf16.mxu0 %v948
    %1321 = vmatmul.mubr.bf16.gmra.mxu0 %v947
    %v1322 = vpop.f32.mrf.mxu0
    %v1323 = vadd.f32 %v317, %v1322
    %v1324 = vpop.f32.mrf.mxu0
    %v1325 = vpop.f32.mrf.mxu0
    %v1326 = vadd.f32 %v322, %v1325
    %v1327 = vpop.f32.mrf.mxu0
    %1328 = vmatprep.mubr.bf16.mxu0 %v951
    %1329 = vmatmul.mubr.bf16.gmra.mxu0 %v950
    %v1330 = vpop.f32.mrf.mxu0
    %v1331 = vadd.f32 %v327, %v1330
    %v1332 = vpop.f32.mrf.mxu0
    %v1333 = vpop.f32.mrf.mxu0
    %v1334 = vadd.f32 %v332, %v1333
    %v1335 = vpop.f32.mrf.mxu0
    %1336 = vmatprep.mubr.bf16.mxu0 %v954
    %1337 = vmatmul.mubr.bf16.gmra.mxu0 %v953
    %v1338 = vpop.f32.mrf.mxu0
    %v1339 = vadd.f32 %v337, %v1338
    %v1340 = vpop.f32.mrf.mxu0
    %v1341 = vpop.f32.mrf.mxu0
    %v1342 = vadd.f32 %v342, %v1341
    %v1343 = vpop.f32.mrf.mxu0
    %1344 = vmatprep.mubr.bf16.mxu0 %v957
    %1345 = vmatmul.mubr.bf16.gmra.mxu0 %v956
    %v1346 = vpop.f32.mrf.mxu0
    %v1347 = vadd.f32 %v347, %v1346
    %v1348 = vpop.f32.mrf.mxu0
    %v1349 = vpop.f32.mrf.mxu0
    %v1350 = vadd.f32 %v352, %v1349
    %v1351 = vpop.f32.mrf.mxu0
    %1352 = vmatprep.mubr.bf16.mxu0 %v960
    %1353 = vmatmul.mubr.bf16.gmra.mxu0 %v959
    %v1354 = vpop.f32.mrf.mxu0
    %v1355 = vadd.f32 %v357, %v1354
    %v1356 = vpop.f32.mrf.mxu0
    %v1357 = vpop.f32.mrf.mxu0
    %v1358 = vadd.f32 %v362, %v1357
    %v1359 = vpop.f32.mrf.mxu0
    %1360 = vmatprep.mubr.bf16.mxu0 %v963
    %1361 = vmatmul.mubr.bf16.gmra.mxu0 %v962
    %v1362 = vpop.f32.mrf.mxu0
    %v1363 = vadd.f32 %v367, %v1362
    %v1364 = vpop.f32.mrf.mxu0
    %v1365 = vpop.f32.mrf.mxu0
    %v1366 = vadd.f32 %v372, %v1365
    %v1367 = vpop.f32.mrf.mxu0
    %1368 = vmatprep.mubr.bf16.mxu0 %v966
    %1369 = vmatmul.mubr.bf16.gmra.mxu0 %v965
    %v1370 = vpop.f32.mrf.mxu0
    %v1371 = vadd.f32 %v377, %v1370
    %v1372 = vpop.f32.mrf.mxu0
    %v1373 = vpop.f32.mrf.mxu0
    %v1374 = vadd.f32 %v382, %v1373
    %v1375 = vpop.f32.mrf.mxu0
    %1376 = vmatprep.mubr.bf16.mxu0 %v969
    %1377 = vmatmul.mubr.bf16.gmra.mxu0 %v968
    %v1378 = vpop.f32.mrf.mxu0
    %v1379 = vadd.f32 %v387, %v1378
    %v1380 = vpop.f32.mrf.mxu0
    %v1381 = vpop.f32.mrf.mxu0
    %v1382 = vadd.f32 %v392, %v1381
    %v1383 = vpop.f32.mrf.mxu0
    %1384 = vmatprep.mubr.bf16.mxu0 %v972
    %1385 = vmatmul.mubr.bf16.gmra.mxu0 %v971
    %v1386 = vpop.f32.mrf.mxu0
    %v1387 = vadd.f32 %v397, %v1386
    %v1388 = vpop.f32.mrf.mxu0
    %v1389 = vpop.f32.mrf.mxu0
    %v1390 = vadd.f32 %v402, %v1389
    %v1391 = vpop.f32.mrf.mxu0
    %1392 = vmatprep.mubr.bf16.mxu0 %v975
    %1393 = vmatmul.mubr.bf16.gmra.mxu0 %v974
    %v1394 = vpop.f32.mrf.mxu0
    %v1395 = vadd.f32 %v407, %v1394
    %v1396 = vpop.f32.mrf.mxu0
    %v1397 = vpop.f32.mrf.mxu0
    %v1398 = vadd.f32 %v412, %v1397
    %v1399 = vpop.f32.mrf.mxu0
    %1400 = vmatprep.mubr.bf16.mxu0 %v978
    %1401 = vmatmul.mubr.bf16.gmra.mxu0 %v977
    %v1402 = vpop.f32.mrf.mxu0
    %v1403 = vadd.f32 %v417, %v1402
    %v1404 = vpop.f32.mrf.mxu0
    %v1405 = vpop.f32.mrf.mxu0
    %v1406 = vadd.f32 %v422, %v1405
    %v1407 = vpop.f32.mrf.mxu0
    %1408 = vmatprep.mubr.bf16.mxu0 %v981
    %1409 = vmatmul.mubr.bf16.gmra.mxu0 %v980
    %v1410 = vpop.f32.mrf.mxu0
    %v1411 = vadd.f32 %v427, %v1410
    %v1412 = vpop.f32.mrf.mxu0
    %v1413 = vpop.f32.mrf.mxu0
    %v1414 = vadd.f32 %v432, %v1413
    %v1415 = vpop.f32.mrf.mxu0
    %1416 = vmatprep.mubr.bf16.mxu0 %v984
    %1417 = vmatmul.mubr.bf16.gmra.mxu0 %v983
    %v1418 = vpop.f32.mrf.mxu0
    %v1419 = vadd.f32 %v437, %v1418
    %v1420 = vpop.f32.mrf.mxu0
    %v1421 = vpop.f32.mrf.mxu0
    %v1422 = vadd.f32 %v442, %v1421
    %v1423 = vpop.f32.mrf.mxu0
    %1424 = vmatprep.mubr.bf16.mxu0 %v987
    %1425 = vmatmul.mubr.bf16.gmra.mxu0 %v986
    %v1426 = vpop.f32.mrf.mxu0
    %v1427 = vadd.f32 %v447, %v1426
    %v1428 = vpop.f32.mrf.mxu0
    %v1429 = vpop.f32.mrf.mxu0
    %v1430 = vadd.f32 %v452, %v1429
    %v1431 = vpop.f32.mrf.mxu0
    %1432 = vmatprep.mubr.bf16.mxu0 %v990
    %1433 = vmatmul.mubr.bf16.gmra.mxu0 %v989
    %v1434 = vpop.f32.mrf.mxu0
    %v1435 = vadd.f32 %v457, %v1434
    %v1436 = vpop.f32.mrf.mxu0
    %v1437 = vpop.f32.mrf.mxu0
    %v1438 = vadd.f32 %v462, %v1437
    %v1439 = vpop.f32.mrf.mxu0
    %1440 = vmatprep.mubr.bf16.mxu0 %v993
    %1441 = vmatmul.mubr.bf16.gmra.mxu0 %v992
    %v1442 = vpop.f32.mrf.mxu0
    %v1443 = vadd.f32 %v467, %v1442
    %v1444 = vpop.f32.mrf.mxu0
    %v1445 = vpop.f32.mrf.mxu0
    %v1446 = vadd.f32 %v472, %v1445
    %v1447 = vpop.f32.mrf.mxu0
    %1448 = vmatprep.mubr.bf16.mxu0 %v996
    %1449 = vmatmul.mubr.bf16.gmra.mxu0 %v995
    %v1450 = vpop.f32.mrf.mxu0
    %v1451 = vadd.f32 %v477, %v1450
    %v1452 = vpop.f32.mrf.mxu0
    %v1453 = vpop.f32.mrf.mxu0
    %v1454 = vadd.f32 %v482, %v1453
    %v1455 = vpop.f32.mrf.mxu0
    %1456 = vmatprep.mubr.bf16.mxu0 %v999
    %1457 = vmatmul.mubr.bf16.gmra.mxu0 %v998
    %v1458 = vpop.f32.mrf.mxu0
    %v1459 = vadd.f32 %v487, %v1458
    %v1460 = vpop.f32.mrf.mxu0
    %v1461 = vpop.f32.mrf.mxu0
    %v1462 = vadd.f32 %v492, %v1461
    %v1463 = vpop.f32.mrf.mxu0
    %1464 = vmatprep.mubr.bf16.mxu0 %v1002
    %1465 = vmatmul.mubr.bf16.gmra.mxu0 %v1001
    %v1466 = vpop.f32.mrf.mxu0
    %v1467 = vadd.f32 %v497, %v1466
    %v1468 = vpop.f32.mrf.mxu0
    %v1469 = vpop.f32.mrf.mxu0
    %v1470 = vadd.f32 %v502, %v1469
    %v1471 = vpop.f32.mrf.mxu0
    %1472 = vmatprep.mubr.bf16.mxu0 %v1005
    %1473 = vmatmul.mubr.bf16.gmra.mxu0 %v1004
    %v1474 = vpop.f32.mrf.mxu0
    %v1475 = vadd.f32 %v507, %v1474
    %v1476 = vpop.f32.mrf.mxu0
    %v1477 = vpop.f32.mrf.mxu0
    %v1478 = vadd.f32 %v512, %v1477
    %v1479 = vpop.f32.mrf.mxu0
    %1480 = vmatprep.mubr.bf16.mxu0 %v1008
    %1481 = vmatmul.mubr.bf16.gmra.mxu0 %v1007
    %v1482 = vpop.f32.mrf.mxu0
    %v1483 = vadd.f32 %v517, %v1482
    %v1484 = vpop.f32.mrf.mxu0
    %v1485 = vpop.f32.mrf.mxu0
    %v1486 = vadd.f32 %v522, %v1485
    %v1487 = vpop.f32.mrf.mxu0
    %1488 = vmatprep.mubr.bf16.mxu0 %v1011
    %1489 = vmatmul.mubr.bf16.gmra.mxu0 %v1010
    %v1490 = vpop.f32.mrf.mxu0
    %v1491 = vadd.f32 %v527, %v1490
    %v1492 = vpop.f32.mrf.mxu0
    %v1493 = vpop.f32.mrf.mxu0
    %v1494 = vadd.f32 %v532, %v1493
    %v1495 = vpop.f32.mrf.mxu0
    %1496 = vmatprep.mubr.bf16.mxu0 %v1014
    %1497 = vmatmul.mubr.bf16.gmra.mxu0 %v1013
    %v1498 = vpop.f32.mrf.mxu0
    %v1499 = vadd.f32 %v537, %v1498
    %v1500 = vpop.f32.mrf.mxu0
    %v1501 = vpop.f32.mrf.mxu0
    %v1502 = vadd.f32 %v542, %v1501
    %v1503 = vpop.f32.mrf.mxu0
    %1504 = vmatprep.mubr.bf16.mxu0 %v1017
    %1505 = vmatmul.mubr.bf16.gmra.mxu0 %v1016
    %v1506 = vpop.f32.mrf.mxu0
    %v1507 = vadd.f32 %v547, %v1506
    %v1508 = vpop.f32.mrf.mxu0
    %v1509 = vpop.f32.mrf.mxu0
    %v1510 = vadd.f32 %v552, %v1509
    %v1511 = vpop.f32.mrf.mxu0
    %1512 = vmatprep.mubr.bf16.mxu0 %v1020
    %1513 = vmatmul.mubr.bf16.gmra.mxu0 %v1019
    %v1514 = vpop.f32.mrf.mxu0
    %v1515 = vadd.f32 %v557, %v1514
    %v1516 = vpop.f32.mrf.mxu0
    %v1517 = vpop.f32.mrf.mxu0
    %v1518 = vadd.f32 %v562, %v1517
    %v1519 = vpop.f32.mrf.mxu0
    %1520 = vmatprep.mubr.bf16.mxu0 %v1023
    %1521 = vmatmul.mubr.bf16.gmra.mxu0 %v1022
    %v1522 = vpop.f32.mrf.mxu0
    %v1523 = vadd.f32 %v567, %v1522
    %v1524 = vpop.f32.mrf.mxu0
    %v1525 = vpop.f32.mrf.mxu0
    %v1526 = vadd.f32 %v572, %v1525
    %v1527 = vpop.f32.mrf.mxu0
    %1528 = vmatprep.mubr.bf16.mxu0 %v1026
    %1529 = vmatmul.mubr.bf16.gmra.mxu0 %v1025
    %v1530 = vpop.f32.mrf.mxu0
    %v1531 = vadd.f32 %v577, %v1530
    %v1532 = vpop.f32.mrf.mxu0
    %v1533 = vpop.f32.mrf.mxu0
    %v1534 = vadd.f32 %v582, %v1533
    %v1535 = vpop.f32.mrf.mxu0
    %1536 = vmatprep.mubr.bf16.mxu0 %v1029
    %1537 = vmatmul.mubr.bf16.gmra.mxu0 %v1028
    %v1538 = vpop.f32.mrf.mxu0
    %v1539 = vadd.f32 %v587, %v1538
    %v1540 = vpop.f32.mrf.mxu0
    %v1541 = vpop.f32.mrf.mxu0
    %v1542 = vadd.f32 %v592, %v1541
    %v1543 = vpop.f32.mrf.mxu0
    %1544 = vmatprep.mubr.bf16.mxu0 %v1032
    %1545 = vmatmul.mubr.bf16.gmra.mxu0 %v1031
    %v1546 = vpop.f32.mrf.mxu0
    %v1547 = vadd.f32 %v597, %v1546
    %v1548 = vpop.f32.mrf.mxu0
    %v1549 = vpop.f32.mrf.mxu0
    %v1550 = vadd.f32 %v602, %v1549
    %v1551 = vpop.f32.mrf.mxu0
    %1552 = vmatprep.mubr.bf16.mxu0 %v1035
    %1553 = vmatmul.mubr.bf16.gmra.mxu0 %v1034
    %v1554 = vpop.f32.mrf.mxu0
    %v1555 = vadd.f32 %v607, %v1554
    %v1556 = vpop.f32.mrf.mxu0
    %v1557 = vpop.f32.mrf.mxu0
    %v1558 = vadd.f32 %v612, %v1557
    %v1559 = vpop.f32.mrf.mxu0
    %1560 = vmatprep.mubr.bf16.mxu0 %v1038
    %1561 = vmatmul.mubr.bf16.gmra.mxu0 %v1037
    %v1562 = vpop.f32.mrf.mxu0
    %v1563 = vadd.f32 %v617, %v1562
    %v1564 = vpop.f32.mrf.mxu0
    %v1565 = vpop.f32.mrf.mxu0
    %v1566 = vadd.f32 %v622, %v1565
    %v1567 = vpop.f32.mrf.mxu0
    %1568 = vdwg.mxu0
    %1569 = vmatprep.subr.bf16.mxu0 0
    %1570 = vmatpush1.bf16.msra.mxu0 %v1255
    %1571 = vmatprep.subr.bf16.mxu0 0
    %1572 = vmatpush1.bf16.msra.mxu0 %v1254
    %1573 = vmatprep.subr.bf16.mxu0 0
    %1574 = vmatpush1.bf16.msra.mxu0 %v1253
    %1575 = vmatprep.subr.bf16.mxu0 0
    %1576 = vmatpush1.bf16.msra.mxu0 %v1252
    %1577 = vmatprep.subr.bf16.mxu0 0
    %1578 = vmatpush1.bf16.msra.mxu0 %v1251
    %1579 = vmatprep.subr.bf16.mxu0 0
    %1580 = vmatpush1.bf16.msra.mxu0 %v1250
    %1581 = vmatprep.subr.bf16.mxu0 0
    %1582 = vmatpush1.bf16.msra.mxu0 %v1249
    %1583 = vmatprep.subr.bf16.mxu0 0
    %1584 = vmatpush1.bf16.msra.mxu0 %v1248
    %1585 = vmatprep.subr.bf16.mxu0 0
    %1586 = vmatpush2.bf16.msra.mxu0 0
    %1587 = vmatprep.subr.bf16.mxu0 0
    %1588 = vmatpush2.bf16.msra.mxu0 0
    %1589 = vmatprep.subr.bf16.mxu0 0
    %1590 = vmatpush2.bf16.msra.mxu0 0
    %1591 = vmatprep.subr.bf16.mxu0 0
    %1592 = vmatpush2.bf16.msra.mxu0 0
    %1593 = vmatprep.subr.bf16.mxu0 0
    %1594 = vmatpush2.bf16.msra.mxu0 0
    %1595 = vmatprep.subr.bf16.mxu0 0
    %1596 = vmatpush2.bf16.msra.mxu0 0
    %1597 = vmatprep.subr.bf16.mxu0 0
    %1598 = vmatpush2.bf16.msra.mxu0 0
    %1599 = vmatprep.subr.bf16.mxu0 0
    %1600 = vmatpush2.bf16.msra.mxu0 0
    %1601 = vmatprep.mubr.bf16.mxu0 0
    %1602 = vmatmul.mubr.bf16.gmra.mxu0 %v946
    %v1603 = vpop.f32.mrf.mxu0
    %v1604 = vadd.f32 %v1315, %v1603
    %v1605 = vpop.f32.mrf.mxu0
    %v1606 = vpop.f32.mrf.mxu0
    %v1607 = vadd.f32 %v1318, %v1606
    %v1608 = vpop.f32.mrf.mxu0
    %1609 = vmatprep.mubr.bf16.mxu0 0
    %1610 = vmatmul.mubr.bf16.gmra.mxu0 %v949
    %v1611 = vpop.f32.mrf.mxu0
    %v1612 = vadd.f32 %v1323, %v1611
    %v1613 = vpop.f32.mrf.mxu0
    %v1614 = vpop.f32.mrf.mxu0
    %v1615 = vadd.f32 %v1326, %v1614
    %v1616 = vpop.f32.mrf.mxu0
    %1617 = vmatprep.mubr.bf16.mxu0 0
    %1618 = vmatmul.mubr.bf16.gmra.mxu0 %v952
    %v1619 = vpop.f32.mrf.mxu0
    %v1620 = vadd.f32 %v1331, %v1619
    %v1621 = vpop.f32.mrf.mxu0
    %v1622 = vpop.f32.mrf.mxu0
    %v1623 = vadd.f32 %v1334, %v1622
    %v1624 = vpop.f32.mrf.mxu0
    %1625 = vmatprep.mubr.bf16.mxu0 0
    %1626 = vmatmul.mubr.bf16.gmra.mxu0 %v955
    %v1627 = vpop.f32.mrf.mxu0
    %v1628 = vadd.f32 %v1339, %v1627
    %v1629 = vpop.f32.mrf.mxu0
    %v1630 = vpop.f32.mrf.mxu0
    %v1631 = vadd.f32 %v1342, %v1630
    %v1632 = vpop.f32.mrf.mxu0
    %1633 = vmatprep.mubr.bf16.mxu0 0
    %1634 = vmatmul.mubr.bf16.gmra.mxu0 %v958
    %v1635 = vpop.f32.mrf.mxu0
    %v1636 = vadd.f32 %v1347, %v1635
    %v1637 = vpop.f32.mrf.mxu0
    %v1638 = vpop.f32.mrf.mxu0
    %v1639 = vadd.f32 %v1350, %v1638
    %v1640 = vpop.f32.mrf.mxu0
    %1641 = vmatprep.mubr.bf16.mxu0 0
    %1642 = vmatmul.mubr.bf16.gmra.mxu0 %v961
    %v1643 = vpop.f32.mrf.mxu0
    %v1644 = vadd.f32 %v1355, %v1643
    %v1645 = vpop.f32.mrf.mxu0
    %v1646 = vpop.f32.mrf.mxu0
    %v1647 = vadd.f32 %v1358, %v1646
    %v1648 = vpop.f32.mrf.mxu0
    %1649 = vmatprep.mubr.bf16.mxu0 0
    %1650 = vmatmul.mubr.bf16.gmra.mxu0 %v964
    %v1651 = vpop.f32.mrf.mxu0
    %v1652 = vadd.f32 %v1363, %v1651
    %v1653 = vpop.f32.mrf.mxu0
    %v1654 = vpop.f32.mrf.mxu0
    %v1655 = vadd.f32 %v1366, %v1654
    %v1656 = vpop.f32.mrf.mxu0
    %1657 = vmatprep.mubr.bf16.mxu0 0
    %1658 = vmatmul.mubr.bf16.gmra.mxu0 %v967
    %v1659 = vpop.f32.mrf.mxu0
    %v1660 = vadd.f32 %v1371, %v1659
    %v1661 = vpop.f32.mrf.mxu0
    %v1662 = vpop.f32.mrf.mxu0
    %v1663 = vadd.f32 %v1374, %v1662
    %v1664 = vpop.f32.mrf.mxu0
    %1665 = vmatprep.mubr.bf16.mxu0 0
    %1666 = vmatmul.mubr.bf16.gmra.mxu0 %v970
    %v1667 = vpop.f32.mrf.mxu0
    %v1668 = vadd.f32 %v1379, %v1667
    %v1669 = vpop.f32.mrf.mxu0
    %v1670 = vpop.f32.mrf.mxu0
    %v1671 = vadd.f32 %v1382, %v1670
    %v1672 = vpop.f32.mrf.mxu0
    %1673 = vmatprep.mubr.bf16.mxu0 0
    %1674 = vmatmul.mubr.bf16.gmra.mxu0 %v973
    %v1675 = vpop.f32.mrf.mxu0
    %v1676 = vadd.f32 %v1387, %v1675
    %v1677 = vpop.f32.mrf.mxu0
    %v1678 = vpop.f32.mrf.mxu0
    %v1679 = vadd.f32 %v1390, %v1678
    %v1680 = vpop.f32.mrf.mxu0
    %1681 = vmatprep.mubr.bf16.mxu0 0
    %1682 = vmatmul.mubr.bf16.gmra.mxu0 %v976
    %v1683 = vpop.f32.mrf.mxu0
    %v1684 = vadd.f32 %v1395, %v1683
    %v1685 = vpop.f32.mrf.mxu0
    %v1686 = vpop.f32.mrf.mxu0
    %v1687 = vadd.f32 %v1398, %v1686
    %v1688 = vpop.f32.mrf.mxu0
    %1689 = vmatprep.mubr.bf16.mxu0 0
    %1690 = vmatmul.mubr.bf16.gmra.mxu0 %v979
    %v1691 = vpop.f32.mrf.mxu0
    %v1692 = vadd.f32 %v1403, %v1691
    %v1693 = vpop.f32.mrf.mxu0
    %v1694 = vpop.f32.mrf.mxu0
    %v1695 = vadd.f32 %v1406, %v1694
    %v1696 = vpop.f32.mrf.mxu0
    %1697 = vmatprep.mubr.bf16.mxu0 0
    %1698 = vmatmul.mubr.bf16.gmra.mxu0 %v982
    %v1699 = vpop.f32.mrf.mxu0
    %v1700 = vadd.f32 %v1411, %v1699
    %v1701 = vpop.f32.mrf.mxu0
    %v1702 = vpop.f32.mrf.mxu0
    %v1703 = vadd.f32 %v1414, %v1702
    %v1704 = vpop.f32.mrf.mxu0
    %1705 = vmatprep.mubr.bf16.mxu0 0
    %1706 = vmatmul.mubr.bf16.gmra.mxu0 %v985
    %v1707 = vpop.f32.mrf.mxu0
    %v1708 = vadd.f32 %v1419, %v1707
    %v1709 = vpop.f32.mrf.mxu0
    %v1710 = vpop.f32.mrf.mxu0
    %v1711 = vadd.f32 %v1422, %v1710
    %v1712 = vpop.f32.mrf.mxu0
    %1713 = vmatprep.mubr.bf16.mxu0 0
    %1714 = vmatmul.mubr.bf16.gmra.mxu0 %v988
    %v1715 = vpop.f32.mrf.mxu0
    %v1716 = vadd.f32 %v1427, %v1715
    %v1717 = vpop.f32.mrf.mxu0
    %v1718 = vpop.f32.mrf.mxu0
    %v1719 = vadd.f32 %v1430, %v1718
    %v1720 = vpop.f32.mrf.mxu0
    %1721 = vmatprep.mubr.bf16.mxu0 0
    %1722 = vmatmul.mubr.bf16.gmra.mxu0 %v991
    %v1723 = vpop.f32.mrf.mxu0
    %v1724 = vadd.f32 %v1435, %v1723
    %v1725 = vpop.f32.mrf.mxu0
    %v1726 = vpop.f32.mrf.mxu0
    %v1727 = vadd.f32 %v1438, %v1726
    %v1728 = vpop.f32.mrf.mxu0
    %1729 = vmatprep.mubr.bf16.mxu0 0
    %1730 = vmatmul.mubr.bf16.gmra.mxu0 %v994
    %v1731 = vpop.f32.mrf.mxu0
    %v1732 = vadd.f32 %v1443, %v1731
    %v1733 = vpop.f32.mrf.mxu0
    %v1734 = vpop.f32.mrf.mxu0
    %v1735 = vadd.f32 %v1446, %v1734
    %v1736 = vpop.f32.mrf.mxu0
    %1737 = vmatprep.mubr.bf16.mxu0 0
    %1738 = vmatmul.mubr.bf16.gmra.mxu0 %v997
    %v1739 = vpop.f32.mrf.mxu0
    %v1740 = vadd.f32 %v1451, %v1739
    %v1741 = vpop.f32.mrf.mxu0
    %v1742 = vpop.f32.mrf.mxu0
    %v1743 = vadd.f32 %v1454, %v1742
    %v1744 = vpop.f32.mrf.mxu0
    %1745 = vmatprep.mubr.bf16.mxu0 0
    %1746 = vmatmul.mubr.bf16.gmra.mxu0 %v1000
    %v1747 = vpop.f32.mrf.mxu0
    %v1748 = vadd.f32 %v1459, %v1747
    %v1749 = vpop.f32.mrf.mxu0
    %v1750 = vpop.f32.mrf.mxu0
    %v1751 = vadd.f32 %v1462, %v1750
    %v1752 = vpop.f32.mrf.mxu0
    %1753 = vmatprep.mubr.bf16.mxu0 0
    %1754 = vmatmul.mubr.bf16.gmra.mxu0 %v1003
    %v1755 = vpop.f32.mrf.mxu0
    %v1756 = vadd.f32 %v1467, %v1755
    %v1757 = vpop.f32.mrf.mxu0
    %v1758 = vpop.f32.mrf.mxu0
    %v1759 = vadd.f32 %v1470, %v1758
    %v1760 = vpop.f32.mrf.mxu0
    %1761 = vmatprep.mubr.bf16.mxu0 0
    %1762 = vmatmul.mubr.bf16.gmra.mxu0 %v1006
    %v1763 = vpop.f32.mrf.mxu0
    %v1764 = vadd.f32 %v1475, %v1763
    %v1765 = vpop.f32.mrf.mxu0
    %v1766 = vpop.f32.mrf.mxu0
    %v1767 = vadd.f32 %v1478, %v1766
    %v1768 = vpop.f32.mrf.mxu0
    %1769 = vmatprep.mubr.bf16.mxu0 0
    %1770 = vmatmul.mubr.bf16.gmra.mxu0 %v1009
    %v1771 = vpop.f32.mrf.mxu0
    %v1772 = vadd.f32 %v1483, %v1771
    %v1773 = vpop.f32.mrf.mxu0
    %v1774 = vpop.f32.mrf.mxu0
    %v1775 = vadd.f32 %v1486, %v1774
    %v1776 = vpop.f32.mrf.mxu0
    %1777 = vmatprep.mubr.bf16.mxu0 0
    %1778 = vmatmul.mubr.bf16.gmra.mxu0 %v1012
    %v1779 = vpop.f32.mrf.mxu0
    %v1780 = vadd.f32 %v1491, %v1779
    %v1781 = vpop.f32.mrf.mxu0
    %v1782 = vpop.f32.mrf.mxu0
    %v1783 = vadd.f32 %v1494, %v1782
    %v1784 = vpop.f32.mrf.mxu0
    %1785 = vmatprep.mubr.bf16.mxu0 0
    %1786 = vmatmul.mubr.bf16.gmra.mxu0 %v1015
    %v1787 = vpop.f32.mrf.mxu0
    %v1788 = vadd.f32 %v1499, %v1787
    %v1789 = vpop.f32.mrf.mxu0
    %v1790 = vpop.f32.mrf.mxu0
    %v1791 = vadd.f32 %v1502, %v1790
    %v1792 = vpop.f32.mrf.mxu0
    %1793 = vmatprep.mubr.bf16.mxu0 0
    %1794 = vmatmul.mubr.bf16.gmra.mxu0 %v1018
    %v1795 = vpop.f32.mrf.mxu0
    %v1796 = vadd.f32 %v1507, %v1795
    %v1797 = vpop.f32.mrf.mxu0
    %v1798 = vpop.f32.mrf.mxu0
    %v1799 = vadd.f32 %v1510, %v1798
    %v1800 = vpop.f32.mrf.mxu0
    %1801 = vmatprep.mubr.bf16.mxu0 0
    %1802 = vmatmul.mubr.bf16.gmra.mxu0 %v1021
    %v1803 = vpop.f32.mrf.mxu0
    %v1804 = vadd.f32 %v1515, %v1803
    %v1805 = vpop.f32.mrf.mxu0
    %v1806 = vpop.f32.mrf.mxu0
    %v1807 = vadd.f32 %v1518, %v1806
    %v1808 = vpop.f32.mrf.mxu0
    %1809 = vmatprep.mubr.bf16.mxu0 0
    %1810 = vmatmul.mubr.bf16.gmra.mxu0 %v1024
    %v1811 = vpop.f32.mrf.mxu0
    %v1812 = vadd.f32 %v1523, %v1811
    %v1813 = vpop.f32.mrf.mxu0
    %v1814 = vpop.f32.mrf.mxu0
    %v1815 = vadd.f32 %v1526, %v1814
    %v1816 = vpop.f32.mrf.mxu0
    %1817 = vmatprep.mubr.bf16.mxu0 0
    %1818 = vmatmul.mubr.bf16.gmra.mxu0 %v1027
    %v1819 = vpop.f32.mrf.mxu0
    %v1820 = vadd.f32 %v1531, %v1819
    %v1821 = vpop.f32.mrf.mxu0
    %v1822 = vpop.f32.mrf.mxu0
    %v1823 = vadd.f32 %v1534, %v1822
    %v1824 = vpop.f32.mrf.mxu0
    %1825 = vmatprep.mubr.bf16.mxu0 0
    %1826 = vmatmul.mubr.bf16.gmra.mxu0 %v1030
    %v1827 = vpop.f32.mrf.mxu0
    %v1828 = vadd.f32 %v1539, %v1827
    %v1829 = vpop.f32.mrf.mxu0
    %v1830 = vpop.f32.mrf.mxu0
    %v1831 = vadd.f32 %v1542, %v1830
    %v1832 = vpop.f32.mrf.mxu0
    %1833 = vmatprep.mubr.bf16.mxu0 0
    %1834 = vmatmul.mubr.bf16.gmra.mxu0 %v1033
    %v1835 = vpop.f32.mrf.mxu0
    %v1836 = vadd.f32 %v1547, %v1835
    %v1837 = vpop.f32.mrf.mxu0
    %v1838 = vpop.f32.mrf.mxu0
    %v1839 = vadd.f32 %v1550, %v1838
    %v1840 = vpop.f32.mrf.mxu0
    %1841 = vmatprep.mubr.bf16.mxu0 0
    %1842 = vmatmul.mubr.bf16.gmra.mxu0 %v1036
    %v1843 = vpop.f32.mrf.mxu0
    %v1844 = vadd.f32 %v1555, %v1843
    %v1845 = vpop.f32.mrf.mxu0
    %v1846 = vpop.f32.mrf.mxu0
    %v1847 = vadd.f32 %v1558, %v1846
    %v1848 = vpop.f32.mrf.mxu0
    %1849 = vmatprep.mubr.bf16.mxu0 0
    %1850 = vmatmul.mubr.bf16.gmra.mxu0 %v1039
    %v1851 = vpop.f32.mrf.mxu0
    %v1852 = vadd.f32 %v1563, %v1851
    %v1853 = vpop.f32.mrf.mxu0
    %v1854 = vpop.f32.mrf.mxu0
    %v1855 = vadd.f32 %v1566, %v1854
    %v1856 = vpop.f32.mrf.mxu0
    %1857 = vdwg.mxu0
    %vm1858 = vcmp.ge.f32.partialorder %v1604, 0.0
    %vm1859 = vcmp.ge.f32.partialorder %v1607, 0.0
    %vm1860 = vcmp.ge.f32.partialorder %v1612, 0.0
    %vm1861 = vcmp.ge.f32.partialorder %v1615, 0.0
    %vm1862 = vcmp.ge.f32.partialorder %v1620, 0.0
    %vm1863 = vcmp.ge.f32.partialorder %v1623, 0.0
    %vm1864 = vcmp.ge.f32.partialorder %v1628, 0.0
    %vm1865 = vcmp.ge.f32.partialorder %v1631, 0.0
    %vm1866 = vcmp.ge.f32.partialorder %v1636, 0.0
    %vm1867 = vcmp.ge.f32.partialorder %v1639, 0.0
    %vm1868 = vcmp.ge.f32.partialorder %v1644, 0.0
    %vm1869 = vcmp.ge.f32.partialorder %v1647, 0.0
    %vm1870 = vcmp.ge.f32.partialorder %v1652, 0.0
    %vm1871 = vcmp.ge.f32.partialorder %v1655, 0.0
    %vm1872 = vcmp.ge.f32.partialorder %v1660, 0.0
    %vm1873 = vcmp.ge.f32.partialorder %v1663, 0.0
    %vm1874 = vcmp.ge.f32.partialorder %v1668, 0.0
    %vm1875 = vcmp.ge.f32.partialorder %v1671, 0.0
    %vm1876 = vcmp.ge.f32.partialorder %v1676, 0.0
    %vm1877 = vcmp.ge.f32.partialorder %v1679, 0.0
    %vm1878 = vcmp.ge.f32.partialorder %v1684, 0.0
    %vm1879 = vcmp.ge.f32.partialorder %v1687, 0.0
    %vm1880 = vcmp.ge.f32.partialorder %v1692, 0.0
    %vm1881 = vcmp.ge.f32.partialorder %v1695, 0.0
    %vm1882 = vcmp.ge.f32.partialorder %v1700, 0.0
    %vm1883 = vcmp.ge.f32.partialorder %v1703, 0.0
    %vm1884 = vcmp.ge.f32.partialorder %v1708, 0.0
    %vm1885 = vcmp.ge.f32.partialorder %v1711, 0.0
    %vm1886 = vcmp.ge.f32.partialorder %v1716, 0.0
    %vm1887 = vcmp.ge.f32.partialorder %v1719, 0.0
    %vm1888 = vcmp.ge.f32.partialorder %v1724, 0.0
    %vm1889 = vcmp.ge.f32.partialorder %v1727, 0.0
    %vm1890 = vcmp.ge.f32.partialorder %v1732, 0.0
    %vm1891 = vcmp.ge.f32.partialorder %v1735, 0.0
    %vm1892 = vcmp.ge.f32.partialorder %v1740, 0.0
    %vm1893 = vcmp.ge.f32.partialorder %v1743, 0.0
    %vm1894 = vcmp.ge.f32.partialorder %v1748, 0.0
    %vm1895 = vcmp.ge.f32.partialorder %v1751, 0.0
    %vm1896 = vcmp.ge.f32.partialorder %v1756, 0.0
    %vm1897 = vcmp.ge.f32.partialorder %v1759, 0.0
    %vm1898 = vcmp.ge.f32.partialorder %v1764, 0.0
    %vm1899 = vcmp.ge.f32.partialorder %v1767, 0.0
    %vm1900 = vcmp.ge.f32.partialorder %v1772, 0.0
    %vm1901 = vcmp.ge.f32.partialorder %v1775, 0.0
    %vm1902 = vcmp.ge.f32.partialorder %v1780, 0.0
    %vm1903 = vcmp.ge.f32.partialorder %v1783, 0.0
    %vm1904 = vcmp.ge.f32.partialorder %v1788, 0.0
    %vm1905 = vcmp.ge.f32.partialorder %v1791, 0.0
    %vm1906 = vcmp.ge.f32.partialorder %v1796, 0.0
    %vm1907 = vcmp.ge.f32.partialorder %v1799, 0.0
    %vm1908 = vcmp.ge.f32.partialorder %v1804, 0.0
    %vm1909 = vcmp.ge.f32.partialorder %v1807, 0.0
    %vm1910 = vcmp.ge.f32.partialorder %v1812, 0.0
    %vm1911 = vcmp.ge.f32.partialorder %v1815, 0.0
    %vm1912 = vcmp.ge.f32.partialorder %v1820, 0.0
    %vm1913 = vcmp.ge.f32.partialorder %v1823, 0.0
    %vm1914 = vcmp.ge.f32.partialorder %v1828, 0.0
    %vm1915 = vcmp.ge.f32.partialorder %v1831, 0.0
    %vm1916 = vcmp.ge.f32.partialorder %v1836, 0.0
    %vm1917 = vcmp.ge.f32.partialorder %v1839, 0.0
    %vm1918 = vcmp.ge.f32.partialorder %v1844, 0.0
    %vm1919 = vcmp.ge.f32.partialorder %v1847, 0.0
    %vm1920 = vcmp.ge.f32.partialorder %v1852, 0.0
    %vm1921 = vcmp.ge.f32.partialorder %v1855, 0.0
    %v1922 = vmul.f32 %v1604, 0.2
    %v1923 = vmul.f32 %v1607, 0.2
    %v1924 = vmul.f32 %v1612, 0.2
    %v1925 = vmul.f32 %v1615, 0.2
    %v1926 = vmul.f32 %v1620, 0.2
    %v1927 = vmul.f32 %v1623, 0.2
    %v1928 = vmul.f32 %v1628, 0.2
    %v1929 = vmul.f32 %v1631, 0.2
    %v1930 = vmul.f32 %v1636, 0.2
    %v1931 = vmul.f32 %v1639, 0.2
    %v1932 = vmul.f32 %v1644, 0.2
    %v1933 = vmul.f32 %v1647, 0.2
    %v1934 = vmul.f32 %v1652, 0.2
    %v1935 = vmul.f32 %v1655, 0.2
    %v1936 = vmul.f32 %v1660, 0.2
    %v1937 = vmul.f32 %v1663, 0.2
    %v1938 = vmul.f32 %v1668, 0.2
    %v1939 = vmul.f32 %v1671, 0.2
    %v1940 = vmul.f32 %v1676, 0.2
    %v1941 = vmul.f32 %v1679, 0.2
    %v1942 = vmul.f32 %v1684, 0.2
    %v1943 = vmul.f32 %v1687, 0.2
    %v1944 = vmul.f32 %v1692, 0.2
    %v1945 = vmul.f32 %v1695, 0.2
    %v1946 = vmul.f32 %v1700, 0.2
    %v1947 = vmul.f32 %v1703, 0.2
    %v1948 = vmul.f32 %v1708, 0.2
    %v1949 = vmul.f32 %v1711, 0.2
    %v1950 = vmul.f32 %v1716, 0.2
    %v1951 = vmul.f32 %v1719, 0.2
    %v1952 = vmul.f32 %v1724, 0.2
    %v1953 = vmul.f32 %v1727, 0.2
    %v1954 = vmul.f32 %v1732, 0.2
    %v1955 = vmul.f32 %v1735, 0.2
    %v1956 = vmul.f32 %v1740, 0.2
    %v1957 = vmul.f32 %v1743, 0.2
    %v1958 = vmul.f32 %v1748, 0.2
    %v1959 = vmul.f32 %v1751, 0.2
    %v1960 = vmul.f32 %v1756, 0.2
    %v1961 = vmul.f32 %v1759, 0.2
    %v1962 = vmul.f32 %v1764, 0.2
    %v1963 = vmul.f32 %v1767, 0.2
    %v1964 = vmul.f32 %v1772, 0.2
    %v1965 = vmul.f32 %v1775, 0.2
    %v1966 = vmul.f32 %v1780, 0.2
    %v1967 = vmul.f32 %v1783, 0.2
    %v1968 = vmul.f32 %v1788, 0.2
    %v1969 = vmul.f32 %v1791, 0.2
    %v1970 = vmul.f32 %v1796, 0.2
    %v1971 = vmul.f32 %v1799, 0.2
    %v1972 = vmul.f32 %v1804, 0.2
    %v1973 = vmul.f32 %v1807, 0.2
    %v1974 = vmul.f32 %v1812, 0.2
    %v1975 = vmul.f32 %v1815, 0.2
    %v1976 = vmul.f32 %v1820, 0.2
    %v1977 = vmul.f32 %v1823, 0.2
    %v1978 = vmul.f32 %v1828, 0.2
    %v1979 = vmul.f32 %v1831, 0.2
    %v1980 = vmul.f32 %v1836, 0.2
    %v1981 = vmul.f32 %v1839, 0.2
    %v1982 = vmul.f32 %v1844, 0.2
    %v1983 = vmul.f32 %v1847, 0.2
    %v1984 = vmul.f32 %v1852, 0.2
    %v1985 = vmul.f32 %v1855, 0.2
    %v1986 = vsel %vm1858, %v1604, %v1922
    %v1987 = vsel %vm1859, %v1607, %v1923
    %v1988 = vsel %vm1860, %v1612, %v1924
    %v1989 = vsel %vm1861, %v1615, %v1925
    %v1990 = vsel %vm1862, %v1620, %v1926
    %v1991 = vsel %vm1863, %v1623, %v1927
    %v1992 = vsel %vm1864, %v1628, %v1928
    %v1993 = vsel %vm1865, %v1631, %v1929
    %v1994 = vsel %vm1866, %v1636, %v1930
    %v1995 = vsel %vm1867, %v1639, %v1931
    %v1996 = vsel %vm1868, %v1644, %v1932
    %v1997 = vsel %vm1869, %v1647, %v1933
    %v1998 = vsel %vm1870, %v1652, %v1934
    %v1999 = vsel %vm1871, %v1655, %v1935
    %v2000 = vsel %vm1872, %v1660, %v1936
    %v2001 = vsel %vm1873, %v1663, %v1937
    %v2002 = vsel %vm1874, %v1668, %v1938
    %v2003 = vsel %vm1875, %v1671, %v1939
    %v2004 = vsel %vm1876, %v1676, %v1940
    %v2005 = vsel %vm1877, %v1679, %v1941
    %v2006 = vsel %vm1878, %v1684, %v1942
    %v2007 = vsel %vm1879, %v1687, %v1943
    %v2008 = vsel %vm1880, %v1692, %v1944
    %v2009 = vsel %vm1881, %v1695, %v1945
    %v2010 = vsel %vm1882, %v1700, %v1946
    %v2011 = vsel %vm1883, %v1703, %v1947
    %v2012 = vsel %vm1884, %v1708, %v1948
    %v2013 = vsel %vm1885, %v1711, %v1949
    %v2014 = vsel %vm1886, %v1716, %v1950
    %v2015 = vsel %vm1887, %v1719, %v1951
    %v2016 = vsel %vm1888, %v1724, %v1952
    %v2017 = vsel %vm1889, %v1727, %v1953
    %v2018 = vsel %vm1890, %v1732, %v1954
    %v2019 = vsel %vm1891, %v1735, %v1955
    %v2020 = vsel %vm1892, %v1740, %v1956
    %v2021 = vsel %vm1893, %v1743, %v1957
    %v2022 = vsel %vm1894, %v1748, %v1958
    %v2023 = vsel %vm1895, %v1751, %v1959
    %v2024 = vsel %vm1896, %v1756, %v1960
    %v2025 = vsel %vm1897, %v1759, %v1961
    %v2026 = vsel %vm1898, %v1764, %v1962
    %v2027 = vsel %vm1899, %v1767, %v1963
    %v2028 = vsel %vm1900, %v1772, %v1964
    %v2029 = vsel %vm1901, %v1775, %v1965
    %v2030 = vsel %vm1902, %v1780, %v1966
    %v2031 = vsel %vm1903, %v1783, %v1967
    %v2032 = vsel %vm1904, %v1788, %v1968
    %v2033 = vsel %vm1905, %v1791, %v1969
    %v2034 = vsel %vm1906, %v1796, %v1970
    %v2035 = vsel %vm1907, %v1799, %v1971
    %v2036 = vsel %vm1908, %v1804, %v1972
    %v2037 = vsel %vm1909, %v1807, %v1973
    %v2038 = vsel %vm1910, %v1812, %v1974
    %v2039 = vsel %vm1911, %v1815, %v1975
    %v2040 = vsel %vm1912, %v1820, %v1976
    %v2041 = vsel %vm1913, %v1823, %v1977
    %v2042 = vsel %vm1914, %v1828, %v1978
    %v2043 = vsel %vm1915, %v1831, %v1979
    %v2044 = vsel %vm1916, %v1836, %v1980
    %v2045 = vsel %vm1917, %v1839, %v1981
    %v2046 = vsel %vm1918, %v1844, %v1982
    %v2047 = vsel %vm1919, %v1847, %v1983
    %v2048 = vsel %vm1920, %v1852, %v1984
    %v2049 = vsel %vm1921, %v1855, %v1985
    %v2050 = vld [vmem:[%s3] sm:$0xff]
    %v2051 = vld [vmem:[%s3 + $0x8] sm:$0xff]
    %v2052 = vld [vmem:[%s3 + $0x10] sm:$0xff]
    %v2053 = vld [vmem:[%s3 + $0x18] sm:$0xff]
    %v2054 = vld [vmem:[%s3 + $0x20] sm:$0xff]
    %v2055 = vld [vmem:[%s3 + $0x28] sm:$0xff]
    %v2056 = vld [vmem:[%s3 + $0x30] sm:$0xff]
    %v2057 = vld [vmem:[%s3 + $0x38] sm:$0xff]
    %v2058 = vld [vmem:[%s3 + $0x40] sm:$0xff]
    %v2059 = vld [vmem:[%s3 + $0x48] sm:$0xff]
    %v2060 = vld [vmem:[%s3 + $0x50] sm:$0xff]
    %v2061 = vld [vmem:[%s3 + $0x58] sm:$0xff]
    %v2062 = vld [vmem:[%s3 + $0x60] sm:$0xff]
    %v2063 = vld [vmem:[%s3 + $0x68] sm:$0xff]
    %v2064 = vld [vmem:[%s3 + $0x70] sm:$0xff]
    %v2065 = vld [vmem:[%s3 + $0x78] sm:$0xff]
    %v2066 = vld [vmem:[%s3 + $0x80] sm:$0xff]
    %v2067 = vld [vmem:[%s3 + $0x88] sm:$0xff]
    %v2068 = vld [vmem:[%s3 + $0x90] sm:$0xff]
    %v2069 = vld [vmem:[%s3 + $0x98] sm:$0xff]
    %v2070 = vld [vmem:[%s3 + $0xa0] sm:$0xff]
    %v2071 = vld [vmem:[%s3 + $0xa8] sm:$0xff]
    %v2072 = vld [vmem:[%s3 + $0xb0] sm:$0xff]
    %v2073 = vld [vmem:[%s3 + $0xb8] sm:$0xff]
    %v2074 = vld [vmem:[%s3 + $0xc0] sm:$0xff]
    %v2075 = vld [vmem:[%s3 + $0xc8] sm:$0xff]
    %v2076 = vld [vmem:[%s3 + $0xd0] sm:$0xff]
    %v2077 = vld [vmem:[%s3 + $0xd8] sm:$0xff]
    %v2078 = vld [vmem:[%s3 + $0xe0] sm:$0xff]
    %v2079 = vld [vmem:[%s3 + $0xe8] sm:$0xff]
    %v2080 = vld [vmem:[%s3 + $0xf0] sm:$0xff]
    %v2081 = vld [vmem:[%s3 + $0xf8] sm:$0xff]
    %v2082 = vld [vmem:[%s3 + $0x100] sm:$0xff]
    %v2083 = vld [vmem:[%s3 + $0x108] sm:$0xff]
    %v2084 = vld [vmem:[%s3 + $0x110] sm:$0xff]
    %v2085 = vld [vmem:[%s3 + $0x118] sm:$0xff]
    %v2086 = vld [vmem:[%s3 + $0x120] sm:$0xff]
    %v2087 = vld [vmem:[%s3 + $0x128] sm:$0xff]
    %v2088 = vld [vmem:[%s3 + $0x130] sm:$0xff]
    %v2089 = vld [vmem:[%s3 + $0x138] sm:$0xff]
    %v2090 = vld [vmem:[%s3 + $0x140] sm:$0xff]
    %v2091 = vld [vmem:[%s3 + $0x148] sm:$0xff]
    %v2092 = vld [vmem:[%s3 + $0x150] sm:$0xff]
    %v2093 = vld [vmem:[%s3 + $0x158] sm:$0xff]
    %v2094 = vld [vmem:[%s3 + $0x160] sm:$0xff]
    %v2095 = vld [vmem:[%s3 + $0x168] sm:$0xff]
    %v2096 = vld [vmem:[%s3 + $0x170] sm:$0xff]
    %v2097 = vld [vmem:[%s3 + $0x178] sm:$0xff]
    %v2098 = vld [vmem:[%s3 + $0x180] sm:$0xff]
    %v2099 = vld [vmem:[%s3 + $0x188] sm:$0xff]
    %v2100 = vld [vmem:[%s3 + $0x190] sm:$0xff]
    %v2101 = vld [vmem:[%s3 + $0x198] sm:$0xff]
    %v2102 = vld [vmem:[%s3 + $0x1a0] sm:$0xff]
    %v2103 = vld [vmem:[%s3 + $0x1a8] sm:$0xff]
    %v2104 = vld [vmem:[%s3 + $0x1b0] sm:$0xff]
    %v2105 = vld [vmem:[%s3 + $0x1b8] sm:$0xff]
    %v2106 = vld [vmem:[%s3 + $0x1c0] sm:$0xff]
    %v2107 = vld [vmem:[%s3 + $0x1c8] sm:$0xff]
    %v2108 = vld [vmem:[%s3 + $0x1d0] sm:$0xff]
    %v2109 = vld [vmem:[%s3 + $0x1d8] sm:$0xff]
    %v2110 = vld [vmem:[%s3 + $0x1e0] sm:$0xff]
    %v2111 = vld [vmem:[%s3 + $0x1e8] sm:$0xff]
    %v2112 = vld [vmem:[%s3 + $0x1f0] sm:$0xff]
    %v2113 = vld [vmem:[%s3 + $0x1f8] sm:$0xff]
    %v2114 = vld [vmem:[%s3 + $0x200] sm:$0xff]
    %v2115 = vld [vmem:[%s3 + $0x208] sm:$0xff]
    %v2116 = vld [vmem:[%s3 + $0x210] sm:$0xff]
    %v2117 = vld [vmem:[%s3 + $0x218] sm:$0xff]
    %v2118 = vld [vmem:[%s3 + $0x220] sm:$0xff]
    %v2119 = vld [vmem:[%s3 + $0x228] sm:$0xff]
    %v2120 = vld [vmem:[%s3 + $0x230] sm:$0xff]
    %v2121 = vld [vmem:[%s3 + $0x238] sm:$0xff]
    %v2122 = vld [vmem:[%s3 + $0x240] sm:$0xff]
    %v2123 = vld [vmem:[%s3 + $0x248] sm:$0xff]
    %v2124 = vld [vmem:[%s3 + $0x250] sm:$0xff]
    %v2125 = vld [vmem:[%s3 + $0x258] sm:$0xff]
    %v2126 = vld [vmem:[%s3 + $0x260] sm:$0xff]
    %v2127 = vld [vmem:[%s3 + $0x268] sm:$0xff]
    %v2128 = vld [vmem:[%s3 + $0x270] sm:$0xff]
    %v2129 = vld [vmem:[%s3 + $0x278] sm:$0xff]
    %v2130 = vld [vmem:[%s3 + $0x280] sm:$0xff]
    %v2131 = vld [vmem:[%s3 + $0x288] sm:$0xff]
    %v2132 = vld [vmem:[%s3 + $0x290] sm:$0xff]
    %v2133 = vld [vmem:[%s3 + $0x298] sm:$0xff]
    %v2134 = vld [vmem:[%s3 + $0x2a0] sm:$0xff]
    %v2135 = vld [vmem:[%s3 + $0x2a8] sm:$0xff]
    %v2136 = vld [vmem:[%s3 + $0x2b0] sm:$0xff]
    %v2137 = vld [vmem:[%s3 + $0x2b8] sm:$0xff]
    %v2138 = vld [vmem:[%s3 + $0x2c0] sm:$0xff]
    %v2139 = vld [vmem:[%s3 + $0x2c8] sm:$0xff]
    %v2140 = vld [vmem:[%s3 + $0x2d0] sm:$0xff]
    %v2141 = vld [vmem:[%s3 + $0x2d8] sm:$0xff]
    %v2142 = vld [vmem:[%s3 + $0x2e0] sm:$0xff]
    %v2143 = vld [vmem:[%s3 + $0x2e8] sm:$0xff]
    %v2144 = vld [vmem:[%s3 + $0x2f0] sm:$0xff]
    %v2145 = vld [vmem:[%s3 + $0x2f8] sm:$0xff]
    %v2146 = vld [vmem:[%s3 + $0x300] sm:$0xff]
    %v2147 = vld [vmem:[%s3 + $0x308] sm:$0xff]
    %v2148 = vld [vmem:[%s3 + $0x310] sm:$0xff]
    %v2149 = vld [vmem:[%s3 + $0x318] sm:$0xff]
    %v2150 = vld [vmem:[%s3 + $0x320] sm:$0xff]
    %v2151 = vld [vmem:[%s3 + $0x328] sm:$0xff]
    %v2152 = vld [vmem:[%s3 + $0x330] sm:$0xff]
    %v2153 = vld [vmem:[%s3 + $0x338] sm:$0xff]
    %v2154 = vld [vmem:[%s3 + $0x340] sm:$0xff]
    %v2155 = vld [vmem:[%s3 + $0x348] sm:$0xff]
    %v2156 = vld [vmem:[%s3 + $0x350] sm:$0xff]
    %v2157 = vld [vmem:[%s3 + $0x358] sm:$0xff]
    %v2158 = vld [vmem:[%s3 + $0x360] sm:$0xff]
    %v2159 = vld [vmem:[%s3 + $0x368] sm:$0xff]
    %v2160 = vld [vmem:[%s3 + $0x370] sm:$0xff]
    %v2161 = vld [vmem:[%s3 + $0x378] sm:$0xff]
    %v2162 = vld [vmem:[%s3 + $0x380] sm:$0xff]
    %v2163 = vld [vmem:[%s3 + $0x388] sm:$0xff]
    %v2164 = vld [vmem:[%s3 + $0x390] sm:$0xff]
    %v2165 = vld [vmem:[%s3 + $0x398] sm:$0xff]
    %v2166 = vld [vmem:[%s3 + $0x3a0] sm:$0xff]
    %v2167 = vld [vmem:[%s3 + $0x3a8] sm:$0xff]
    %v2168 = vld [vmem:[%s3 + $0x3b0] sm:$0xff]
    %v2169 = vld [vmem:[%s3 + $0x3b8] sm:$0xff]
    %v2170 = vld [vmem:[%s3 + $0x3c0] sm:$0xff]
    %v2171 = vld [vmem:[%s3 + $0x3c8] sm:$0xff]
    %v2172 = vld [vmem:[%s3 + $0x3d0] sm:$0xff]
    %v2173 = vld [vmem:[%s3 + $0x3d8] sm:$0xff]
    %v2174 = vld [vmem:[%s3 + $0x3e0] sm:$0xff]
    %v2175 = vld [vmem:[%s3 + $0x3e8] sm:$0xff]
    %v2176 = vld [vmem:[%s3 + $0x3f0] sm:$0xff]
    %v2177 = vld [vmem:[%s3 + $0x3f8] sm:$0xff]
    %v2178 = vpack.c.bf16 %v1987, %v1986
    %v2179 = vpack.c.bf16 %v1989, %v1988
    %v2180 = vpack.c.bf16 %v1991, %v1990
    %v2181 = vpack.c.bf16 %v1993, %v1992
    %v2182 = vpack.c.bf16 %v1995, %v1994
    %v2183 = vpack.c.bf16 %v1997, %v1996
    %v2184 = vpack.c.bf16 %v1999, %v1998
    %v2185 = vpack.c.bf16 %v2001, %v2000
    %v2186 = vpack.c.bf16 %v2003, %v2002
    %v2187 = vpack.c.bf16 %v2005, %v2004
    %v2188 = vpack.c.bf16 %v2007, %v2006
    %v2189 = vpack.c.bf16 %v2009, %v2008
    %v2190 = vpack.c.bf16 %v2011, %v2010
    %v2191 = vpack.c.bf16 %v2013, %v2012
    %v2192 = vpack.c.bf16 %v2015, %v2014
    %v2193 = vpack.c.bf16 %v2017, %v2016
    %v2194 = vpack.c.bf16 %v2019, %v2018
    %v2195 = vpack.c.bf16 %v2021, %v2020
    %v2196 = vpack.c.bf16 %v2023, %v2022
    %v2197 = vpack.c.bf16 %v2025, %v2024
    %v2198 = vpack.c.bf16 %v2027, %v2026
    %v2199 = vpack.c.bf16 %v2029, %v2028
    %v2200 = vpack.c.bf16 %v2031, %v2030
    %v2201 = vpack.c.bf16 %v2033, %v2032
    %v2202 = vpack.c.bf16 %v2035, %v2034
    %v2203 = vpack.c.bf16 %v2037, %v2036
    %v2204 = vpack.c.bf16 %v2039, %v2038
    %v2205 = vpack.c.bf16 %v2041, %v2040
    %v2206 = vpack.c.bf16 %v2043, %v2042
    %v2207 = vpack.c.bf16 %v2045, %v2044
    %v2208 = vpack.c.bf16 %v2047, %v2046
    %v2209 = vpack.c.bf16 %v2049, %v2048
    %v2210 = vld [vmem:[%s4] sm:$0xff]
    %v2211 = vld [vmem:[%s4 + $0x8] sm:$0xff]
    %v2212 = vld [vmem:[%s4 + $0x10] sm:$0xff]
    %v2213 = vld [vmem:[%s4 + $0x18] sm:$0xff]
    %v2214 = vld [vmem:[%s4 + $0x20] sm:$0xff]
    %v2215 = vld [vmem:[%s4 + $0x28] sm:$0xff]
    %v2216 = vld [vmem:[%s4 + $0x30] sm:$0xff]
    %v2217 = vld [vmem:[%s4 + $0x38] sm:$0xff]
    %v2218 = vld [vmem:[%s4 + $0x40] sm:$0xff]
    %v2219 = vld [vmem:[%s4 + $0x48] sm:$0xff]
    %v2220 = vld [vmem:[%s4 + $0x50] sm:$0xff]
    %v2221 = vld [vmem:[%s4 + $0x58] sm:$0xff]
    %v2222 = vld [vmem:[%s4 + $0x60] sm:$0xff]
    %v2223 = vld [vmem:[%s4 + $0x68] sm:$0xff]
    %v2224 = vld [vmem:[%s4 + $0x70] sm:$0xff]
    %v2225 = vld [vmem:[%s4 + $0x78] sm:$0xff]
    %v2226 = vld [vmem:[%s4 + $0x80] sm:$0xff]
    %v2227 = vld [vmem:[%s4 + $0x88] sm:$0xff]
    %v2228 = vld [vmem:[%s4 + $0x90] sm:$0xff]
    %v2229 = vld [vmem:[%s4 + $0x98] sm:$0xff]
    %v2230 = vld [vmem:[%s4 + $0xa0] sm:$0xff]
    %v2231 = vld [vmem:[%s4 + $0xa8] sm:$0xff]
    %v2232 = vld [vmem:[%s4 + $0xb0] sm:$0xff]
    %v2233 = vld [vmem:[%s4 + $0xb8] sm:$0xff]
    %v2234 = vld [vmem:[%s4 + $0xc0] sm:$0xff]
    %v2235 = vld [vmem:[%s4 + $0xc8] sm:$0xff]
    %v2236 = vld [vmem:[%s4 + $0xd0] sm:$0xff]
    %v2237 = vld [vmem:[%s4 + $0xd8] sm:$0xff]
    %v2238 = vld [vmem:[%s4 + $0xe0] sm:$0xff]
    %v2239 = vld [vmem:[%s4 + $0xe8] sm:$0xff]
    %v2240 = vld [vmem:[%s4 + $0xf0] sm:$0xff]
    %v2241 = vld [vmem:[%s4 + $0xf8] sm:$0xff]
    %v2242 = vld [vmem:[%s4 + $0x100] sm:$0xff]
    %v2243 = vld [vmem:[%s4 + $0x108] sm:$0xff]
    %v2244 = vld [vmem:[%s4 + $0x110] sm:$0xff]
    %v2245 = vld [vmem:[%s4 + $0x118] sm:$0xff]
    %v2246 = vld [vmem:[%s4 + $0x120] sm:$0xff]
    %v2247 = vld [vmem:[%s4 + $0x128] sm:$0xff]
    %v2248 = vld [vmem:[%s4 + $0x130] sm:$0xff]
    %v2249 = vld [vmem:[%s4 + $0x138] sm:$0xff]
    %v2250 = vld [vmem:[%s4 + $0x140] sm:$0xff]
    %v2251 = vld [vmem:[%s4 + $0x148] sm:$0xff]
    %v2252 = vld [vmem:[%s4 + $0x150] sm:$0xff]
    %v2253 = vld [vmem:[%s4 + $0x158] sm:$0xff]
    %v2254 = vld [vmem:[%s4 + $0x160] sm:$0xff]
    %v2255 = vld [vmem:[%s4 + $0x168] sm:$0xff]
    %v2256 = vld [vmem:[%s4 + $0x170] sm:$0xff]
    %v2257 = vld [vmem:[%s4 + $0x178] sm:$0xff]
    %v2258 = vld [vmem:[%s4 + $0x180] sm:$0xff]
    %v2259 = vld [vmem:[%s4 + $0x188] sm:$0xff]
    %v2260 = vld [vmem:[%s4 + $0x190] sm:$0xff]
    %v2261 = vld [vmem:[%s4 + $0x198] sm:$0xff]
    %v2262 = vld [vmem:[%s4 + $0x1a0] sm:$0xff]
    %v2263 = vld [vmem:[%s4 + $0x1a8] sm:$0xff]
    %v2264 = vld [vmem:[%s4 + $0x1b0] sm:$0xff]
    %v2265 = vld [vmem:[%s4 + $0x1b8] sm:$0xff]
    %v2266 = vld [vmem:[%s4 + $0x1c0] sm:$0xff]
    %v2267 = vld [vmem:[%s4 + $0x1c8] sm:$0xff]
    %v2268 = vld [vmem:[%s4 + $0x1d0] sm:$0xff]
    %v2269 = vld [vmem:[%s4 + $0x1d8] sm:$0xff]
    %v2270 = vld [vmem:[%s4 + $0x1e0] sm:$0xff]
    %v2271 = vld [vmem:[%s4 + $0x1e8] sm:$0xff]
    %v2272 = vld [vmem:[%s4 + $0x1f0] sm:$0xff]
    %v2273 = vld [vmem:[%s4 + $0x1f8] sm:$0xff]
    %2275 = vset.pattern.permute.xlu0 0
    %2276 = vperm.xlu0 %2275, %v2210
    %v2277 = vpop.permute.xlu0 %2276
    %2280 = vset.pattern.permute.xlu0 0
    %2281 = vperm.xlu0 %2280, %v2211
    %v2282 = vpop.permute.xlu0 %2281
    %2285 = vset.pattern.permute.xlu0 0
    %2286 = vperm.xlu0 %2285, %v2212
    %v2287 = vpop.permute.xlu0 %2286
    %2290 = vset.pattern.permute.xlu0 0
    %2291 = vperm.xlu0 %2290, %v2213
    %v2292 = vpop.permute.xlu0 %2291
    %2295 = vset.pattern.permute.xlu0 0
    %2296 = vperm.xlu0 %2295, %v2214
    %v2297 = vpop.permute.xlu0 %2296
    %2300 = vset.pattern.permute.xlu0 0
    %2301 = vperm.xlu0 %2300, %v2215
    %v2302 = vpop.permute.xlu0 %2301
    %2305 = vset.pattern.permute.xlu0 0
    %2306 = vperm.xlu0 %2305, %v2216
    %v2307 = vpop.permute.xlu0 %2306
    %2310 = vset.pattern.permute.xlu0 0
    %2311 = vperm.xlu0 %2310, %v2217
    %v2312 = vpop.permute.xlu0 %2311
    %2315 = vset.pattern.permute.xlu0 0
    %2316 = vperm.xlu0 %2315, %v2218
    %v2317 = vpop.permute.xlu0 %2316
    %2320 = vset.pattern.permute.xlu0 0
    %2321 = vperm.xlu0 %2320, %v2219
    %v2322 = vpop.permute.xlu0 %2321
    %2325 = vset.pattern.permute.xlu0 0
    %2326 = vperm.xlu0 %2325, %v2220
    %v2327 = vpop.permute.xlu0 %2326
    %2330 = vset.pattern.permute.xlu0 0
    %2331 = vperm.xlu0 %2330, %v2221
    %v2332 = vpop.permute.xlu0 %2331
    %2335 = vset.pattern.permute.xlu0 0
    %2336 = vperm.xlu0 %2335, %v2222
    %v2337 = vpop.permute.xlu0 %2336
    %2340 = vset.pattern.permute.xlu0 0
    %2341 = vperm.xlu0 %2340, %v2223
    %v2342 = vpop.permute.xlu0 %2341
    %2345 = vset.pattern.permute.xlu0 0
    %2346 = vperm.xlu0 %2345, %v2224
    %v2347 = vpop.permute.xlu0 %2346
    %2350 = vset.pattern.permute.xlu0 0
    %2351 = vperm.xlu0 %2350, %v2225
    %v2352 = vpop.permute.xlu0 %2351
    %2355 = vset.pattern.permute.xlu0 0
    %2356 = vperm.xlu0 %2355, %v2226
    %v2357 = vpop.permute.xlu0 %2356
    %2360 = vset.pattern.permute.xlu0 0
    %2361 = vperm.xlu0 %2360, %v2227
    %v2362 = vpop.permute.xlu0 %2361
    %2365 = vset.pattern.permute.xlu0 0
    %2366 = vperm.xlu0 %2365, %v2228
    %v2367 = vpop.permute.xlu0 %2366
    %2370 = vset.pattern.permute.xlu0 0
    %2371 = vperm.xlu0 %2370, %v2229
    %v2372 = vpop.permute.xlu0 %2371
    %2375 = vset.pattern.permute.xlu0 0
    %2376 = vperm.xlu0 %2375, %v2230
    %v2377 = vpop.permute.xlu0 %2376
    %2380 = vset.pattern.permute.xlu0 0
    %2381 = vperm.xlu0 %2380, %v2231
    %v2382 = vpop.permute.xlu0 %2381
    %2385 = vset.pattern.permute.xlu0 0
    %2386 = vperm.xlu0 %2385, %v2232
    %v2387 = vpop.permute.xlu0 %2386
    %2390 = vset.pattern.permute.xlu0 0
    %2391 = vperm.xlu0 %2390, %v2233
    %v2392 = vpop.permute.xlu0 %2391
    %2395 = vset.pattern.permute.xlu0 0
    %2396 = vperm.xlu0 %2395, %v2234
    %v2397 = vpop.permute.xlu0 %2396
    %2400 = vset.pattern.permute.xlu0 0
    %2401 = vperm.xlu0 %2400, %v2235
    %v2402 = vpop.permute.xlu0 %2401
    %2405 = vset.pattern.permute.xlu0 0
    %2406 = vperm.xlu0 %2405, %v2236
    %v2407 = vpop.permute.xlu0 %2406
    %2410 = vset.pattern.permute.xlu0 0
    %2411 = vperm.xlu0 %2410, %v2237
    %v2412 = vpop.permute.xlu0 %2411
    %2415 = vset.pattern.permute.xlu0 0
    %2416 = vperm.xlu0 %2415, %v2238
    %v2417 = vpop.permute.xlu0 %2416
    %2420 = vset.pattern.permute.xlu0 0
    %2421 = vperm.xlu0 %2420, %v2239
    %v2422 = vpop.permute.xlu0 %2421
    %2425 = vset.pattern.permute.xlu0 0
    %2426 = vperm.xlu0 %2425, %v2240
    %v2427 = vpop.permute.xlu0 %2426
    %2430 = vset.pattern.permute.xlu0 0
    %2431 = vperm.xlu0 %2430, %v2241
    %v2432 = vpop.permute.xlu0 %2431
    %2435 = vset.pattern.permute.xlu0 0
    %2436 = vperm.xlu0 %2435, %v2242
    %v2437 = vpop.permute.xlu0 %2436
    %2440 = vset.pattern.permute.xlu0 0
    %2441 = vperm.xlu0 %2440, %v2243
    %v2442 = vpop.permute.xlu0 %2441
    %2445 = vset.pattern.permute.xlu0 0
    %2446 = vperm.xlu0 %2445, %v2244
    %v2447 = vpop.permute.xlu0 %2446
    %2450 = vset.pattern.permute.xlu0 0
    %2451 = vperm.xlu0 %2450, %v2245
    %v2452 = vpop.permute.xlu0 %2451
    %2455 = vset.pattern.permute.xlu0 0
    %2456 = vperm.xlu0 %2455, %v2246
    %v2457 = vpop.permute.xlu0 %2456
    %2460 = vset.pattern.permute.xlu0 0
    %2461 = vperm.xlu0 %2460, %v2247
    %v2462 = vpop.permute.xlu0 %2461
    %2465 = vset.pattern.permute.xlu0 0
    %2466 = vperm.xlu0 %2465, %v2248
    %v2467 = vpop.permute.xlu0 %2466
    %2470 = vset.pattern.permute.xlu0 0
    %2471 = vperm.xlu0 %2470, %v2249
    %v2472 = vpop.permute.xlu0 %2471
    %2475 = vset.pattern.permute.xlu0 0
    %2476 = vperm.xlu0 %2475, %v2250
    %v2477 = vpop.permute.xlu0 %2476
    %2480 = vset.pattern.permute.xlu0 0
    %2481 = vperm.xlu0 %2480, %v2251
    %v2482 = vpop.permute.xlu0 %2481
    %2485 = vset.pattern.permute.xlu0 0
    %2486 = vperm.xlu0 %2485, %v2252
    %v2487 = vpop.permute.xlu0 %2486
    %2490 = vset.pattern.permute.xlu0 0
    %2491 = vperm.xlu0 %2490, %v2253
    %v2492 = vpop.permute.xlu0 %2491
    %2495 = vset.pattern.permute.xlu0 0
    %2496 = vperm.xlu0 %2495, %v2254
    %v2497 = vpop.permute.xlu0 %2496
    %2500 = vset.pattern.permute.xlu0 0
    %2501 = vperm.xlu0 %2500, %v2255
    %v2502 = vpop.permute.xlu0 %2501
    %2505 = vset.pattern.permute.xlu0 0
    %2506 = vperm.xlu0 %2505, %v2256
    %v2507 = vpop.permute.xlu0 %2506
    %2510 = vset.pattern.permute.xlu0 0
    %2511 = vperm.xlu0 %2510, %v2257
    %v2512 = vpop.permute.xlu0 %2511
    %2515 = vset.pattern.permute.xlu0 0
    %2516 = vperm.xlu0 %2515, %v2258
    %v2517 = vpop.permute.xlu0 %2516
    %2520 = vset.pattern.permute.xlu0 0
    %2521 = vperm.xlu0 %2520, %v2259
    %v2522 = vpop.permute.xlu0 %2521
    %2525 = vset.pattern.permute.xlu0 0
    %2526 = vperm.xlu0 %2525, %v2260
    %v2527 = vpop.permute.xlu0 %2526
    %2530 = vset.pattern.permute.xlu0 0
    %2531 = vperm.xlu0 %2530, %v2261
    %v2532 = vpop.permute.xlu0 %2531
    %2535 = vset.pattern.permute.xlu0 0
    %2536 = vperm.xlu0 %2535, %v2262
    %v2537 = vpop.permute.xlu0 %2536
    %2540 = vset.pattern.permute.xlu0 0
    %2541 = vperm.xlu0 %2540, %v2263
    %v2542 = vpop.permute.xlu0 %2541
    %2545 = vset.pattern.permute.xlu0 0
    %2546 = vperm.xlu0 %2545, %v2264
    %v2547 = vpop.permute.xlu0 %2546
    %2550 = vset.pattern.permute.xlu0 0
    %2551 = vperm.xlu0 %2550, %v2265
    %v2552 = vpop.permute.xlu0 %2551
    %2555 = vset.pattern.permute.xlu0 0
    %2556 = vperm.xlu0 %2555, %v2266
    %v2557 = vpop.permute.xlu0 %2556
    %2560 = vset.pattern.permute.xlu0 0
    %2561 = vperm.xlu0 %2560, %v2267
    %v2562 = vpop.permute.xlu0 %2561
    %2565 = vset.pattern.permute.xlu0 0
    %2566 = vperm.xlu0 %2565, %v2268
    %v2567 = vpop.permute.xlu0 %2566
    %2570 = vset.pattern.permute.xlu0 0
    %2571 = vperm.xlu0 %2570, %v2269
    %v2572 = vpop.permute.xlu0 %2571
    %2575 = vset.pattern.permute.xlu0 0
    %2576 = vperm.xlu0 %2575, %v2270
    %v2577 = vpop.permute.xlu0 %2576
    %2580 = vset.pattern.permute.xlu0 0
    %2581 = vperm.xlu0 %2580, %v2271
    %v2582 = vpop.permute.xlu0 %2581
    %2585 = vset.pattern.permute.xlu0 0
    %2586 = vperm.xlu0 %2585, %v2272
    %v2587 = vpop.permute.xlu0 %2586
    %2590 = vset.pattern.permute.xlu0 0
    %2591 = vperm.xlu0 %2590, %v2273
    %v2592 = vpop.permute.xlu0 %2591
    %v2722 = vunpack.c.l.b16 %v2050
    %v2723 = vunpack.c.h.b16 %v2050
    %v2724 = vunpack.c.l.b16 %v2051
    %v2725 = vunpack.c.h.b16 %v2051
    %v2726 = vunpack.c.l.b16 %v2052
    %v2727 = vunpack.c.h.b16 %v2052
    %v2728 = vunpack.c.l.b16 %v2053
    %v2729 = vunpack.c.h.b16 %v2053
    %v2730 = vunpack.c.l.b16 %v2054
    %v2731 = vunpack.c.h.b16 %v2054
    %v2732 = vunpack.c.l.b16 %v2055
    %v2733 = vunpack.c.h.b16 %v2055
    %v2734 = vunpack.c.l.b16 %v2056
    %v2735 = vunpack.c.h.b16 %v2056
    %v2736 = vunpack.c.l.b16 %v2057
    %v2737 = vunpack.c.h.b16 %v2057
    %v2738 = vunpack.c.l.b16 %v2058
    %v2739 = vunpack.c.h.b16 %v2058
    %v2740 = vunpack.c.l.b16 %v2059
    %v2741 = vunpack.c.h.b16 %v2059
    %v2742 = vunpack.c.l.b16 %v2060
    %v2743 = vunpack.c.h.b16 %v2060
    %v2744 = vunpack.c.l.b16 %v2061
    %v2745 = vunpack.c.h.b16 %v2061
    %v2746 = vunpack.c.l.b16 %v2062
    %v2747 = vunpack.c.h.b16 %v2062
    %v2748 = vunpack.c.l.b16 %v2063
    %v2749 = vunpack.c.h.b16 %v2063
    %v2750 = vunpack.c.l.b16 %v2064
    %v2751 = vunpack.c.h.b16 %v2064
    %v2752 = vunpack.c.l.b16 %v2065
    %v2753 = vunpack.c.h.b16 %v2065
    %v2754 = vunpack.c.l.b16 %v2066
    %v2755 = vunpack.c.h.b16 %v2066
    %v2756 = vunpack.c.l.b16 %v2067
    %v2757 = vunpack.c.h.b16 %v2067
    %v2758 = vunpack.c.l.b16 %v2068
    %v2759 = vunpack.c.h.b16 %v2068
    %v2760 = vunpack.c.l.b16 %v2069
    %v2761 = vunpack.c.h.b16 %v2069
    %v2762 = vunpack.c.l.b16 %v2070
    %v2763 = vunpack.c.h.b16 %v2070
    %v2764 = vunpack.c.l.b16 %v2071
    %v2765 = vunpack.c.h.b16 %v2071
    %v2766 = vunpack.c.l.b16 %v2072
    %v2767 = vunpack.c.h.b16 %v2072
    %v2768 = vunpack.c.l.b16 %v2073
    %v2769 = vunpack.c.h.b16 %v2073
    %v2770 = vunpack.c.l.b16 %v2074
    %v2771 = vunpack.c.h.b16 %v2074
    %v2772 = vunpack.c.l.b16 %v2075
    %v2773 = vunpack.c.h.b16 %v2075
    %v2774 = vunpack.c.l.b16 %v2076
    %v2775 = vunpack.c.h.b16 %v2076
    %v2776 = vunpack.c.l.b16 %v2077
    %v2777 = vunpack.c.h.b16 %v2077
    %v2778 = vunpack.c.l.b16 %v2078
    %v2779 = vunpack.c.h.b16 %v2078
    %v2780 = vunpack.c.l.b16 %v2079
    %v2781 = vunpack.c.h.b16 %v2079
    %v2782 = vunpack.c.l.b16 %v2080
    %v2783 = vunpack.c.h.b16 %v2080
    %v2784 = vunpack.c.l.b16 %v2081
    %v2785 = vunpack.c.h.b16 %v2081
    %v2786 = vunpack.c.l.b16 %v2082
    %v2787 = vunpack.c.h.b16 %v2082
    %v2788 = vunpack.c.l.b16 %v2083
    %v2789 = vunpack.c.h.b16 %v2083
    %v2790 = vunpack.c.l.b16 %v2084
    %v2791 = vunpack.c.h.b16 %v2084
    %v2792 = vunpack.c.l.b16 %v2085
    %v2793 = vunpack.c.h.b16 %v2085
    %v2794 = vunpack.c.l.b16 %v2086
    %v2795 = vunpack.c.h.b16 %v2086
    %v2796 = vunpack.c.l.b16 %v2087
    %v2797 = vunpack.c.h.b16 %v2087
    %v2798 = vunpack.c.l.b16 %v2088
    %v2799 = vunpack.c.h.b16 %v2088
    %v2800 = vunpack.c.l.b16 %v2089
    %v2801 = vunpack.c.h.b16 %v2089
    %v2802 = vunpack.c.l.b16 %v2090
    %v2803 = vunpack.c.h.b16 %v2090
    %v2804 = vunpack.c.l.b16 %v2091
    %v2805 = vunpack.c.h.b16 %v2091
    %v2806 = vunpack.c.l.b16 %v2092
    %v2807 = vunpack.c.h.b16 %v2092
    %v2808 = vunpack.c.l.b16 %v2093
    %v2809 = vunpack.c.h.b16 %v2093
    %v2810 = vunpack.c.l.b16 %v2094
    %v2811 = vunpack.c.h.b16 %v2094
    %v2812 = vunpack.c.l.b16 %v2095
    %v2813 = vunpack.c.h.b16 %v2095
    %v2814 = vunpack.c.l.b16 %v2096
    %v2815 = vunpack.c.h.b16 %v2096
    %v2816 = vunpack.c.l.b16 %v2097
    %v2817 = vunpack.c.h.b16 %v2097
    %v2818 = vunpack.c.l.b16 %v2098
    %v2819 = vunpack.c.h.b16 %v2098
    %v2820 = vunpack.c.l.b16 %v2099
    %v2821 = vunpack.c.h.b16 %v2099
    %v2822 = vunpack.c.l.b16 %v2100
    %v2823 = vunpack.c.h.b16 %v2100
    %v2824 = vunpack.c.l.b16 %v2101
    %v2825 = vunpack.c.h.b16 %v2101
    %v2826 = vunpack.c.l.b16 %v2102
    %v2827 = vunpack.c.h.b16 %v2102
    %v2828 = vunpack.c.l.b16 %v2103
    %v2829 = vunpack.c.h.b16 %v2103
    %v2830 = vunpack.c.l.b16 %v2104
    %v2831 = vunpack.c.h.b16 %v2104
    %v2832 = vunpack.c.l.b16 %v2105
    %v2833 = vunpack.c.h.b16 %v2105
    %v2834 = vunpack.c.l.b16 %v2106
    %v2835 = vunpack.c.h.b16 %v2106
    %v2836 = vunpack.c.l.b16 %v2107
    %v2837 = vunpack.c.h.b16 %v2107
    %v2838 = vunpack.c.l.b16 %v2108
    %v2839 = vunpack.c.h.b16 %v2108
    %v2840 = vunpack.c.l.b16 %v2109
    %v2841 = vunpack.c.h.b16 %v2109
    %v2842 = vunpack.c.l.b16 %v2110
    %v2843 = vunpack.c.h.b16 %v2110
    %v2844 = vunpack.c.l.b16 %v2111
    %v2845 = vunpack.c.h.b16 %v2111
    %v2846 = vunpack.c.l.b16 %v2112
    %v2847 = vunpack.c.h.b16 %v2112
    %v2848 = vunpack.c.l.b16 %v2113
    %v2849 = vunpack.c.h.b16 %v2113
    %v2850 = vunpack.c.l.b16 %v2114
    %v2851 = vunpack.c.h.b16 %v2114
    %v2852 = vunpack.c.l.b16 %v2115
    %v2853 = vunpack.c.h.b16 %v2115
    %v2854 = vunpack.c.l.b16 %v2116
    %v2855 = vunpack.c.h.b16 %v2116
    %v2856 = vunpack.c.l.b16 %v2117
    %v2857 = vunpack.c.h.b16 %v2117
    %v2858 = vunpack.c.l.b16 %v2118
    %v2859 = vunpack.c.h.b16 %v2118
    %v2860 = vunpack.c.l.b16 %v2119
    %v2861 = vunpack.c.h.b16 %v2119
    %v2862 = vunpack.c.l.b16 %v2120
    %v2863 = vunpack.c.h.b16 %v2120
    %v2864 = vunpack.c.l.b16 %v2121
    %v2865 = vunpack.c.h.b16 %v2121
    %v2866 = vunpack.c.l.b16 %v2122
    %v2867 = vunpack.c.h.b16 %v2122
    %v2868 = vunpack.c.l.b16 %v2123
    %v2869 = vunpack.c.h.b16 %v2123
    %v2870 = vunpack.c.l.b16 %v2124
    %v2871 = vunpack.c.h.b16 %v2124
    %v2872 = vunpack.c.l.b16 %v2125
    %v2873 = vunpack.c.h.b16 %v2125
    %v2874 = vunpack.c.l.b16 %v2126
    %v2875 = vunpack.c.h.b16 %v2126
    %v2876 = vunpack.c.l.b16 %v2127
    %v2877 = vunpack.c.h.b16 %v2127
    %v2878 = vunpack.c.l.b16 %v2128
    %v2879 = vunpack.c.h.b16 %v2128
    %v2880 = vunpack.c.l.b16 %v2129
    %v2881 = vunpack.c.h.b16 %v2129
    %v2882 = vunpack.c.l.b16 %v2130
    %v2883 = vunpack.c.h.b16 %v2130
    %v2884 = vunpack.c.l.b16 %v2131
    %v2885 = vunpack.c.h.b16 %v2131
    %v2886 = vunpack.c.l.b16 %v2132
    %v2887 = vunpack.c.h.b16 %v2132
    %v2888 = vunpack.c.l.b16 %v2133
    %v2889 = vunpack.c.h.b16 %v2133
    %v2890 = vunpack.c.l.b16 %v2134
    %v2891 = vunpack.c.h.b16 %v2134
    %v2892 = vunpack.c.l.b16 %v2135
    %v2893 = vunpack.c.h.b16 %v2135
    %v2894 = vunpack.c.l.b16 %v2136
    %v2895 = vunpack.c.h.b16 %v2136
    %v2896 = vunpack.c.l.b16 %v2137
    %v2897 = vunpack.c.h.b16 %v2137
    %v2898 = vunpack.c.l.b16 %v2138
    %v2899 = vunpack.c.h.b16 %v2138
    %v2900 = vunpack.c.l.b16 %v2139
    %v2901 = vunpack.c.h.b16 %v2139
    %v2902 = vunpack.c.l.b16 %v2140
    %v2903 = vunpack.c.h.b16 %v2140
    %v2904 = vunpack.c.l.b16 %v2141
    %v2905 = vunpack.c.h.b16 %v2141
    %v2906 = vunpack.c.l.b16 %v2142
    %v2907 = vunpack.c.h.b16 %v2142
    %v2908 = vunpack.c.l.b16 %v2143
    %v2909 = vunpack.c.h.b16 %v2143
    %v2910 = vunpack.c.l.b16 %v2144
    %v2911 = vunpack.c.h.b16 %v2144
    %v2912 = vunpack.c.l.b16 %v2145
    %v2913 = vunpack.c.h.b16 %v2145
    %v2914 = vunpack.c.l.b16 %v2146
    %v2915 = vunpack.c.h.b16 %v2146
    %v2916 = vunpack.c.l.b16 %v2147
    %v2917 = vunpack.c.h.b16 %v2147
    %v2918 = vunpack.c.l.b16 %v2148
    %v2919 = vunpack.c.h.b16 %v2148
    %v2920 = vunpack.c.l.b16 %v2149
    %v2921 = vunpack.c.h.b16 %v2149
    %v2922 = vunpack.c.l.b16 %v2150
    %v2923 = vunpack.c.h.b16 %v2150
    %v2924 = vunpack.c.l.b16 %v2151
    %v2925 = vunpack.c.h.b16 %v2151
    %v2926 = vunpack.c.l.b16 %v2152
    %v2927 = vunpack.c.h.b16 %v2152
    %v2928 = vunpack.c.l.b16 %v2153
    %v2929 = vunpack.c.h.b16 %v2153
    %v2930 = vunpack.c.l.b16 %v2154
    %v2931 = vunpack.c.h.b16 %v2154
    %v2932 = vunpack.c.l.b16 %v2155
    %v2933 = vunpack.c.h.b16 %v2155
    %v2934 = vunpack.c.l.b16 %v2156
    %v2935 = vunpack.c.h.b16 %v2156
    %v2936 = vunpack.c.l.b16 %v2157
    %v2937 = vunpack.c.h.b16 %v2157
    %v2938 = vunpack.c.l.b16 %v2158
    %v2939 = vunpack.c.h.b16 %v2158
    %v2940 = vunpack.c.l.b16 %v2159
    %v2941 = vunpack.c.h.b16 %v2159
    %v2942 = vunpack.c.l.b16 %v2160
    %v2943 = vunpack.c.h.b16 %v2160
    %v2944 = vunpack.c.l.b16 %v2161
    %v2945 = vunpack.c.h.b16 %v2161
    %v2946 = vunpack.c.l.b16 %v2162
    %v2947 = vunpack.c.h.b16 %v2162
    %v2948 = vunpack.c.l.b16 %v2163
    %v2949 = vunpack.c.h.b16 %v2163
    %v2950 = vunpack.c.l.b16 %v2164
    %v2951 = vunpack.c.h.b16 %v2164
    %v2952 = vunpack.c.l.b16 %v2165
    %v2953 = vunpack.c.h.b16 %v2165
    %v2954 = vunpack.c.l.b16 %v2166
    %v2955 = vunpack.c.h.b16 %v2166
    %v2956 = vunpack.c.l.b16 %v2167
    %v2957 = vunpack.c.h.b16 %v2167
    %v2958 = vunpack.c.l.b16 %v2168
    %v2959 = vunpack.c.h.b16 %v2168
    %v2960 = vunpack.c.l.b16 %v2169
    %v2961 = vunpack.c.h.b16 %v2169
    %v2962 = vunpack.c.l.b16 %v2170
    %v2963 = vunpack.c.h.b16 %v2170
    %v2964 = vunpack.c.l.b16 %v2171
    %v2965 = vunpack.c.h.b16 %v2171
    %v2966 = vunpack.c.l.b16 %v2172
    %v2967 = vunpack.c.h.b16 %v2172
    %v2968 = vunpack.c.l.b16 %v2173
    %v2969 = vunpack.c.h.b16 %v2173
    %v2970 = vunpack.c.l.b16 %v2174
    %v2971 = vunpack.c.h.b16 %v2174
    %v2972 = vunpack.c.l.b16 %v2175
    %v2973 = vunpack.c.h.b16 %v2175
    %v2974 = vunpack.c.l.b16 %v2176
    %v2975 = vunpack.c.h.b16 %v2176
    %v2976 = vunpack.c.l.b16 %v2177
    %v2977 = vunpack.c.h.b16 %v2177
    %v2978 = vpack.c.b16 %v2726, %v2722
    %v2979 = vpack.c.b16 %v2727, %v2723
    %v2980 = vpack.c.b16 %v2728, %v2724
    %v2981 = vpack.c.b16 %v2729, %v2725
    %v2982 = vpack.c.b16 %v2734, %v2730
    %v2983 = vpack.c.b16 %v2735, %v2731
    %v2984 = vpack.c.b16 %v2736, %v2732
    %v2985 = vpack.c.b16 %v2737, %v2733
    %v2986 = vpack.c.b16 %v2742, %v2738
    %v2987 = vpack.c.b16 %v2743, %v2739
    %v2988 = vpack.c.b16 %v2744, %v2740
    %v2989 = vpack.c.b16 %v2745, %v2741
    %v2990 = vpack.c.b16 %v2750, %v2746
    %v2991 = vpack.c.b16 %v2751, %v2747
    %v2992 = vpack.c.b16 %v2752, %v2748
    %v2993 = vpack.c.b16 %v2753, %v2749
    %v2994 = vpack.c.b16 %v2758, %v2754
    %v2995 = vpack.c.b16 %v2759, %v2755
    %v2996 = vpack.c.b16 %v2760, %v2756
    %v2997 = vpack.c.b16 %v2761, %v2757
    %v2998 = vpack.c.b16 %v2766, %v2762
    %v2999 = vpack.c.b16 %v2767, %v2763
    %v3000 = vpack.c.b16 %v2768, %v2764
    %v3001 = vpack.c.b16 %v2769, %v2765
    %v3002 = vpack.c.b16 %v2774, %v2770
    %v3003 = vpack.c.b16 %v2775, %v2771
    %v3004 = vpack.c.b16 %v2776, %v2772
    %v3005 = vpack.c.b16 %v2777, %v2773
    %v3006 = vpack.c.b16 %v2782, %v2778
    %v3007 = vpack.c.b16 %v2783, %v2779
    %v3008 = vpack.c.b16 %v2784, %v2780
    %v3009 = vpack.c.b16 %v2785, %v2781
    %v3010 = vpack.c.b16 %v2790, %v2786
    %v3011 = vpack.c.b16 %v2791, %v2787
    %v3012 = vpack.c.b16 %v2792, %v2788
    %v3013 = vpack.c.b16 %v2793, %v2789
    %v3014 = vpack.c.b16 %v2798, %v2794
    %v3015 = vpack.c.b16 %v2799, %v2795
    %v3016 = vpack.c.b16 %v2800, %v2796
    %v3017 = vpack.c.b16 %v2801, %v2797
    %v3018 = vpack.c.b16 %v2806, %v2802
    %v3019 = vpack.c.b16 %v2807, %v2803
    %v3020 = vpack.c.b16 %v2808, %v2804
    %v3021 = vpack.c.b16 %v2809, %v2805
    %v3022 = vpack.c.b16 %v2814, %v2810
    %v3023 = vpack.c.b16 %v2815, %v2811
    %v3024 = vpack.c.b16 %v2816, %v2812
    %v3025 = vpack.c.b16 %v2817, %v2813
    %v3026 = vpack.c.b16 %v2822, %v2818
    %v3027 = vpack.c.b16 %v2823, %v2819
    %v3028 = vpack.c.b16 %v2824, %v2820
    %v3029 = vpack.c.b16 %v2825, %v2821
    %v3030 = vpack.c.b16 %v2830, %v2826
    %v3031 = vpack.c.b16 %v2831, %v2827
    %v3032 = vpack.c.b16 %v2832, %v2828
    %v3033 = vpack.c.b16 %v2833, %v2829
    %v3034 = vpack.c.b16 %v2838, %v2834
    %v3035 = vpack.c.b16 %v2839, %v2835
    %v3036 = vpack.c.b16 %v2840, %v2836
    %v3037 = vpack.c.b16 %v2841, %v2837
    %v3038 = vpack.c.b16 %v2846, %v2842
    %v3039 = vpack.c.b16 %v2847, %v2843
    %v3040 = vpack.c.b16 %v2848, %v2844
    %v3041 = vpack.c.b16 %v2849, %v2845
    %v3042 = vpack.c.b16 %v2854, %v2850
    %v3043 = vpack.c.b16 %v2855, %v2851
    %v3044 = vpack.c.b16 %v2856, %v2852
    %v3045 = vpack.c.b16 %v2857, %v2853
    %v3046 = vpack.c.b16 %v2862, %v2858
    %v3047 = vpack.c.b16 %v2863, %v2859
    %v3048 = vpack.c.b16 %v2864, %v2860
    %v3049 = vpack.c.b16 %v2865, %v2861
    %v3050 = vpack.c.b16 %v2870, %v2866
    %v3051 = vpack.c.b16 %v2871, %v2867
    %v3052 = vpack.c.b16 %v2872, %v2868
    %v3053 = vpack.c.b16 %v2873, %v2869
    %v3054 = vpack.c.b16 %v2878, %v2874
    %v3055 = vpack.c.b16 %v2879, %v2875
    %v3056 = vpack.c.b16 %v2880, %v2876
    %v3057 = vpack.c.b16 %v2881, %v2877
    %v3058 = vpack.c.b16 %v2886, %v2882
    %v3059 = vpack.c.b16 %v2887, %v2883
    %v3060 = vpack.c.b16 %v2888, %v2884
    %v3061 = vpack.c.b16 %v2889, %v2885
    %v3062 = vpack.c.b16 %v2894, %v2890
    %v3063 = vpack.c.b16 %v2895, %v2891
    %v3064 = vpack.c.b16 %v2896, %v2892
    %v3065 = vpack.c.b16 %v2897, %v2893
    %v3066 = vpack.c.b16 %v2902, %v2898
    %v3067 = vpack.c.b16 %v2903, %v2899
    %v3068 = vpack.c.b16 %v2904, %v2900
    %v3069 = vpack.c.b16 %v2905, %v2901
    %v3070 = vpack.c.b16 %v2910, %v2906
    %v3071 = vpack.c.b16 %v2911, %v2907
    %v3072 = vpack.c.b16 %v2912, %v2908
    %v3073 = vpack.c.b16 %v2913, %v2909
    %v3074 = vpack.c.b16 %v2918, %v2914
    %v3075 = vpack.c.b16 %v2919, %v2915
    %v3076 = vpack.c.b16 %v2920, %v2916
    %v3077 = vpack.c.b16 %v2921, %v2917
    %v3078 = vpack.c.b16 %v2926, %v2922
    %v3079 = vpack.c.b16 %v2927, %v2923
    %v3080 = vpack.c.b16 %v2928, %v2924
    %v3081 = vpack.c.b16 %v2929, %v2925
    %v3082 = vpack.c.b16 %v2934, %v2930
    %v3083 = vpack.c.b16 %v2935, %v2931
    %v3084 = vpack.c.b16 %v2936, %v2932
    %v3085 = vpack.c.b16 %v2937, %v2933
    %v3086 = vpack.c.b16 %v2942, %v2938
    %v3087 = vpack.c.b16 %v2943, %v2939
    %v3088 = vpack.c.b16 %v2944, %v2940
    %v3089 = vpack.c.b16 %v2945, %v2941
    %v3090 = vpack.c.b16 %v2950, %v2946
    %v3091 = vpack.c.b16 %v2951, %v2947
    %v3092 = vpack.c.b16 %v2952, %v2948
    %v3093 = vpack.c.b16 %v2953, %v2949
    %v3094 = vpack.c.b16 %v2958, %v2954
    %v3095 = vpack.c.b16 %v2959, %v2955
    %v3096 = vpack.c.b16 %v2960, %v2956
    %v3097 = vpack.c.b16 %v2961, %v2957
    %v3098 = vpack.c.b16 %v2966, %v2962
    %v3099 = vpack.c.b16 %v2967, %v2963
    %v3100 = vpack.c.b16 %v2968, %v2964
    %v3101 = vpack.c.b16 %v2969, %v2965
    %v3102 = vpack.c.b16 %v2974, %v2970
    %v3103 = vpack.c.b16 %v2975, %v2971
    %v3104 = vpack.c.b16 %v2976, %v2972
    %v3105 = vpack.c.b16 %v2977, %v2973
    %3234 = vmatprep.subr.bf16.mxu0 0
    %3235 = vmatpush1.bf16.msra.mxu0 %v2185
    %3236 = vmatprep.subr.bf16.mxu0 0
    %3237 = vmatpush1.bf16.msra.mxu0 %v2184
    %3238 = vmatprep.subr.bf16.mxu0 0
    %3239 = vmatpush1.bf16.msra.mxu0 %v2183
    %3240 = vmatprep.subr.bf16.mxu0 0
    %3241 = vmatpush1.bf16.msra.mxu0 %v2182
    %3242 = vmatprep.subr.bf16.mxu0 0
    %3243 = vmatpush1.bf16.msra.mxu0 %v2181
    %3244 = vmatprep.subr.bf16.mxu0 0
    %3245 = vmatpush1.bf16.msra.mxu0 %v2180
    %3246 = vmatprep.subr.bf16.mxu0 0
    %3247 = vmatpush1.bf16.msra.mxu0 %v2179
    %3248 = vmatprep.subr.bf16.mxu0 0
    %3249 = vmatpush1.bf16.msra.mxu0 %v2178
    %3250 = vmatprep.subr.bf16.mxu0 0
    %3251 = vmatpush2.bf16.msra.mxu0 %v2193
    %3252 = vmatprep.subr.bf16.mxu0 0
    %3253 = vmatpush2.bf16.msra.mxu0 %v2192
    %3254 = vmatprep.subr.bf16.mxu0 0
    %3255 = vmatpush2.bf16.msra.mxu0 %v2191
    %3256 = vmatprep.subr.bf16.mxu0 0
    %3257 = vmatpush2.bf16.msra.mxu0 %v2190
    %3258 = vmatprep.subr.bf16.mxu0 0
    %3259 = vmatpush2.bf16.msra.mxu0 %v2189
    %3260 = vmatprep.subr.bf16.mxu0 0
    %3261 = vmatpush2.bf16.msra.mxu0 %v2188
    %3262 = vmatprep.subr.bf16.mxu0 0
    %3263 = vmatpush2.bf16.msra.mxu0 %v2187
    %3264 = vmatprep.subr.bf16.mxu0 0
    %3265 = vmatpush2.bf16.msra.mxu0 %v2186
    %3266 = vmatprep.mubr.bf16.mxu0 %v2979
    %3267 = vmatmul.mubr.bf16.gmra.mxu0 %v2978
    %v3268 = vpop.f32.mrf.mxu0
    %v3269 = vadd.f32 %v2277, %v3268
    %v3270 = vpop.f32.mrf.mxu0
    %v3271 = vpop.f32.mrf.mxu0
    %v3272 = vadd.f32 %v2282, %v3271
    %v3273 = vpop.f32.mrf.mxu0
    %3274 = vmatprep.mubr.bf16.mxu0 %v2983
    %3275 = vmatmul.mubr.bf16.gmra.mxu0 %v2982
    %v3276 = vpop.f32.mrf.mxu0
    %v3277 = vadd.f32 %v2287, %v3276
    %v3278 = vpop.f32.mrf.mxu0
    %v3279 = vpop.f32.mrf.mxu0
    %v3280 = vadd.f32 %v2292, %v3279
    %v3281 = vpop.f32.mrf.mxu0
    %3282 = vmatprep.mubr.bf16.mxu0 %v2987
    %3283 = vmatmul.mubr.bf16.gmra.mxu0 %v2986
    %v3284 = vpop.f32.mrf.mxu0
    %v3285 = vadd.f32 %v2297, %v3284
    %v3286 = vpop.f32.mrf.mxu0
    %v3287 = vpop.f32.mrf.mxu0
    %v3288 = vadd.f32 %v2302, %v3287
    %v3289 = vpop.f32.mrf.mxu0
    %3290 = vmatprep.mubr.bf16.mxu0 %v2991
    %3291 = vmatmul.mubr.bf16.gmra.mxu0 %v2990
    %v3292 = vpop.f32.mrf.mxu0
    %v3293 = vadd.f32 %v2307, %v3292
    %v3294 = vpop.f32.mrf.mxu0
    %v3295 = vpop.f32.mrf.mxu0
    %v3296 = vadd.f32 %v2312, %v3295
    %v3297 = vpop.f32.mrf.mxu0
    %3298 = vmatprep.mubr.bf16.mxu0 %v2995
    %3299 = vmatmul.mubr.bf16.gmra.mxu0 %v2994
    %v3300 = vpop.f32.mrf.mxu0
    %v3301 = vadd.f32 %v2317, %v3300
    %v3302 = vpop.f32.mrf.mxu0
    %v3303 = vpop.f32.mrf.mxu0
    %v3304 = vadd.f32 %v2322, %v3303
    %v3305 = vpop.f32.mrf.mxu0
    %3306 = vmatprep.mubr.bf16.mxu0 %v2999
    %3307 = vmatmul.mubr.bf16.gmra.mxu0 %v2998
    %v3308 = vpop.f32.mrf.mxu0
    %v3309 = vadd.f32 %v2327, %v3308
    %v3310 = vpop.f32.mrf.mxu0
    %v3311 = vpop.f32.mrf.mxu0
    %v3312 = vadd.f32 %v2332, %v3311
    %v3313 = vpop.f32.mrf.mxu0
    %3314 = vmatprep.mubr.bf16.mxu0 %v3003
    %3315 = vmatmul.mubr.bf16.gmra.mxu0 %v3002
    %v3316 = vpop.f32.mrf.mxu0
    %v3317 = vadd.f32 %v2337, %v3316
    %v3318 = vpop.f32.mrf.mxu0
    %v3319 = vpop.f32.mrf.mxu0
    %v3320 = vadd.f32 %v2342, %v3319
    %v3321 = vpop.f32.mrf.mxu0
    %3322 = vmatprep.mubr.bf16.mxu0 %v3007
    %3323 = vmatmul.mubr.bf16.gmra.mxu0 %v3006
    %v3324 = vpop.f32.mrf.mxu0
    %v3325 = vadd.f32 %v2347, %v3324
    %v3326 = vpop.f32.mrf.mxu0
    %v3327 = vpop.f32.mrf.mxu0
    %v3328 = vadd.f32 %v2352, %v3327
    %v3329 = vpop.f32.mrf.mxu0
    %3330 = vmatprep.mubr.bf16.mxu0 %v3011
    %3331 = vmatmul.mubr.bf16.gmra.mxu0 %v3010
    %v3332 = vpop.f32.mrf.mxu0
    %v3333 = vadd.f32 %v2357, %v3332
    %v3334 = vpop.f32.mrf.mxu0
    %v3335 = vpop.f32.mrf.mxu0
    %v3336 = vadd.f32 %v2362, %v3335
    %v3337 = vpop.f32.mrf.mxu0
    %3338 = vmatprep.mubr.bf16.mxu0 %v3015
    %3339 = vmatmul.mubr.bf16.gmra.mxu0 %v3014
    %v3340 = vpop.f32.mrf.mxu0
    %v3341 = vadd.f32 %v2367, %v3340
    %v3342 = vpop.f32.mrf.mxu0
    %v3343 = vpop.f32.mrf.mxu0
    %v3344 = vadd.f32 %v2372, %v3343
    %v3345 = vpop.f32.mrf.mxu0
    %3346 = vmatprep.mubr.bf16.mxu0 %v3019
    %3347 = vmatmul.mubr.bf16.gmra.mxu0 %v3018
    %v3348 = vpop.f32.mrf.mxu0
    %v3349 = vadd.f32 %v2377, %v3348
    %v3350 = vpop.f32.mrf.mxu0
    %v3351 = vpop.f32.mrf.mxu0
    %v3352 = vadd.f32 %v2382, %v3351
    %v3353 = vpop.f32.mrf.mxu0
    %3354 = vmatprep.mubr.bf16.mxu0 %v3023
    %3355 = vmatmul.mubr.bf16.gmra.mxu0 %v3022
    %v3356 = vpop.f32.mrf.mxu0
    %v3357 = vadd.f32 %v2387, %v3356
    %v3358 = vpop.f32.mrf.mxu0
    %v3359 = vpop.f32.mrf.mxu0
    %v3360 = vadd.f32 %v2392, %v3359
    %v3361 = vpop.f32.mrf.mxu0
    %3362 = vmatprep.mubr.bf16.mxu0 %v3027
    %3363 = vmatmul.mubr.bf16.gmra.mxu0 %v3026
    %v3364 = vpop.f32.mrf.mxu0
    %v3365 = vadd.f32 %v2397, %v3364
    %v3366 = vpop.f32.mrf.mxu0
    %v3367 = vpop.f32.mrf.mxu0
    %v3368 = vadd.f32 %v2402, %v3367
    %v3369 = vpop.f32.mrf.mxu0
    %3370 = vmatprep.mubr.bf16.mxu0 %v3031
    %3371 = vmatmul.mubr.bf16.gmra.mxu0 %v3030
    %v3372 = vpop.f32.mrf.mxu0
    %v3373 = vadd.f32 %v2407, %v3372
    %v3374 = vpop.f32.mrf.mxu0
    %v3375 = vpop.f32.mrf.mxu0
    %v3376 = vadd.f32 %v2412, %v3375
    %v3377 = vpop.f32.mrf.mxu0
    %3378 = vmatprep.mubr.bf16.mxu0 %v3035
    %3379 = vmatmul.mubr.bf16.gmra.mxu0 %v3034
    %v3380 = vpop.f32.mrf.mxu0
    %v3381 = vadd.f32 %v2417, %v3380
    %v3382 = vpop.f32.mrf.mxu0
    %v3383 = vpop.f32.mrf.mxu0
    %v3384 = vadd.f32 %v2422, %v3383
    %v3385 = vpop.f32.mrf.mxu0
    %3386 = vmatprep.mubr.bf16.mxu0 %v3039
    %3387 = vmatmul.mubr.bf16.gmra.mxu0 %v3038
    %v3388 = vpop.f32.mrf.mxu0
    %v3389 = vadd.f32 %v2427, %v3388
    %v3390 = vpop.f32.mrf.mxu0
    %v3391 = vpop.f32.mrf.mxu0
    %v3392 = vadd.f32 %v2432, %v3391
    %v3393 = vpop.f32.mrf.mxu0
    %3394 = vmatprep.mubr.bf16.mxu0 %v3043
    %3395 = vmatmul.mubr.bf16.gmra.mxu0 %v3042
    %v3396 = vpop.f32.mrf.mxu0
    %v3397 = vadd.f32 %v2437, %v3396
    %v3398 = vpop.f32.mrf.mxu0
    %v3399 = vpop.f32.mrf.mxu0
    %v3400 = vadd.f32 %v2442, %v3399
    %v3401 = vpop.f32.mrf.mxu0
    %3402 = vmatprep.mubr.bf16.mxu0 %v3047
    %3403 = vmatmul.mubr.bf16.gmra.mxu0 %v3046
    %v3404 = vpop.f32.mrf.mxu0
    %v3405 = vadd.f32 %v2447, %v3404
    %v3406 = vpop.f32.mrf.mxu0
    %v3407 = vpop.f32.mrf.mxu0
    %v3408 = vadd.f32 %v2452, %v3407
    %v3409 = vpop.f32.mrf.mxu0
    %3410 = vmatprep.mubr.bf16.mxu0 %v3051
    %3411 = vmatmul.mubr.bf16.gmra.mxu0 %v3050
    %v3412 = vpop.f32.mrf.mxu0
    %v3413 = vadd.f32 %v2457, %v3412
    %v3414 = vpop.f32.mrf.mxu0
    %v3415 = vpop.f32.mrf.mxu0
    %v3416 = vadd.f32 %v2462, %v3415
    %v3417 = vpop.f32.mrf.mxu0
    %3418 = vmatprep.mubr.bf16.mxu0 %v3055
    %3419 = vmatmul.mubr.bf16.gmra.mxu0 %v3054
    %v3420 = vpop.f32.mrf.mxu0
    %v3421 = vadd.f32 %v2467, %v3420
    %v3422 = vpop.f32.mrf.mxu0
    %v3423 = vpop.f32.mrf.mxu0
    %v3424 = vadd.f32 %v2472, %v3423
    %v3425 = vpop.f32.mrf.mxu0
    %3426 = vmatprep.mubr.bf16.mxu0 %v3059
    %3427 = vmatmul.mubr.bf16.gmra.mxu0 %v3058
    %v3428 = vpop.f32.mrf.mxu0
    %v3429 = vadd.f32 %v2477, %v3428
    %v3430 = vpop.f32.mrf.mxu0
    %v3431 = vpop.f32.mrf.mxu0
    %v3432 = vadd.f32 %v2482, %v3431
    %v3433 = vpop.f32.mrf.mxu0
    %3434 = vmatprep.mubr.bf16.mxu0 %v3063
    %3435 = vmatmul.mubr.bf16.gmra.mxu0 %v3062
    %v3436 = vpop.f32.mrf.mxu0
    %v3437 = vadd.f32 %v2487, %v3436
    %v3438 = vpop.f32.mrf.mxu0
    %v3439 = vpop.f32.mrf.mxu0
    %v3440 = vadd.f32 %v2492, %v3439
    %v3441 = vpop.f32.mrf.mxu0
    %3442 = vmatprep.mubr.bf16.mxu0 %v3067
    %3443 = vmatmul.mubr.bf16.gmra.mxu0 %v3066
    %v3444 = vpop.f32.mrf.mxu0
    %v3445 = vadd.f32 %v2497, %v3444
    %v3446 = vpop.f32.mrf.mxu0
    %v3447 = vpop.f32.mrf.mxu0
    %v3448 = vadd.f32 %v2502, %v3447
    %v3449 = vpop.f32.mrf.mxu0
    %3450 = vmatprep.mubr.bf16.mxu0 %v3071
    %3451 = vmatmul.mubr.bf16.gmra.mxu0 %v3070
    %v3452 = vpop.f32.mrf.mxu0
    %v3453 = vadd.f32 %v2507, %v3452
    %v3454 = vpop.f32.mrf.mxu0
    %v3455 = vpop.f32.mrf.mxu0
    %v3456 = vadd.f32 %v2512, %v3455
    %v3457 = vpop.f32.mrf.mxu0
    %3458 = vmatprep.mubr.bf16.mxu0 %v3075
    %3459 = vmatmul.mubr.bf16.gmra.mxu0 %v3074
    %v3460 = vpop.f32.mrf.mxu0
    %v3461 = vadd.f32 %v2517, %v3460
    %v3462 = vpop.f32.mrf.mxu0
    %v3463 = vpop.f32.mrf.mxu0
    %v3464 = vadd.f32 %v2522, %v3463
    %v3465 = vpop.f32.mrf.mxu0
    %3466 = vmatprep.mubr.bf16.mxu0 %v3079
    %3467 = vmatmul.mubr.bf16.gmra.mxu0 %v3078
    %v3468 = vpop.f32.mrf.mxu0
    %v3469 = vadd.f32 %v2527, %v3468
    %v3470 = vpop.f32.mrf.mxu0
    %v3471 = vpop.f32.mrf.mxu0
    %v3472 = vadd.f32 %v2532, %v3471
    %v3473 = vpop.f32.mrf.mxu0
    %3474 = vmatprep.mubr.bf16.mxu0 %v3083
    %3475 = vmatmul.mubr.bf16.gmra.mxu0 %v3082
    %v3476 = vpop.f32.mrf.mxu0
    %v3477 = vadd.f32 %v2537, %v3476
    %v3478 = vpop.f32.mrf.mxu0
    %v3479 = vpop.f32.mrf.mxu0
    %v3480 = vadd.f32 %v2542, %v3479
    %v3481 = vpop.f32.mrf.mxu0
    %3482 = vmatprep.mubr.bf16.mxu0 %v3087
    %3483 = vmatmul.mubr.bf16.gmra.mxu0 %v3086
    %v3484 = vpop.f32.mrf.mxu0
    %v3485 = vadd.f32 %v2547, %v3484
    %v3486 = vpop.f32.mrf.mxu0
    %v3487 = vpop.f32.mrf.mxu0
    %v3488 = vadd.f32 %v2552, %v3487
    %v3489 = vpop.f32.mrf.mxu0
    %3490 = vmatprep.mubr.bf16.mxu0 %v3091
    %3491 = vmatmul.mubr.bf16.gmra.mxu0 %v3090
    %v3492 = vpop.f32.mrf.mxu0
    %v3493 = vadd.f32 %v2557, %v3492
    %v3494 = vpop.f32.mrf.mxu0
    %v3495 = vpop.f32.mrf.mxu0
    %v3496 = vadd.f32 %v2562, %v3495
    %v3497 = vpop.f32.mrf.mxu0
    %3498 = vmatprep.mubr.bf16.mxu0 %v3095
    %3499 = vmatmul.mubr.bf16.gmra.mxu0 %v3094
    %v3500 = vpop.f32.mrf.mxu0
    %v3501 = vadd.f32 %v2567, %v3500
    %v3502 = vpop.f32.mrf.mxu0
    %v3503 = vpop.f32.mrf.mxu0
    %v3504 = vadd.f32 %v2572, %v3503
    %v3505 = vpop.f32.mrf.mxu0
    %3506 = vmatprep.mubr.bf16.mxu0 %v3099
    %3507 = vmatmul.mubr.bf16.gmra.mxu0 %v3098
    %v3508 = vpop.f32.mrf.mxu0
    %v3509 = vadd.f32 %v2577, %v3508
    %v3510 = vpop.f32.mrf.mxu0
    %v3511 = vpop.f32.mrf.mxu0
    %v3512 = vadd.f32 %v2582, %v3511
    %v3513 = vpop.f32.mrf.mxu0
    %3514 = vmatprep.mubr.bf16.mxu0 %v3103
    %3515 = vmatmul.mubr.bf16.gmra.mxu0 %v3102
    %v3516 = vpop.f32.mrf.mxu0
    %v3517 = vadd.f32 %v2587, %v3516
    %v3518 = vpop.f32.mrf.mxu0
    %v3519 = vpop.f32.mrf.mxu0
    %v3520 = vadd.f32 %v2592, %v3519
    %v3521 = vpop.f32.mrf.mxu0
    %3522 = vdwg.mxu0
    %3523 = vmatprep.subr.bf16.mxu0 0
    %3524 = vmatpush1.bf16.msra.mxu0 %v2201
    %3525 = vmatprep.subr.bf16.mxu0 0
    %3526 = vmatpush1.bf16.msra.mxu0 %v2200
    %3527 = vmatprep.subr.bf16.mxu0 0
    %3528 = vmatpush1.bf16.msra.mxu0 %v2199
    %3529 = vmatprep.subr.bf16.mxu0 0
    %3530 = vmatpush1.bf16.msra.mxu0 %v2198
    %3531 = vmatprep.subr.bf16.mxu0 0
    %3532 = vmatpush1.bf16.msra.mxu0 %v2197
    %3533 = vmatprep.subr.bf16.mxu0 0
    %3534 = vmatpush1.bf16.msra.mxu0 %v2196
    %3535 = vmatprep.subr.bf16.mxu0 0
    %3536 = vmatpush1.bf16.msra.mxu0 %v2195
    %3537 = vmatprep.subr.bf16.mxu0 0
    %3538 = vmatpush1.bf16.msra.mxu0 %v2194
    %3539 = vmatprep.subr.bf16.mxu0 0
    %3540 = vmatpush2.bf16.msra.mxu0 %v2209
    %3541 = vmatprep.subr.bf16.mxu0 0
    %3542 = vmatpush2.bf16.msra.mxu0 %v2208
    %3543 = vmatprep.subr.bf16.mxu0 0
    %3544 = vmatpush2.bf16.msra.mxu0 %v2207
    %3545 = vmatprep.subr.bf16.mxu0 0
    %3546 = vmatpush2.bf16.msra.mxu0 %v2206
    %3547 = vmatprep.subr.bf16.mxu0 0
    %3548 = vmatpush2.bf16.msra.mxu0 %v2205
    %3549 = vmatprep.subr.bf16.mxu0 0
    %3550 = vmatpush2.bf16.msra.mxu0 %v2204
    %3551 = vmatprep.subr.bf16.mxu0 0
    %3552 = vmatpush2.bf16.msra.mxu0 %v2203
    %3553 = vmatprep.subr.bf16.mxu0 0
    %3554 = vmatpush2.bf16.msra.mxu0 %v2202
    %3555 = vmatprep.mubr.bf16.mxu0 %v2981
    %3556 = vmatmul.mubr.bf16.gmra.mxu0 %v2980
    %v3557 = vpop.f32.mrf.mxu0
    %v3558 = vadd.f32 %v3269, %v3557
    %v3559 = vpop.f32.mrf.mxu0
    %v3560 = vpop.f32.mrf.mxu0
    %v3561 = vadd.f32 %v3272, %v3560
    %v3562 = vpop.f32.mrf.mxu0
    %3563 = vmatprep.mubr.bf16.mxu0 %v2985
    %3564 = vmatmul.mubr.bf16.gmra.mxu0 %v2984
    %v3565 = vpop.f32.mrf.mxu0
    %v3566 = vadd.f32 %v3277, %v3565
    %v3567 = vpop.f32.mrf.mxu0
    %v3568 = vpop.f32.mrf.mxu0
    %v3569 = vadd.f32 %v3280, %v3568
    %v3570 = vpop.f32.mrf.mxu0
    %3571 = vmatprep.mubr.bf16.mxu0 %v2989
    %3572 = vmatmul.mubr.bf16.gmra.mxu0 %v2988
    %v3573 = vpop.f32.mrf.mxu0
    %v3574 = vadd.f32 %v3285, %v3573
    %v3575 = vpop.f32.mrf.mxu0
    %v3576 = vpop.f32.mrf.mxu0
    %v3577 = vadd.f32 %v3288, %v3576
    %v3578 = vpop.f32.mrf.mxu0
    %3579 = vmatprep.mubr.bf16.mxu0 %v2993
    %3580 = vmatmul.mubr.bf16.gmra.mxu0 %v2992
    %v3581 = vpop.f32.mrf.mxu0
    %v3582 = vadd.f32 %v3293, %v3581
    %v3583 = vpop.f32.mrf.mxu0
    %v3584 = vpop.f32.mrf.mxu0
    %v3585 = vadd.f32 %v3296, %v3584
    %v3586 = vpop.f32.mrf.mxu0
    %3587 = vmatprep.mubr.bf16.mxu0 %v2997
    %3588 = vmatmul.mubr.bf16.gmra.mxu0 %v2996
    %v3589 = vpop.f32.mrf.mxu0
    %v3590 = vadd.f32 %v3301, %v3589
    %v3591 = vpop.f32.mrf.mxu0
    %v3592 = vpop.f32.mrf.mxu0
    %v3593 = vadd.f32 %v3304, %v3592
    %v3594 = vpop.f32.mrf.mxu0
    %3595 = vmatprep.mubr.bf16.mxu0 %v3001
    %3596 = vmatmul.mubr.bf16.gmra.mxu0 %v3000
    %v3597 = vpop.f32.mrf.mxu0
    %v3598 = vadd.f32 %v3309, %v3597
    %v3599 = vpop.f32.mrf.mxu0
    %v3600 = vpop.f32.mrf.mxu0
    %v3601 = vadd.f32 %v3312, %v3600
    %v3602 = vpop.f32.mrf.mxu0
    %3603 = vmatprep.mubr.bf16.mxu0 %v3005
    %3604 = vmatmul.mubr.bf16.gmra.mxu0 %v3004
    %v3605 = vpop.f32.mrf.mxu0
    %v3606 = vadd.f32 %v3317, %v3605
    %v3607 = vpop.f32.mrf.mxu0
    %v3608 = vpop.f32.mrf.mxu0
    %v3609 = vadd.f32 %v3320, %v3608
    %v3610 = vpop.f32.mrf.mxu0
    %3611 = vmatprep.mubr.bf16.mxu0 %v3009
    %3612 = vmatmul.mubr.bf16.gmra.mxu0 %v3008
    %v3613 = vpop.f32.mrf.mxu0
    %v3614 = vadd.f32 %v3325, %v3613
    %v3615 = vpop.f32.mrf.mxu0
    %v3616 = vpop.f32.mrf.mxu0
    %v3617 = vadd.f32 %v3328, %v3616
    %v3618 = vpop.f32.mrf.mxu0
    %3619 = vmatprep.mubr.bf16.mxu0 %v3013
    %3620 = vmatmul.mubr.bf16.gmra.mxu0 %v3012
    %v3621 = vpop.f32.mrf.mxu0
    %v3622 = vadd.f32 %v3333, %v3621
    %v3623 = vpop.f32.mrf.mxu0
    %v3624 = vpop.f32.mrf.mxu0
    %v3625 = vadd.f32 %v3336, %v3624
    %v3626 = vpop.f32.mrf.mxu0
    %3627 = vmatprep.mubr.bf16.mxu0 %v3017
    %3628 = vmatmul.mubr.bf16.gmra.mxu0 %v3016
    %v3629 = vpop.f32.mrf.mxu0
    %v3630 = vadd.f32 %v3341, %v3629
    %v3631 = vpop.f32.mrf.mxu0
    %v3632 = vpop.f32.mrf.mxu0
    %v3633 = vadd.f32 %v3344, %v3632
    %v3634 = vpop.f32.mrf.mxu0
    %3635 = vmatprep.mubr.bf16.mxu0 %v3021
    %3636 = vmatmul.mubr.bf16.gmra.mxu0 %v3020
    %v3637 = vpop.f32.mrf.mxu0
    %v3638 = vadd.f32 %v3349, %v3637
    %v3639 = vpop.f32.mrf.mxu0
    %v3640 = vpop.f32.mrf.mxu0
    %v3641 = vadd.f32 %v3352, %v3640
    %v3642 = vpop.f32.mrf.mxu0
    %3643 = vmatprep.mubr.bf16.mxu0 %v3025
    %3644 = vmatmul.mubr.bf16.gmra.mxu0 %v3024
    %v3645 = vpop.f32.mrf.mxu0
    %v3646 = vadd.f32 %v3357, %v3645
    %v3647 = vpop.f32.mrf.mxu0
    %v3648 = vpop.f32.mrf.mxu0
    %v3649 = vadd.f32 %v3360, %v3648
    %v3650 = vpop.f32.mrf.mxu0
    %3651 = vmatprep.mubr.bf16.mxu0 %v3029
    %3652 = vmatmul.mubr.bf16.gmra.mxu0 %v3028
    %v3653 = vpop.f32.mrf.mxu0
    %v3654 = vadd.f32 %v3365, %v3653
    %v3655 = vpop.f32.mrf.mxu0
    %v3656 = vpop.f32.mrf.mxu0
    %v3657 = vadd.f32 %v3368, %v3656
    %v3658 = vpop.f32.mrf.mxu0
    %3659 = vmatprep.mubr.bf16.mxu0 %v3033
    %3660 = vmatmul.mubr.bf16.gmra.mxu0 %v3032
    %v3661 = vpop.f32.mrf.mxu0
    %v3662 = vadd.f32 %v3373, %v3661
    %v3663 = vpop.f32.mrf.mxu0
    %v3664 = vpop.f32.mrf.mxu0
    %v3665 = vadd.f32 %v3376, %v3664
    %v3666 = vpop.f32.mrf.mxu0
    %3667 = vmatprep.mubr.bf16.mxu0 %v3037
    %3668 = vmatmul.mubr.bf16.gmra.mxu0 %v3036
    %v3669 = vpop.f32.mrf.mxu0
    %v3670 = vadd.f32 %v3381, %v3669
    %v3671 = vpop.f32.mrf.mxu0
    %v3672 = vpop.f32.mrf.mxu0
    %v3673 = vadd.f32 %v3384, %v3672
    %v3674 = vpop.f32.mrf.mxu0
    %3675 = vmatprep.mubr.bf16.mxu0 %v3041
    %3676 = vmatmul.mubr.bf16.gmra.mxu0 %v3040
    %v3677 = vpop.f32.mrf.mxu0
    %v3678 = vadd.f32 %v3389, %v3677
    %v3679 = vpop.f32.mrf.mxu0
    %v3680 = vpop.f32.mrf.mxu0
    %v3681 = vadd.f32 %v3392, %v3680
    %v3682 = vpop.f32.mrf.mxu0
    %3683 = vmatprep.mubr.bf16.mxu0 %v3045
    %3684 = vmatmul.mubr.bf16.gmra.mxu0 %v3044
    %v3685 = vpop.f32.mrf.mxu0
    %v3686 = vadd.f32 %v3397, %v3685
    %v3687 = vpop.f32.mrf.mxu0
    %v3688 = vpop.f32.mrf.mxu0
    %v3689 = vadd.f32 %v3400, %v3688
    %v3690 = vpop.f32.mrf.mxu0
    %3691 = vmatprep.mubr.bf16.mxu0 %v3049
    %3692 = vmatmul.mubr.bf16.gmra.mxu0 %v3048
    %v3693 = vpop.f32.mrf.mxu0
    %v3694 = vadd.f32 %v3405, %v3693
    %v3695 = vpop.f32.mrf.mxu0
    %v3696 = vpop.f32.mrf.mxu0
    %v3697 = vadd.f32 %v3408, %v3696
    %v3698 = vpop.f32.mrf.mxu0
    %3699 = vmatprep.mubr.bf16.mxu0 %v3053
    %3700 = vmatmul.mubr.bf16.gmra.mxu0 %v3052
    %v3701 = vpop.f32.mrf.mxu0
    %v3702 = vadd.f32 %v3413, %v3701
    %v3703 = vpop.f32.mrf.mxu0
    %v3704 = vpop.f32.mrf.mxu0
    %v3705 = vadd.f32 %v3416, %v3704
    %v3706 = vpop.f32.mrf.mxu0
    %3707 = vmatprep.mubr.bf16.mxu0 %v3057
    %3708 = vmatmul.mubr.bf16.gmra.mxu0 %v3056
    %v3709 = vpop.f32.mrf.mxu0
    %v3710 = vadd.f32 %v3421, %v3709
    %v3711 = vpop.f32.mrf.mxu0
    %v3712 = vpop.f32.mrf.mxu0
    %v3713 = vadd.f32 %v3424, %v3712
    %v3714 = vpop.f32.mrf.mxu0
    %3715 = vmatprep.mubr.bf16.mxu0 %v3061
    %3716 = vmatmul.mubr.bf16.gmra.mxu0 %v3060
    %v3717 = vpop.f32.mrf.mxu0
    %v3718 = vadd.f32 %v3429, %v3717
    %v3719 = vpop.f32.mrf.mxu0
    %v3720 = vpop.f32.mrf.mxu0
    %v3721 = vadd.f32 %v3432, %v3720
    %v3722 = vpop.f32.mrf.mxu0
    %3723 = vmatprep.mubr.bf16.mxu0 %v3065
    %3724 = vmatmul.mubr.bf16.gmra.mxu0 %v3064
    %v3725 = vpop.f32.mrf.mxu0
    %v3726 = vadd.f32 %v3437, %v3725
    %v3727 = vpop.f32.mrf.mxu0
    %v3728 = vpop.f32.mrf.mxu0
    %v3729 = vadd.f32 %v3440, %v3728
    %v3730 = vpop.f32.mrf.mxu0
    %3731 = vmatprep.mubr.bf16.mxu0 %v3069
    %3732 = vmatmul.mubr.bf16.gmra.mxu0 %v3068
    %v3733 = vpop.f32.mrf.mxu0
    %v3734 = vadd.f32 %v3445, %v3733
    %v3735 = vpop.f32.mrf.mxu0
    %v3736 = vpop.f32.mrf.mxu0
    %v3737 = vadd.f32 %v3448, %v3736
    %v3738 = vpop.f32.mrf.mxu0
    %3739 = vmatprep.mubr.bf16.mxu0 %v3073
    %3740 = vmatmul.mubr.bf16.gmra.mxu0 %v3072
    %v3741 = vpop.f32.mrf.mxu0
    %v3742 = vadd.f32 %v3453, %v3741
    %v3743 = vpop.f32.mrf.mxu0
    %v3744 = vpop.f32.mrf.mxu0
    %v3745 = vadd.f32 %v3456, %v3744
    %v3746 = vpop.f32.mrf.mxu0
    %3747 = vmatprep.mubr.bf16.mxu0 %v3077
    %3748 = vmatmul.mubr.bf16.gmra.mxu0 %v3076
    %v3749 = vpop.f32.mrf.mxu0
    %v3750 = vadd.f32 %v3461, %v3749
    %v3751 = vpop.f32.mrf.mxu0
    %v3752 = vpop.f32.mrf.mxu0
    %v3753 = vadd.f32 %v3464, %v3752
    %v3754 = vpop.f32.mrf.mxu0
    %3755 = vmatprep.mubr.bf16.mxu0 %v3081
    %3756 = vmatmul.mubr.bf16.gmra.mxu0 %v3080
    %v3757 = vpop.f32.mrf.mxu0
    %v3758 = vadd.f32 %v3469, %v3757
    %v3759 = vpop.f32.mrf.mxu0
    %v3760 = vpop.f32.mrf.mxu0
    %v3761 = vadd.f32 %v3472, %v3760
    %v3762 = vpop.f32.mrf.mxu0
    %3763 = vmatprep.mubr.bf16.mxu0 %v3085
    %3764 = vmatmul.mubr.bf16.gmra.mxu0 %v3084
    %v3765 = vpop.f32.mrf.mxu0
    %v3766 = vadd.f32 %v3477, %v3765
    %v3767 = vpop.f32.mrf.mxu0
    %v3768 = vpop.f32.mrf.mxu0
    %v3769 = vadd.f32 %v3480, %v3768
    %v3770 = vpop.f32.mrf.mxu0
    %3771 = vmatprep.mubr.bf16.mxu0 %v3089
    %3772 = vmatmul.mubr.bf16.gmra.mxu0 %v3088
    %v3773 = vpop.f32.mrf.mxu0
    %v3774 = vadd.f32 %v3485, %v3773
    %v3775 = vpop.f32.mrf.mxu0
    %v3776 = vpop.f32.mrf.mxu0
    %v3777 = vadd.f32 %v3488, %v3776
    %v3778 = vpop.f32.mrf.mxu0
    %3779 = vmatprep.mubr.bf16.mxu0 %v3093
    %3780 = vmatmul.mubr.bf16.gmra.mxu0 %v3092
    %v3781 = vpop.f32.mrf.mxu0
    %v3782 = vadd.f32 %v3493, %v3781
    %v3783 = vpop.f32.mrf.mxu0
    %v3784 = vpop.f32.mrf.mxu0
    %v3785 = vadd.f32 %v3496, %v3784
    %v3786 = vpop.f32.mrf.mxu0
    %3787 = vmatprep.mubr.bf16.mxu0 %v3097
    %3788 = vmatmul.mubr.bf16.gmra.mxu0 %v3096
    %v3789 = vpop.f32.mrf.mxu0
    %v3790 = vadd.f32 %v3501, %v3789
    %v3791 = vpop.f32.mrf.mxu0
    %v3792 = vpop.f32.mrf.mxu0
    %v3793 = vadd.f32 %v3504, %v3792
    %v3794 = vpop.f32.mrf.mxu0
    %3795 = vmatprep.mubr.bf16.mxu0 %v3101
    %3796 = vmatmul.mubr.bf16.gmra.mxu0 %v3100
    %v3797 = vpop.f32.mrf.mxu0
    %v3798 = vadd.f32 %v3509, %v3797
    %v3799 = vpop.f32.mrf.mxu0
    %v3800 = vpop.f32.mrf.mxu0
    %v3801 = vadd.f32 %v3512, %v3800
    %v3802 = vpop.f32.mrf.mxu0
    %3803 = vmatprep.mubr.bf16.mxu0 %v3105
    %3804 = vmatmul.mubr.bf16.gmra.mxu0 %v3104
    %v3805 = vpop.f32.mrf.mxu0
    %v3806 = vadd.f32 %v3517, %v3805
    %v3807 = vpop.f32.mrf.mxu0
    %v3808 = vpop.f32.mrf.mxu0
    %v3809 = vadd.f32 %v3520, %v3808
    %v3810 = vpop.f32.mrf.mxu0
    %3811 = vdwg.mxu0
    %vm3812 = vcmp.ge.f32.partialorder %v3558, 0.0
    %vm3813 = vcmp.ge.f32.partialorder %v3561, 0.0
    %vm3814 = vcmp.ge.f32.partialorder %v3566, 0.0
    %vm3815 = vcmp.ge.f32.partialorder %v3569, 0.0
    %vm3816 = vcmp.ge.f32.partialorder %v3574, 0.0
    %vm3817 = vcmp.ge.f32.partialorder %v3577, 0.0
    %vm3818 = vcmp.ge.f32.partialorder %v3582, 0.0
    %vm3819 = vcmp.ge.f32.partialorder %v3585, 0.0
    %vm3820 = vcmp.ge.f32.partialorder %v3590, 0.0
    %vm3821 = vcmp.ge.f32.partialorder %v3593, 0.0
    %vm3822 = vcmp.ge.f32.partialorder %v3598, 0.0
    %vm3823 = vcmp.ge.f32.partialorder %v3601, 0.0
    %vm3824 = vcmp.ge.f32.partialorder %v3606, 0.0
    %vm3825 = vcmp.ge.f32.partialorder %v3609, 0.0
    %vm3826 = vcmp.ge.f32.partialorder %v3614, 0.0
    %vm3827 = vcmp.ge.f32.partialorder %v3617, 0.0
    %vm3828 = vcmp.ge.f32.partialorder %v3622, 0.0
    %vm3829 = vcmp.ge.f32.partialorder %v3625, 0.0
    %vm3830 = vcmp.ge.f32.partialorder %v3630, 0.0
    %vm3831 = vcmp.ge.f32.partialorder %v3633, 0.0
    %vm3832 = vcmp.ge.f32.partialorder %v3638, 0.0
    %vm3833 = vcmp.ge.f32.partialorder %v3641, 0.0
    %vm3834 = vcmp.ge.f32.partialorder %v3646, 0.0
    %vm3835 = vcmp.ge.f32.partialorder %v3649, 0.0
    %vm3836 = vcmp.ge.f32.partialorder %v3654, 0.0
    %vm3837 = vcmp.ge.f32.partialorder %v3657, 0.0
    %vm3838 = vcmp.ge.f32.partialorder %v3662, 0.0
    %vm3839 = vcmp.ge.f32.partialorder %v3665, 0.0
    %vm3840 = vcmp.ge.f32.partialorder %v3670, 0.0
    %vm3841 = vcmp.ge.f32.partialorder %v3673, 0.0
    %vm3842 = vcmp.ge.f32.partialorder %v3678, 0.0
    %vm3843 = vcmp.ge.f32.partialorder %v3681, 0.0
    %vm3844 = vcmp.ge.f32.partialorder %v3686, 0.0
    %vm3845 = vcmp.ge.f32.partialorder %v3689, 0.0
    %vm3846 = vcmp.ge.f32.partialorder %v3694, 0.0
    %vm3847 = vcmp.ge.f32.partialorder %v3697, 0.0
    %vm3848 = vcmp.ge.f32.partialorder %v3702, 0.0
    %vm3849 = vcmp.ge.f32.partialorder %v3705, 0.0
    %vm3850 = vcmp.ge.f32.partialorder %v3710, 0.0
    %vm3851 = vcmp.ge.f32.partialorder %v3713, 0.0
    %vm3852 = vcmp.ge.f32.partialorder %v3718, 0.0
    %vm3853 = vcmp.ge.f32.partialorder %v3721, 0.0
    %vm3854 = vcmp.ge.f32.partialorder %v3726, 0.0
    %vm3855 = vcmp.ge.f32.partialorder %v3729, 0.0
    %vm3856 = vcmp.ge.f32.partialorder %v3734, 0.0
    %vm3857 = vcmp.ge.f32.partialorder %v3737, 0.0
    %vm3858 = vcmp.ge.f32.partialorder %v3742, 0.0
    %vm3859 = vcmp.ge.f32.partialorder %v3745, 0.0
    %vm3860 = vcmp.ge.f32.partialorder %v3750, 0.0
    %vm3861 = vcmp.ge.f32.partialorder %v3753, 0.0
    %vm3862 = vcmp.ge.f32.partialorder %v3758, 0.0
    %vm3863 = vcmp.ge.f32.partialorder %v3761, 0.0
    %vm3864 = vcmp.ge.f32.partialorder %v3766, 0.0
    %vm3865 = vcmp.ge.f32.partialorder %v3769, 0.0
    %vm3866 = vcmp.ge.f32.partialorder %v3774, 0.0
    %vm3867 = vcmp.ge.f32.partialorder %v3777, 0.0
    %vm3868 = vcmp.ge.f32.partialorder %v3782, 0.0
    %vm3869 = vcmp.ge.f32.partialorder %v3785, 0.0
    %vm3870 = vcmp.ge.f32.partialorder %v3790, 0.0
    %vm3871 = vcmp.ge.f32.partialorder %v3793, 0.0
    %vm3872 = vcmp.ge.f32.partialorder %v3798, 0.0
    %vm3873 = vcmp.ge.f32.partialorder %v3801, 0.0
    %vm3874 = vcmp.ge.f32.partialorder %v3806, 0.0
    %vm3875 = vcmp.ge.f32.partialorder %v3809, 0.0
    %v3876 = vmul.f32 %v3558, 0.2
    %v3877 = vmul.f32 %v3561, 0.2
    %v3878 = vmul.f32 %v3566, 0.2
    %v3879 = vmul.f32 %v3569, 0.2
    %v3880 = vmul.f32 %v3574, 0.2
    %v3881 = vmul.f32 %v3577, 0.2
    %v3882 = vmul.f32 %v3582, 0.2
    %v3883 = vmul.f32 %v3585, 0.2
    %v3884 = vmul.f32 %v3590, 0.2
    %v3885 = vmul.f32 %v3593, 0.2
    %v3886 = vmul.f32 %v3598, 0.2
    %v3887 = vmul.f32 %v3601, 0.2
    %v3888 = vmul.f32 %v3606, 0.2
    %v3889 = vmul.f32 %v3609, 0.2
    %v3890 = vmul.f32 %v3614, 0.2
    %v3891 = vmul.f32 %v3617, 0.2
    %v3892 = vmul.f32 %v3622, 0.2
    %v3893 = vmul.f32 %v3625, 0.2
    %v3894 = vmul.f32 %v3630, 0.2
    %v3895 = vmul.f32 %v3633, 0.2
    %v3896 = vmul.f32 %v3638, 0.2
    %v3897 = vmul.f32 %v3641, 0.2
    %v3898 = vmul.f32 %v3646, 0.2
    %v3899 = vmul.f32 %v3649, 0.2
    %v3900 = vmul.f32 %v3654, 0.2
    %v3901 = vmul.f32 %v3657, 0.2
    %v3902 = vmul.f32 %v3662, 0.2
    %v3903 = vmul.f32 %v3665, 0.2
    %v3904 = vmul.f32 %v3670, 0.2
    %v3905 = vmul.f32 %v3673, 0.2
    %v3906 = vmul.f32 %v3678, 0.2
    %v3907 = vmul.f32 %v3681, 0.2
    %v3908 = vmul.f32 %v3686, 0.2
    %v3909 = vmul.f32 %v3689, 0.2
    %v3910 = vmul.f32 %v3694, 0.2
    %v3911 = vmul.f32 %v3697, 0.2
    %v3912 = vmul.f32 %v3702, 0.2
    %v3913 = vmul.f32 %v3705, 0.2
    %v3914 = vmul.f32 %v3710, 0.2
    %v3915 = vmul.f32 %v3713, 0.2
    %v3916 = vmul.f32 %v3718, 0.2
    %v3917 = vmul.f32 %v3721, 0.2
    %v3918 = vmul.f32 %v3726, 0.2
    %v3919 = vmul.f32 %v3729, 0.2
    %v3920 = vmul.f32 %v3734, 0.2
    %v3921 = vmul.f32 %v3737, 0.2
    %v3922 = vmul.f32 %v3742, 0.2
    %v3923 = vmul.f32 %v3745, 0.2
    %v3924 = vmul.f32 %v3750, 0.2
    %v3925 = vmul.f32 %v3753, 0.2
    %v3926 = vmul.f32 %v3758, 0.2
    %v3927 = vmul.f32 %v3761, 0.2
    %v3928 = vmul.f32 %v3766, 0.2
    %v3929 = vmul.f32 %v3769, 0.2
    %v3930 = vmul.f32 %v3774, 0.2
    %v3931 = vmul.f32 %v3777, 0.2
    %v3932 = vmul.f32 %v3782, 0.2
    %v3933 = vmul.f32 %v3785, 0.2
    %v3934 = vmul.f32 %v3790, 0.2
    %v3935 = vmul.f32 %v3793, 0.2
    %v3936 = vmul.f32 %v3798, 0.2
    %v3937 = vmul.f32 %v3801, 0.2
    %v3938 = vmul.f32 %v3806, 0.2
    %v3939 = vmul.f32 %v3809, 0.2
    %v3940 = vsel %vm3812, %v3558, %v3876
    %v3941 = vsel %vm3813, %v3561, %v3877
    %v3942 = vsel %vm3814, %v3566, %v3878
    %v3943 = vsel %vm3815, %v3569, %v3879
    %v3944 = vsel %vm3816, %v3574, %v3880
    %v3945 = vsel %vm3817, %v3577, %v3881
    %v3946 = vsel %vm3818, %v3582, %v3882
    %v3947 = vsel %vm3819, %v3585, %v3883
    %v3948 = vsel %vm3820, %v3590, %v3884
    %v3949 = vsel %vm3821, %v3593, %v3885
    %v3950 = vsel %vm3822, %v3598, %v3886
    %v3951 = vsel %vm3823, %v3601, %v3887
    %v3952 = vsel %vm3824, %v3606, %v3888
    %v3953 = vsel %vm3825, %v3609, %v3889
    %v3954 = vsel %vm3826, %v3614, %v3890
    %v3955 = vsel %vm3827, %v3617, %v3891
    %v3956 = vsel %vm3828, %v3622, %v3892
    %v3957 = vsel %vm3829, %v3625, %v3893
    %v3958 = vsel %vm3830, %v3630, %v3894
    %v3959 = vsel %vm3831, %v3633, %v3895
    %v3960 = vsel %vm3832, %v3638, %v3896
    %v3961 = vsel %vm3833, %v3641, %v3897
    %v3962 = vsel %vm3834, %v3646, %v3898
    %v3963 = vsel %vm3835, %v3649, %v3899
    %v3964 = vsel %vm3836, %v3654, %v3900
    %v3965 = vsel %vm3837, %v3657, %v3901
    %v3966 = vsel %vm3838, %v3662, %v3902
    %v3967 = vsel %vm3839, %v3665, %v3903
    %v3968 = vsel %vm3840, %v3670, %v3904
    %v3969 = vsel %vm3841, %v3673, %v3905
    %v3970 = vsel %vm3842, %v3678, %v3906
    %v3971 = vsel %vm3843, %v3681, %v3907
    %v3972 = vsel %vm3844, %v3686, %v3908
    %v3973 = vsel %vm3845, %v3689, %v3909
    %v3974 = vsel %vm3846, %v3694, %v3910
    %v3975 = vsel %vm3847, %v3697, %v3911
    %v3976 = vsel %vm3848, %v3702, %v3912
    %v3977 = vsel %vm3849, %v3705, %v3913
    %v3978 = vsel %vm3850, %v3710, %v3914
    %v3979 = vsel %vm3851, %v3713, %v3915
    %v3980 = vsel %vm3852, %v3718, %v3916
    %v3981 = vsel %vm3853, %v3721, %v3917
    %v3982 = vsel %vm3854, %v3726, %v3918
    %v3983 = vsel %vm3855, %v3729, %v3919
    %v3984 = vsel %vm3856, %v3734, %v3920
    %v3985 = vsel %vm3857, %v3737, %v3921
    %v3986 = vsel %vm3858, %v3742, %v3922
    %v3987 = vsel %vm3859, %v3745, %v3923
    %v3988 = vsel %vm3860, %v3750, %v3924
    %v3989 = vsel %vm3861, %v3753, %v3925
    %v3990 = vsel %vm3862, %v3758, %v3926
    %v3991 = vsel %vm3863, %v3761, %v3927
    %v3992 = vsel %vm3864, %v3766, %v3928
    %v3993 = vsel %vm3865, %v3769, %v3929
    %v3994 = vsel %vm3866, %v3774, %v3930
    %v3995 = vsel %vm3867, %v3777, %v3931
    %v3996 = vsel %vm3868, %v3782, %v3932
    %v3997 = vsel %vm3869, %v3785, %v3933
    %v3998 = vsel %vm3870, %v3790, %v3934
    %v3999 = vsel %vm3871, %v3793, %v3935
    %v4000 = vsel %vm3872, %v3798, %v3936
    %v4001 = vsel %vm3873, %v3801, %v3937
    %v4002 = vsel %vm3874, %v3806, %v3938
    %v4003 = vsel %vm3875, %v3809, %v3939
    %v4004 = vld [vmem:[#allocation6] sm:$0xff]
    %v4005 = vld [vmem:[#allocation6 + $0x8] sm:$0xff]
    %v4006 = vld [vmem:[#allocation6 + $0x10] sm:$0xff]
    %v4007 = vld [vmem:[#allocation6 + $0x18] sm:$0xff]
    %v4008 = vld [vmem:[#allocation6 + $0x20] sm:$0xff]
    %v4009 = vld [vmem:[#allocation6 + $0x28] sm:$0xff]
    %v4010 = vld [vmem:[#allocation6 + $0x30] sm:$0xff]
    %v4011 = vld [vmem:[#allocation6 + $0x38] sm:$0xff]
    %v4012 = vld [vmem:[#allocation6 + $0x40] sm:$0xff]
    %v4013 = vld [vmem:[#allocation6 + $0x48] sm:$0xff]
    %v4014 = vld [vmem:[#allocation6 + $0x50] sm:$0xff]
    %v4015 = vld [vmem:[#allocation6 + $0x58] sm:$0xff]
    %v4016 = vld [vmem:[#allocation6 + $0x60] sm:$0xff]
    %v4017 = vld [vmem:[#allocation6 + $0x68] sm:$0xff]
    %v4018 = vld [vmem:[#allocation6 + $0x70] sm:$0xff]
    %v4019 = vld [vmem:[#allocation6 + $0x78] sm:$0xff]
    %v4020 = vld [vmem:[#allocation6 + $0x80] sm:$0xff]
    %v4021 = vld [vmem:[#allocation6 + $0x88] sm:$0xff]
    %v4022 = vld [vmem:[#allocation6 + $0x90] sm:$0xff]
    %v4023 = vld [vmem:[#allocation6 + $0x98] sm:$0xff]
    %v4024 = vld [vmem:[#allocation6 + $0xa0] sm:$0xff]
    %v4025 = vld [vmem:[#allocation6 + $0xa8] sm:$0xff]
    %v4026 = vld [vmem:[#allocation6 + $0xb0] sm:$0xff]
    %v4027 = vld [vmem:[#allocation6 + $0xb8] sm:$0xff]
    %v4028 = vld [vmem:[#allocation6 + $0xc0] sm:$0xff]
    %v4029 = vld [vmem:[#allocation6 + $0xc8] sm:$0xff]
    %v4030 = vld [vmem:[#allocation6 + $0xd0] sm:$0xff]
    %v4031 = vld [vmem:[#allocation6 + $0xd8] sm:$0xff]
    %v4032 = vld [vmem:[#allocation6 + $0xe0] sm:$0xff]
    %v4033 = vld [vmem:[#allocation6 + $0xe8] sm:$0xff]
    %v4034 = vld [vmem:[#allocation6 + $0xf0] sm:$0xff]
    %v4035 = vld [vmem:[#allocation6 + $0xf8] sm:$0xff]
    %v4036 = vld [vmem:[#allocation6 + $0x100] sm:$0xff]
    %v4037 = vld [vmem:[#allocation6 + $0x108] sm:$0xff]
    %v4038 = vld [vmem:[#allocation6 + $0x110] sm:$0xff]
    %v4039 = vld [vmem:[#allocation6 + $0x118] sm:$0xff]
    %v4040 = vld [vmem:[#allocation6 + $0x120] sm:$0xff]
    %v4041 = vld [vmem:[#allocation6 + $0x128] sm:$0xff]
    %v4042 = vld [vmem:[#allocation6 + $0x130] sm:$0xff]
    %v4043 = vld [vmem:[#allocation6 + $0x138] sm:$0xff]
    %v4044 = vld [vmem:[#allocation6 + $0x140] sm:$0xff]
    %v4045 = vld [vmem:[#allocation6 + $0x148] sm:$0xff]
    %v4046 = vld [vmem:[#allocation6 + $0x150] sm:$0xff]
    %v4047 = vld [vmem:[#allocation6 + $0x158] sm:$0xff]
    %v4048 = vld [vmem:[#allocation6 + $0x160] sm:$0xff]
    %v4049 = vld [vmem:[#allocation6 + $0x168] sm:$0xff]
    %v4050 = vld [vmem:[#allocation6 + $0x170] sm:$0xff]
    %v4051 = vld [vmem:[#allocation6 + $0x178] sm:$0xff]
    %v4052 = vld [vmem:[#allocation6 + $0x180] sm:$0xff]
    %v4053 = vld [vmem:[#allocation6 + $0x188] sm:$0xff]
    %v4054 = vld [vmem:[#allocation6 + $0x190] sm:$0xff]
    %v4055 = vld [vmem:[#allocation6 + $0x198] sm:$0xff]
    %v4056 = vld [vmem:[#allocation6 + $0x1a0] sm:$0xff]
    %v4057 = vld [vmem:[#allocation6 + $0x1a8] sm:$0xff]
    %v4058 = vld [vmem:[#allocation6 + $0x1b0] sm:$0xff]
    %v4059 = vld [vmem:[#allocation6 + $0x1b8] sm:$0xff]
    %v4060 = vld [vmem:[#allocation6 + $0x1c0] sm:$0xff]
    %v4061 = vld [vmem:[#allocation6 + $0x1c8] sm:$0xff]
    %v4062 = vld [vmem:[#allocation6 + $0x1d0] sm:$0xff]
    %v4063 = vld [vmem:[#allocation6 + $0x1d8] sm:$0xff]
    %v4064 = vld [vmem:[#allocation6 + $0x1e0] sm:$0xff]
    %v4065 = vld [vmem:[#allocation6 + $0x1e8] sm:$0xff]
    %v4066 = vld [vmem:[#allocation6 + $0x1f0] sm:$0xff]
    %v4067 = vld [vmem:[#allocation6 + $0x1f8] sm:$0xff]
    %v4068 = vld [vmem:[#allocation6 + $0x200] sm:$0xff]
    %v4069 = vld [vmem:[#allocation6 + $0x208] sm:$0xff]
    %v4070 = vld [vmem:[#allocation6 + $0x210] sm:$0xff]
    %v4071 = vld [vmem:[#allocation6 + $0x218] sm:$0xff]
    %v4072 = vld [vmem:[#allocation6 + $0x220] sm:$0xff]
    %v4073 = vld [vmem:[#allocation6 + $0x228] sm:$0xff]
    %v4074 = vld [vmem:[#allocation6 + $0x230] sm:$0xff]
    %v4075 = vld [vmem:[#allocation6 + $0x238] sm:$0xff]
    %v4076 = vld [vmem:[#allocation6 + $0x240] sm:$0xff]
    %v4077 = vld [vmem:[#allocation6 + $0x248] sm:$0xff]
    %v4078 = vld [vmem:[#allocation6 + $0x250] sm:$0xff]
    %v4079 = vld [vmem:[#allocation6 + $0x258] sm:$0xff]
    %v4080 = vld [vmem:[#allocation6 + $0x260] sm:$0xff]
    %v4081 = vld [vmem:[#allocation6 + $0x268] sm:$0xff]
    %v4082 = vld [vmem:[#allocation6 + $0x270] sm:$0xff]
    %v4083 = vld [vmem:[#allocation6 + $0x278] sm:$0xff]
    %v4084 = vld [vmem:[#allocation6 + $0x280] sm:$0xff]
    %v4085 = vld [vmem:[#allocation6 + $0x288] sm:$0xff]
    %v4086 = vld [vmem:[#allocation6 + $0x290] sm:$0xff]
    %v4087 = vld [vmem:[#allocation6 + $0x298] sm:$0xff]
    %v4088 = vld [vmem:[#allocation6 + $0x2a0] sm:$0xff]
    %v4089 = vld [vmem:[#allocation6 + $0x2a8] sm:$0xff]
    %v4090 = vld [vmem:[#allocation6 + $0x2b0] sm:$0xff]
    %v4091 = vld [vmem:[#allocation6 + $0x2b8] sm:$0xff]
    %v4092 = vld [vmem:[#allocation6 + $0x2c0] sm:$0xff]
    %v4093 = vld [vmem:[#allocation6 + $0x2c8] sm:$0xff]
    %v4094 = vld [vmem:[#allocation6 + $0x2d0] sm:$0xff]
    %v4095 = vld [vmem:[#allocation6 + $0x2d8] sm:$0xff]
    %v4096 = vld [vmem:[#allocation6 + $0x2e0] sm:$0xff]
    %v4097 = vld [vmem:[#allocation6 + $0x2e8] sm:$0xff]
    %v4098 = vld [vmem:[#allocation6 + $0x2f0] sm:$0xff]
    %v4099 = vld [vmem:[#allocation6 + $0x2f8] sm:$0xff]
    %v4100 = vld [vmem:[#allocation6 + $0x300] sm:$0xff]
    %v4101 = vld [vmem:[#allocation6 + $0x308] sm:$0xff]
    %v4102 = vld [vmem:[#allocation6 + $0x310] sm:$0xff]
    %v4103 = vld [vmem:[#allocation6 + $0x318] sm:$0xff]
    %v4104 = vld [vmem:[#allocation6 + $0x320] sm:$0xff]
    %v4105 = vld [vmem:[#allocation6 + $0x328] sm:$0xff]
    %v4106 = vld [vmem:[#allocation6 + $0x330] sm:$0xff]
    %v4107 = vld [vmem:[#allocation6 + $0x338] sm:$0xff]
    %v4108 = vld [vmem:[#allocation6 + $0x340] sm:$0xff]
    %v4109 = vld [vmem:[#allocation6 + $0x348] sm:$0xff]
    %v4110 = vld [vmem:[#allocation6 + $0x350] sm:$0xff]
    %v4111 = vld [vmem:[#allocation6 + $0x358] sm:$0xff]
    %v4112 = vld [vmem:[#allocation6 + $0x360] sm:$0xff]
    %v4113 = vld [vmem:[#allocation6 + $0x368] sm:$0xff]
    %v4114 = vld [vmem:[#allocation6 + $0x370] sm:$0xff]
    %v4115 = vld [vmem:[#allocation6 + $0x378] sm:$0xff]
    %v4116 = vld [vmem:[#allocation6 + $0x380] sm:$0xff]
    %v4117 = vld [vmem:[#allocation6 + $0x388] sm:$0xff]
    %v4118 = vld [vmem:[#allocation6 + $0x390] sm:$0xff]
    %v4119 = vld [vmem:[#allocation6 + $0x398] sm:$0xff]
    %v4120 = vld [vmem:[#allocation6 + $0x3a0] sm:$0xff]
    %v4121 = vld [vmem:[#allocation6 + $0x3a8] sm:$0xff]
    %v4122 = vld [vmem:[#allocation6 + $0x3b0] sm:$0xff]
    %v4123 = vld [vmem:[#allocation6 + $0x3b8] sm:$0xff]
    %v4124 = vld [vmem:[#allocation6 + $0x3c0] sm:$0xff]
    %v4125 = vld [vmem:[#allocation6 + $0x3c8] sm:$0xff]
    %v4126 = vld [vmem:[#allocation6 + $0x3d0] sm:$0xff]
    %v4127 = vld [vmem:[#allocation6 + $0x3d8] sm:$0xff]
    %v4128 = vld [vmem:[#allocation6 + $0x3e0] sm:$0xff]
    %v4129 = vld [vmem:[#allocation6 + $0x3e8] sm:$0xff]
    %v4130 = vld [vmem:[#allocation6 + $0x3f0] sm:$0xff]
    %v4131 = vld [vmem:[#allocation6 + $0x3f8] sm:$0xff]
    %v4132 = vpack.c.bf16 %v3941, %v3940
    %v4133 = vpack.c.bf16 %v3943, %v3942
    %v4134 = vpack.c.bf16 %v3945, %v3944
    %v4135 = vpack.c.bf16 %v3947, %v3946
    %v4136 = vpack.c.bf16 %v3949, %v3948
    %v4137 = vpack.c.bf16 %v3951, %v3950
    %v4138 = vpack.c.bf16 %v3953, %v3952
    %v4139 = vpack.c.bf16 %v3955, %v3954
    %v4140 = vpack.c.bf16 %v3957, %v3956
    %v4141 = vpack.c.bf16 %v3959, %v3958
    %v4142 = vpack.c.bf16 %v3961, %v3960
    %v4143 = vpack.c.bf16 %v3963, %v3962
    %v4144 = vpack.c.bf16 %v3965, %v3964
    %v4145 = vpack.c.bf16 %v3967, %v3966
    %v4146 = vpack.c.bf16 %v3969, %v3968
    %v4147 = vpack.c.bf16 %v3971, %v3970
    %v4148 = vpack.c.bf16 %v3973, %v3972
    %v4149 = vpack.c.bf16 %v3975, %v3974
    %v4150 = vpack.c.bf16 %v3977, %v3976
    %v4151 = vpack.c.bf16 %v3979, %v3978
    %v4152 = vpack.c.bf16 %v3981, %v3980
    %v4153 = vpack.c.bf16 %v3983, %v3982
    %v4154 = vpack.c.bf16 %v3985, %v3984
    %v4155 = vpack.c.bf16 %v3987, %v3986
    %v4156 = vpack.c.bf16 %v3989, %v3988
    %v4157 = vpack.c.bf16 %v3991, %v3990
    %v4158 = vpack.c.bf16 %v3993, %v3992
    %v4159 = vpack.c.bf16 %v3995, %v3994
    %v4160 = vpack.c.bf16 %v3997, %v3996
    %v4161 = vpack.c.bf16 %v3999, %v3998
    %v4162 = vpack.c.bf16 %v4001, %v4000
    %v4163 = vpack.c.bf16 %v4003, %v4002
    %v4164 = vld [vmem:[%s6] sm:$0xff]
    %v4165 = vld [vmem:[%s6 + $0x8] sm:$0xff]
    %v4166 = vld [vmem:[%s6 + $0x10] sm:$0xff]
    %v4167 = vld [vmem:[%s6 + $0x18] sm:$0xff]
    %v4168 = vld [vmem:[%s6 + $0x20] sm:$0xff]
    %v4169 = vld [vmem:[%s6 + $0x28] sm:$0xff]
    %v4170 = vld [vmem:[%s6 + $0x30] sm:$0xff]
    %v4171 = vld [vmem:[%s6 + $0x38] sm:$0xff]
    %v4172 = vld [vmem:[%s6 + $0x40] sm:$0xff]
    %v4173 = vld [vmem:[%s6 + $0x48] sm:$0xff]
    %v4174 = vld [vmem:[%s6 + $0x50] sm:$0xff]
    %v4175 = vld [vmem:[%s6 + $0x58] sm:$0xff]
    %v4176 = vld [vmem:[%s6 + $0x60] sm:$0xff]
    %v4177 = vld [vmem:[%s6 + $0x68] sm:$0xff]
    %v4178 = vld [vmem:[%s6 + $0x70] sm:$0xff]
    %v4179 = vld [vmem:[%s6 + $0x78] sm:$0xff]
    %v4180 = vld [vmem:[%s6 + $0x80] sm:$0xff]
    %v4181 = vld [vmem:[%s6 + $0x88] sm:$0xff]
    %v4182 = vld [vmem:[%s6 + $0x90] sm:$0xff]
    %v4183 = vld [vmem:[%s6 + $0x98] sm:$0xff]
    %v4184 = vld [vmem:[%s6 + $0xa0] sm:$0xff]
    %v4185 = vld [vmem:[%s6 + $0xa8] sm:$0xff]
    %v4186 = vld [vmem:[%s6 + $0xb0] sm:$0xff]
    %v4187 = vld [vmem:[%s6 + $0xb8] sm:$0xff]
    %v4188 = vld [vmem:[%s6 + $0xc0] sm:$0xff]
    %v4189 = vld [vmem:[%s6 + $0xc8] sm:$0xff]
    %v4190 = vld [vmem:[%s6 + $0xd0] sm:$0xff]
    %v4191 = vld [vmem:[%s6 + $0xd8] sm:$0xff]
    %v4192 = vld [vmem:[%s6 + $0xe0] sm:$0xff]
    %v4193 = vld [vmem:[%s6 + $0xe8] sm:$0xff]
    %v4194 = vld [vmem:[%s6 + $0xf0] sm:$0xff]
    %v4195 = vld [vmem:[%s6 + $0xf8] sm:$0xff]
    %v4196 = vld [vmem:[%s6 + $0x100] sm:$0xff]
    %v4197 = vld [vmem:[%s6 + $0x108] sm:$0xff]
    %v4198 = vld [vmem:[%s6 + $0x110] sm:$0xff]
    %v4199 = vld [vmem:[%s6 + $0x118] sm:$0xff]
    %v4200 = vld [vmem:[%s6 + $0x120] sm:$0xff]
    %v4201 = vld [vmem:[%s6 + $0x128] sm:$0xff]
    %v4202 = vld [vmem:[%s6 + $0x130] sm:$0xff]
    %v4203 = vld [vmem:[%s6 + $0x138] sm:$0xff]
    %v4204 = vld [vmem:[%s6 + $0x140] sm:$0xff]
    %v4205 = vld [vmem:[%s6 + $0x148] sm:$0xff]
    %v4206 = vld [vmem:[%s6 + $0x150] sm:$0xff]
    %v4207 = vld [vmem:[%s6 + $0x158] sm:$0xff]
    %v4208 = vld [vmem:[%s6 + $0x160] sm:$0xff]
    %v4209 = vld [vmem:[%s6 + $0x168] sm:$0xff]
    %v4210 = vld [vmem:[%s6 + $0x170] sm:$0xff]
    %v4211 = vld [vmem:[%s6 + $0x178] sm:$0xff]
    %v4212 = vld [vmem:[%s6 + $0x180] sm:$0xff]
    %v4213 = vld [vmem:[%s6 + $0x188] sm:$0xff]
    %v4214 = vld [vmem:[%s6 + $0x190] sm:$0xff]
    %v4215 = vld [vmem:[%s6 + $0x198] sm:$0xff]
    %v4216 = vld [vmem:[%s6 + $0x1a0] sm:$0xff]
    %v4217 = vld [vmem:[%s6 + $0x1a8] sm:$0xff]
    %v4218 = vld [vmem:[%s6 + $0x1b0] sm:$0xff]
    %v4219 = vld [vmem:[%s6 + $0x1b8] sm:$0xff]
    %v4220 = vld [vmem:[%s6 + $0x1c0] sm:$0xff]
    %v4221 = vld [vmem:[%s6 + $0x1c8] sm:$0xff]
    %v4222 = vld [vmem:[%s6 + $0x1d0] sm:$0xff]
    %v4223 = vld [vmem:[%s6 + $0x1d8] sm:$0xff]
    %v4224 = vld [vmem:[%s6 + $0x1e0] sm:$0xff]
    %v4225 = vld [vmem:[%s6 + $0x1e8] sm:$0xff]
    %v4226 = vld [vmem:[%s6 + $0x1f0] sm:$0xff]
    %v4227 = vld [vmem:[%s6 + $0x1f8] sm:$0xff]
    %4229 = vset.pattern.permute.xlu0 0
    %4230 = vperm.xlu0 %4229, %v4164
    %v4231 = vpop.permute.xlu0 %4230
    %4234 = vset.pattern.permute.xlu0 0
    %4235 = vperm.xlu0 %4234, %v4165
    %v4236 = vpop.permute.xlu0 %4235
    %4239 = vset.pattern.permute.xlu0 0
    %4240 = vperm.xlu0 %4239, %v4166
    %v4241 = vpop.permute.xlu0 %4240
    %4244 = vset.pattern.permute.xlu0 0
    %4245 = vperm.xlu0 %4244, %v4167
    %v4246 = vpop.permute.xlu0 %4245
    %4249 = vset.pattern.permute.xlu0 0
    %4250 = vperm.xlu0 %4249, %v4168
    %v4251 = vpop.permute.xlu0 %4250
    %4254 = vset.pattern.permute.xlu0 0
    %4255 = vperm.xlu0 %4254, %v4169
    %v4256 = vpop.permute.xlu0 %4255
    %4259 = vset.pattern.permute.xlu0 0
    %4260 = vperm.xlu0 %4259, %v4170
    %v4261 = vpop.permute.xlu0 %4260
    %4264 = vset.pattern.permute.xlu0 0
    %4265 = vperm.xlu0 %4264, %v4171
    %v4266 = vpop.permute.xlu0 %4265
    %4269 = vset.pattern.permute.xlu0 0
    %4270 = vperm.xlu0 %4269, %v4172
    %v4271 = vpop.permute.xlu0 %4270
    %4274 = vset.pattern.permute.xlu0 0
    %4275 = vperm.xlu0 %4274, %v4173
    %v4276 = vpop.permute.xlu0 %4275
    %4279 = vset.pattern.permute.xlu0 0
    %4280 = vperm.xlu0 %4279, %v4174
    %v4281 = vpop.permute.xlu0 %4280
    %4284 = vset.pattern.permute.xlu0 0
    %4285 = vperm.xlu0 %4284, %v4175
    %v4286 = vpop.permute.xlu0 %4285
    %4289 = vset.pattern.permute.xlu0 0
    %4290 = vperm.xlu0 %4289, %v4176
    %v4291 = vpop.permute.xlu0 %4290
    %4294 = vset.pattern.permute.xlu0 0
    %4295 = vperm.xlu0 %4294, %v4177
    %v4296 = vpop.permute.xlu0 %4295
    %4299 = vset.pattern.permute.xlu0 0
    %4300 = vperm.xlu0 %4299, %v4178
    %v4301 = vpop.permute.xlu0 %4300
    %4304 = vset.pattern.permute.xlu0 0
    %4305 = vperm.xlu0 %4304, %v4179
    %v4306 = vpop.permute.xlu0 %4305
    %4309 = vset.pattern.permute.xlu0 0
    %4310 = vperm.xlu0 %4309, %v4180
    %v4311 = vpop.permute.xlu0 %4310
    %4314 = vset.pattern.permute.xlu0 0
    %4315 = vperm.xlu0 %4314, %v4181
    %v4316 = vpop.permute.xlu0 %4315
    %4319 = vset.pattern.permute.xlu0 0
    %4320 = vperm.xlu0 %4319, %v4182
    %v4321 = vpop.permute.xlu0 %4320
    %4324 = vset.pattern.permute.xlu0 0
    %4325 = vperm.xlu0 %4324, %v4183
    %v4326 = vpop.permute.xlu0 %4325
    %4329 = vset.pattern.permute.xlu0 0
    %4330 = vperm.xlu0 %4329, %v4184
    %v4331 = vpop.permute.xlu0 %4330
    %4334 = vset.pattern.permute.xlu0 0
    %4335 = vperm.xlu0 %4334, %v4185
    %v4336 = vpop.permute.xlu0 %4335
    %4339 = vset.pattern.permute.xlu0 0
    %4340 = vperm.xlu0 %4339, %v4186
    %v4341 = vpop.permute.xlu0 %4340
    %4344 = vset.pattern.permute.xlu0 0
    %4345 = vperm.xlu0 %4344, %v4187
    %v4346 = vpop.permute.xlu0 %4345
    %4349 = vset.pattern.permute.xlu0 0
    %4350 = vperm.xlu0 %4349, %v4188
    %v4351 = vpop.permute.xlu0 %4350
    %4354 = vset.pattern.permute.xlu0 0
    %4355 = vperm.xlu0 %4354, %v4189
    %v4356 = vpop.permute.xlu0 %4355
    %4359 = vset.pattern.permute.xlu0 0
    %4360 = vperm.xlu0 %4359, %v4190
    %v4361 = vpop.permute.xlu0 %4360
    %4364 = vset.pattern.permute.xlu0 0
    %4365 = vperm.xlu0 %4364, %v4191
    %v4366 = vpop.permute.xlu0 %4365
    %4369 = vset.pattern.permute.xlu0 0
    %4370 = vperm.xlu0 %4369, %v4192
    %v4371 = vpop.permute.xlu0 %4370
    %4374 = vset.pattern.permute.xlu0 0
    %4375 = vperm.xlu0 %4374, %v4193
    %v4376 = vpop.permute.xlu0 %4375
    %4379 = vset.pattern.permute.xlu0 0
    %4380 = vperm.xlu0 %4379, %v4194
    %v4381 = vpop.permute.xlu0 %4380
    %4384 = vset.pattern.permute.xlu0 0
    %4385 = vperm.xlu0 %4384, %v4195
    %v4386 = vpop.permute.xlu0 %4385
    %4389 = vset.pattern.permute.xlu0 0
    %4390 = vperm.xlu0 %4389, %v4196
    %v4391 = vpop.permute.xlu0 %4390
    %4394 = vset.pattern.permute.xlu0 0
    %4395 = vperm.xlu0 %4394, %v4197
    %v4396 = vpop.permute.xlu0 %4395
    %4399 = vset.pattern.permute.xlu0 0
    %4400 = vperm.xlu0 %4399, %v4198
    %v4401 = vpop.permute.xlu0 %4400
    %4404 = vset.pattern.permute.xlu0 0
    %4405 = vperm.xlu0 %4404, %v4199
    %v4406 = vpop.permute.xlu0 %4405
    %4409 = vset.pattern.permute.xlu0 0
    %4410 = vperm.xlu0 %4409, %v4200
    %v4411 = vpop.permute.xlu0 %4410
    %4414 = vset.pattern.permute.xlu0 0
    %4415 = vperm.xlu0 %4414, %v4201
    %v4416 = vpop.permute.xlu0 %4415
    %4419 = vset.pattern.permute.xlu0 0
    %4420 = vperm.xlu0 %4419, %v4202
    %v4421 = vpop.permute.xlu0 %4420
    %4424 = vset.pattern.permute.xlu0 0
    %4425 = vperm.xlu0 %4424, %v4203
    %v4426 = vpop.permute.xlu0 %4425
    %4429 = vset.pattern.permute.xlu0 0
    %4430 = vperm.xlu0 %4429, %v4204
    %v4431 = vpop.permute.xlu0 %4430
    %4434 = vset.pattern.permute.xlu0 0
    %4435 = vperm.xlu0 %4434, %v4205
    %v4436 = vpop.permute.xlu0 %4435
    %4439 = vset.pattern.permute.xlu0 0
    %4440 = vperm.xlu0 %4439, %v4206
    %v4441 = vpop.permute.xlu0 %4440
    %4444 = vset.pattern.permute.xlu0 0
    %4445 = vperm.xlu0 %4444, %v4207
    %v4446 = vpop.permute.xlu0 %4445
    %4449 = vset.pattern.permute.xlu0 0
    %4450 = vperm.xlu0 %4449, %v4208
    %v4451 = vpop.permute.xlu0 %4450
    %4454 = vset.pattern.permute.xlu0 0
    %4455 = vperm.xlu0 %4454, %v4209
    %v4456 = vpop.permute.xlu0 %4455
    %4459 = vset.pattern.permute.xlu0 0
    %4460 = vperm.xlu0 %4459, %v4210
    %v4461 = vpop.permute.xlu0 %4460
    %4464 = vset.pattern.permute.xlu0 0
    %4465 = vperm.xlu0 %4464, %v4211
    %v4466 = vpop.permute.xlu0 %4465
    %4469 = vset.pattern.permute.xlu0 0
    %4470 = vperm.xlu0 %4469, %v4212
    %v4471 = vpop.permute.xlu0 %4470
    %4474 = vset.pattern.permute.xlu0 0
    %4475 = vperm.xlu0 %4474, %v4213
    %v4476 = vpop.permute.xlu0 %4475
    %4479 = vset.pattern.permute.xlu0 0
    %4480 = vperm.xlu0 %4479, %v4214
    %v4481 = vpop.permute.xlu0 %4480
    %4484 = vset.pattern.permute.xlu0 0
    %4485 = vperm.xlu0 %4484, %v4215
    %v4486 = vpop.permute.xlu0 %4485
    %4489 = vset.pattern.permute.xlu0 0
    %4490 = vperm.xlu0 %4489, %v4216
    %v4491 = vpop.permute.xlu0 %4490
    %4494 = vset.pattern.permute.xlu0 0
    %4495 = vperm.xlu0 %4494, %v4217
    %v4496 = vpop.permute.xlu0 %4495
    %4499 = vset.pattern.permute.xlu0 0
    %4500 = vperm.xlu0 %4499, %v4218
    %v4501 = vpop.permute.xlu0 %4500
    %4504 = vset.pattern.permute.xlu0 0
    %4505 = vperm.xlu0 %4504, %v4219
    %v4506 = vpop.permute.xlu0 %4505
    %4509 = vset.pattern.permute.xlu0 0
    %4510 = vperm.xlu0 %4509, %v4220
    %v4511 = vpop.permute.xlu0 %4510
    %4514 = vset.pattern.permute.xlu0 0
    %4515 = vperm.xlu0 %4514, %v4221
    %v4516 = vpop.permute.xlu0 %4515
    %4519 = vset.pattern.permute.xlu0 0
    %4520 = vperm.xlu0 %4519, %v4222
    %v4521 = vpop.permute.xlu0 %4520
    %4524 = vset.pattern.permute.xlu0 0
    %4525 = vperm.xlu0 %4524, %v4223
    %v4526 = vpop.permute.xlu0 %4525
    %4529 = vset.pattern.permute.xlu0 0
    %4530 = vperm.xlu0 %4529, %v4224
    %v4531 = vpop.permute.xlu0 %4530
    %4534 = vset.pattern.permute.xlu0 0
    %4535 = vperm.xlu0 %4534, %v4225
    %v4536 = vpop.permute.xlu0 %4535
    %4539 = vset.pattern.permute.xlu0 0
    %4540 = vperm.xlu0 %4539, %v4226
    %v4541 = vpop.permute.xlu0 %4540
    %4544 = vset.pattern.permute.xlu0 0
    %4545 = vperm.xlu0 %4544, %v4227
    %v4546 = vpop.permute.xlu0 %4545
    %v4676 = vunpack.c.l.b16 %v4004
    %v4677 = vunpack.c.h.b16 %v4004
    %v4678 = vunpack.c.l.b16 %v4005
    %v4679 = vunpack.c.h.b16 %v4005
    %v4680 = vunpack.c.l.b16 %v4006
    %v4681 = vunpack.c.h.b16 %v4006
    %v4682 = vunpack.c.l.b16 %v4007
    %v4683 = vunpack.c.h.b16 %v4007
    %v4684 = vunpack.c.l.b16 %v4008
    %v4685 = vunpack.c.h.b16 %v4008
    %v4686 = vunpack.c.l.b16 %v4009
    %v4687 = vunpack.c.h.b16 %v4009
    %v4688 = vunpack.c.l.b16 %v4010
    %v4689 = vunpack.c.h.b16 %v4010
    %v4690 = vunpack.c.l.b16 %v4011
    %v4691 = vunpack.c.h.b16 %v4011
    %v4692 = vunpack.c.l.b16 %v4012
    %v4693 = vunpack.c.h.b16 %v4012
    %v4694 = vunpack.c.l.b16 %v4013
    %v4695 = vunpack.c.h.b16 %v4013
    %v4696 = vunpack.c.l.b16 %v4014
    %v4697 = vunpack.c.h.b16 %v4014
    %v4698 = vunpack.c.l.b16 %v4015
    %v4699 = vunpack.c.h.b16 %v4015
    %v4700 = vunpack.c.l.b16 %v4016
    %v4701 = vunpack.c.h.b16 %v4016
    %v4702 = vunpack.c.l.b16 %v4017
    %v4703 = vunpack.c.h.b16 %v4017
    %v4704 = vunpack.c.l.b16 %v4018
    %v4705 = vunpack.c.h.b16 %v4018
    %v4706 = vunpack.c.l.b16 %v4019
    %v4707 = vunpack.c.h.b16 %v4019
    %v4708 = vunpack.c.l.b16 %v4020
    %v4709 = vunpack.c.h.b16 %v4020
    %v4710 = vunpack.c.l.b16 %v4021
    %v4711 = vunpack.c.h.b16 %v4021
    %v4712 = vunpack.c.l.b16 %v4022
    %v4713 = vunpack.c.h.b16 %v4022
    %v4714 = vunpack.c.l.b16 %v4023
    %v4715 = vunpack.c.h.b16 %v4023
    %v4716 = vunpack.c.l.b16 %v4024
    %v4717 = vunpack.c.h.b16 %v4024
    %v4718 = vunpack.c.l.b16 %v4025
    %v4719 = vunpack.c.h.b16 %v4025
    %v4720 = vunpack.c.l.b16 %v4026
    %v4721 = vunpack.c.h.b16 %v4026
    %v4722 = vunpack.c.l.b16 %v4027
    %v4723 = vunpack.c.h.b16 %v4027
    %v4724 = vunpack.c.l.b16 %v4028
    %v4725 = vunpack.c.h.b16 %v4028
    %v4726 = vunpack.c.l.b16 %v4029
    %v4727 = vunpack.c.h.b16 %v4029
    %v4728 = vunpack.c.l.b16 %v4030
    %v4729 = vunpack.c.h.b16 %v4030
    %v4730 = vunpack.c.l.b16 %v4031
    %v4731 = vunpack.c.h.b16 %v4031
    %v4732 = vunpack.c.l.b16 %v4032
    %v4733 = vunpack.c.h.b16 %v4032
    %v4734 = vunpack.c.l.b16 %v4033
    %v4735 = vunpack.c.h.b16 %v4033
    %v4736 = vunpack.c.l.b16 %v4034
    %v4737 = vunpack.c.h.b16 %v4034
    %v4738 = vunpack.c.l.b16 %v4035
    %v4739 = vunpack.c.h.b16 %v4035
    %v4740 = vunpack.c.l.b16 %v4036
    %v4741 = vunpack.c.h.b16 %v4036
    %v4742 = vunpack.c.l.b16 %v4037
    %v4743 = vunpack.c.h.b16 %v4037
    %v4744 = vunpack.c.l.b16 %v4038
    %v4745 = vunpack.c.h.b16 %v4038
    %v4746 = vunpack.c.l.b16 %v4039
    %v4747 = vunpack.c.h.b16 %v4039
    %v4748 = vunpack.c.l.b16 %v4040
    %v4749 = vunpack.c.h.b16 %v4040
    %v4750 = vunpack.c.l.b16 %v4041
    %v4751 = vunpack.c.h.b16 %v4041
    %v4752 = vunpack.c.l.b16 %v4042
    %v4753 = vunpack.c.h.b16 %v4042
    %v4754 = vunpack.c.l.b16 %v4043
    %v4755 = vunpack.c.h.b16 %v4043
    %v4756 = vunpack.c.l.b16 %v4044
    %v4757 = vunpack.c.h.b16 %v4044
    %v4758 = vunpack.c.l.b16 %v4045
    %v4759 = vunpack.c.h.b16 %v4045
    %v4760 = vunpack.c.l.b16 %v4046
    %v4761 = vunpack.c.h.b16 %v4046
    %v4762 = vunpack.c.l.b16 %v4047
    %v4763 = vunpack.c.h.b16 %v4047
    %v4764 = vunpack.c.l.b16 %v4048
    %v4765 = vunpack.c.h.b16 %v4048
    %v4766 = vunpack.c.l.b16 %v4049
    %v4767 = vunpack.c.h.b16 %v4049
    %v4768 = vunpack.c.l.b16 %v4050
    %v4769 = vunpack.c.h.b16 %v4050
    %v4770 = vunpack.c.l.b16 %v4051
    %v4771 = vunpack.c.h.b16 %v4051
    %v4772 = vunpack.c.l.b16 %v4052
    %v4773 = vunpack.c.h.b16 %v4052
    %v4774 = vunpack.c.l.b16 %v4053
    %v4775 = vunpack.c.h.b16 %v4053
    %v4776 = vunpack.c.l.b16 %v4054
    %v4777 = vunpack.c.h.b16 %v4054
    %v4778 = vunpack.c.l.b16 %v4055
    %v4779 = vunpack.c.h.b16 %v4055
    %v4780 = vunpack.c.l.b16 %v4056
    %v4781 = vunpack.c.h.b16 %v4056
    %v4782 = vunpack.c.l.b16 %v4057
    %v4783 = vunpack.c.h.b16 %v4057
    %v4784 = vunpack.c.l.b16 %v4058
    %v4785 = vunpack.c.h.b16 %v4058
    %v4786 = vunpack.c.l.b16 %v4059
    %v4787 = vunpack.c.h.b16 %v4059
    %v4788 = vunpack.c.l.b16 %v4060
    %v4789 = vunpack.c.h.b16 %v4060
    %v4790 = vunpack.c.l.b16 %v4061
    %v4791 = vunpack.c.h.b16 %v4061
    %v4792 = vunpack.c.l.b16 %v4062
    %v4793 = vunpack.c.h.b16 %v4062
    %v4794 = vunpack.c.l.b16 %v4063
    %v4795 = vunpack.c.h.b16 %v4063
    %v4796 = vunpack.c.l.b16 %v4064
    %v4797 = vunpack.c.h.b16 %v4064
    %v4798 = vunpack.c.l.b16 %v4065
    %v4799 = vunpack.c.h.b16 %v4065
    %v4800 = vunpack.c.l.b16 %v4066
    %v4801 = vunpack.c.h.b16 %v4066
    %v4802 = vunpack.c.l.b16 %v4067
    %v4803 = vunpack.c.h.b16 %v4067
    %v4804 = vunpack.c.l.b16 %v4068
    %v4805 = vunpack.c.h.b16 %v4068
    %v4806 = vunpack.c.l.b16 %v4069
    %v4807 = vunpack.c.h.b16 %v4069
    %v4808 = vunpack.c.l.b16 %v4070
    %v4809 = vunpack.c.h.b16 %v4070
    %v4810 = vunpack.c.l.b16 %v4071
    %v4811 = vunpack.c.h.b16 %v4071
    %v4812 = vunpack.c.l.b16 %v4072
    %v4813 = vunpack.c.h.b16 %v4072
    %v4814 = vunpack.c.l.b16 %v4073
    %v4815 = vunpack.c.h.b16 %v4073
    %v4816 = vunpack.c.l.b16 %v4074
    %v4817 = vunpack.c.h.b16 %v4074
    %v4818 = vunpack.c.l.b16 %v4075
    %v4819 = vunpack.c.h.b16 %v4075
    %v4820 = vunpack.c.l.b16 %v4076
    %v4821 = vunpack.c.h.b16 %v4076
    %v4822 = vunpack.c.l.b16 %v4077
    %v4823 = vunpack.c.h.b16 %v4077
    %v4824 = vunpack.c.l.b16 %v4078
    %v4825 = vunpack.c.h.b16 %v4078
    %v4826 = vunpack.c.l.b16 %v4079
    %v4827 = vunpack.c.h.b16 %v4079
    %v4828 = vunpack.c.l.b16 %v4080
    %v4829 = vunpack.c.h.b16 %v4080
    %v4830 = vunpack.c.l.b16 %v4081
    %v4831 = vunpack.c.h.b16 %v4081
    %v4832 = vunpack.c.l.b16 %v4082
    %v4833 = vunpack.c.h.b16 %v4082
    %v4834 = vunpack.c.l.b16 %v4083
    %v4835 = vunpack.c.h.b16 %v4083
    %v4836 = vunpack.c.l.b16 %v4084
    %v4837 = vunpack.c.h.b16 %v4084
    %v4838 = vunpack.c.l.b16 %v4085
    %v4839 = vunpack.c.h.b16 %v4085
    %v4840 = vunpack.c.l.b16 %v4086
    %v4841 = vunpack.c.h.b16 %v4086
    %v4842 = vunpack.c.l.b16 %v4087
    %v4843 = vunpack.c.h.b16 %v4087
    %v4844 = vunpack.c.l.b16 %v4088
    %v4845 = vunpack.c.h.b16 %v4088
    %v4846 = vunpack.c.l.b16 %v4089
    %v4847 = vunpack.c.h.b16 %v4089
    %v4848 = vunpack.c.l.b16 %v4090
    %v4849 = vunpack.c.h.b16 %v4090
    %v4850 = vunpack.c.l.b16 %v4091
    %v4851 = vunpack.c.h.b16 %v4091
    %v4852 = vunpack.c.l.b16 %v4092
    %v4853 = vunpack.c.h.b16 %v4092
    %v4854 = vunpack.c.l.b16 %v4093
    %v4855 = vunpack.c.h.b16 %v4093
    %v4856 = vunpack.c.l.b16 %v4094
    %v4857 = vunpack.c.h.b16 %v4094
    %v4858 = vunpack.c.l.b16 %v4095
    %v4859 = vunpack.c.h.b16 %v4095
    %v4860 = vunpack.c.l.b16 %v4096
    %v4861 = vunpack.c.h.b16 %v4096
    %v4862 = vunpack.c.l.b16 %v4097
    %v4863 = vunpack.c.h.b16 %v4097
    %v4864 = vunpack.c.l.b16 %v4098
    %v4865 = vunpack.c.h.b16 %v4098
    %v4866 = vunpack.c.l.b16 %v4099
    %v4867 = vunpack.c.h.b16 %v4099
    %v4868 = vunpack.c.l.b16 %v4100
    %v4869 = vunpack.c.h.b16 %v4100
    %v4870 = vunpack.c.l.b16 %v4101
    %v4871 = vunpack.c.h.b16 %v4101
    %v4872 = vunpack.c.l.b16 %v4102
    %v4873 = vunpack.c.h.b16 %v4102
    %v4874 = vunpack.c.l.b16 %v4103
    %v4875 = vunpack.c.h.b16 %v4103
    %v4876 = vunpack.c.l.b16 %v4104
    %v4877 = vunpack.c.h.b16 %v4104
    %v4878 = vunpack.c.l.b16 %v4105
    %v4879 = vunpack.c.h.b16 %v4105
    %v4880 = vunpack.c.l.b16 %v4106
    %v4881 = vunpack.c.h.b16 %v4106
    %v4882 = vunpack.c.l.b16 %v4107
    %v4883 = vunpack.c.h.b16 %v4107
    %v4884 = vunpack.c.l.b16 %v4108
    %v4885 = vunpack.c.h.b16 %v4108
    %v4886 = vunpack.c.l.b16 %v4109
    %v4887 = vunpack.c.h.b16 %v4109
    %v4888 = vunpack.c.l.b16 %v4110
    %v4889 = vunpack.c.h.b16 %v4110
    %v4890 = vunpack.c.l.b16 %v4111
    %v4891 = vunpack.c.h.b16 %v4111
    %v4892 = vunpack.c.l.b16 %v4112
    %v4893 = vunpack.c.h.b16 %v4112
    %v4894 = vunpack.c.l.b16 %v4113
    %v4895 = vunpack.c.h.b16 %v4113
    %v4896 = vunpack.c.l.b16 %v4114
    %v4897 = vunpack.c.h.b16 %v4114
    %v4898 = vunpack.c.l.b16 %v4115
    %v4899 = vunpack.c.h.b16 %v4115
    %v4900 = vunpack.c.l.b16 %v4116
    %v4901 = vunpack.c.h.b16 %v4116
    %v4902 = vunpack.c.l.b16 %v4117
    %v4903 = vunpack.c.h.b16 %v4117
    %v4904 = vunpack.c.l.b16 %v4118
    %v4905 = vunpack.c.h.b16 %v4118
    %v4906 = vunpack.c.l.b16 %v4119
    %v4907 = vunpack.c.h.b16 %v4119
    %v4908 = vunpack.c.l.b16 %v4120
    %v4909 = vunpack.c.h.b16 %v4120
    %v4910 = vunpack.c.l.b16 %v4121
    %v4911 = vunpack.c.h.b16 %v4121
    %v4912 = vunpack.c.l.b16 %v4122
    %v4913 = vunpack.c.h.b16 %v4122
    %v4914 = vunpack.c.l.b16 %v4123
    %v4915 = vunpack.c.h.b16 %v4123
    %v4916 = vunpack.c.l.b16 %v4124
    %v4917 = vunpack.c.h.b16 %v4124
    %v4918 = vunpack.c.l.b16 %v4125
    %v4919 = vunpack.c.h.b16 %v4125
    %v4920 = vunpack.c.l.b16 %v4126
    %v4921 = vunpack.c.h.b16 %v4126
    %v4922 = vunpack.c.l.b16 %v4127
    %v4923 = vunpack.c.h.b16 %v4127
    %v4924 = vunpack.c.l.b16 %v4128
    %v4925 = vunpack.c.h.b16 %v4128
    %v4926 = vunpack.c.l.b16 %v4129
    %v4927 = vunpack.c.h.b16 %v4129
    %v4928 = vunpack.c.l.b16 %v4130
    %v4929 = vunpack.c.h.b16 %v4130
    %v4930 = vunpack.c.l.b16 %v4131
    %v4931 = vunpack.c.h.b16 %v4131
    %v4932 = vpack.c.b16 %v4680, %v4676
    %v4933 = vpack.c.b16 %v4681, %v4677
    %v4934 = vpack.c.b16 %v4682, %v4678
    %v4935 = vpack.c.b16 %v4683, %v4679
    %v4936 = vpack.c.b16 %v4688, %v4684
    %v4937 = vpack.c.b16 %v4689, %v4685
    %v4938 = vpack.c.b16 %v4690, %v4686
    %v4939 = vpack.c.b16 %v4691, %v4687
    %v4940 = vpack.c.b16 %v4696, %v4692
    %v4941 = vpack.c.b16 %v4697, %v4693
    %v4942 = vpack.c.b16 %v4698, %v4694
    %v4943 = vpack.c.b16 %v4699, %v4695
    %v4944 = vpack.c.b16 %v4704, %v4700
    %v4945 = vpack.c.b16 %v4705, %v4701
    %v4946 = vpack.c.b16 %v4706, %v4702
    %v4947 = vpack.c.b16 %v4707, %v4703
    %v4948 = vpack.c.b16 %v4712, %v4708
    %v4949 = vpack.c.b16 %v4713, %v4709
    %v4950 = vpack.c.b16 %v4714, %v4710
    %v4951 = vpack.c.b16 %v4715, %v4711
    %v4952 = vpack.c.b16 %v4720, %v4716
    %v4953 = vpack.c.b16 %v4721, %v4717
    %v4954 = vpack.c.b16 %v4722, %v4718
    %v4955 = vpack.c.b16 %v4723, %v4719
    %v4956 = vpack.c.b16 %v4728, %v4724
    %v4957 = vpack.c.b16 %v4729, %v4725
    %v4958 = vpack.c.b16 %v4730, %v4726
    %v4959 = vpack.c.b16 %v4731, %v4727
    %v4960 = vpack.c.b16 %v4736, %v4732
    %v4961 = vpack.c.b16 %v4737, %v4733
    %v4962 = vpack.c.b16 %v4738, %v4734
    %v4963 = vpack.c.b16 %v4739, %v4735
    %v4964 = vpack.c.b16 %v4744, %v4740
    %v4965 = vpack.c.b16 %v4745, %v4741
    %v4966 = vpack.c.b16 %v4746, %v4742
    %v4967 = vpack.c.b16 %v4747, %v4743
    %v4968 = vpack.c.b16 %v4752, %v4748
    %v4969 = vpack.c.b16 %v4753, %v4749
    %v4970 = vpack.c.b16 %v4754, %v4750
    %v4971 = vpack.c.b16 %v4755, %v4751
    %v4972 = vpack.c.b16 %v4760, %v4756
    %v4973 = vpack.c.b16 %v4761, %v4757
    %v4974 = vpack.c.b16 %v4762, %v4758
    %v4975 = vpack.c.b16 %v4763, %v4759
    %v4976 = vpack.c.b16 %v4768, %v4764
    %v4977 = vpack.c.b16 %v4769, %v4765
    %v4978 = vpack.c.b16 %v4770, %v4766
    %v4979 = vpack.c.b16 %v4771, %v4767
    %v4980 = vpack.c.b16 %v4776, %v4772
    %v4981 = vpack.c.b16 %v4777, %v4773
    %v4982 = vpack.c.b16 %v4778, %v4774
    %v4983 = vpack.c.b16 %v4779, %v4775
    %v4984 = vpack.c.b16 %v4784, %v4780
    %v4985 = vpack.c.b16 %v4785, %v4781
    %v4986 = vpack.c.b16 %v4786, %v4782
    %v4987 = vpack.c.b16 %v4787, %v4783
    %v4988 = vpack.c.b16 %v4792, %v4788
    %v4989 = vpack.c.b16 %v4793, %v4789
    %v4990 = vpack.c.b16 %v4794, %v4790
    %v4991 = vpack.c.b16 %v4795, %v4791
    %v4992 = vpack.c.b16 %v4800, %v4796
    %v4993 = vpack.c.b16 %v4801, %v4797
    %v4994 = vpack.c.b16 %v4802, %v4798
    %v4995 = vpack.c.b16 %v4803, %v4799
    %v4996 = vpack.c.b16 %v4808, %v4804
    %v4997 = vpack.c.b16 %v4809, %v4805
    %v4998 = vpack.c.b16 %v4810, %v4806
    %v4999 = vpack.c.b16 %v4811, %v4807
    %v5000 = vpack.c.b16 %v4816, %v4812
    %v5001 = vpack.c.b16 %v4817, %v4813
    %v5002 = vpack.c.b16 %v4818, %v4814
    %v5003 = vpack.c.b16 %v4819, %v4815
    %v5004 = vpack.c.b16 %v4824, %v4820
    %v5005 = vpack.c.b16 %v4825, %v4821
    %v5006 = vpack.c.b16 %v4826, %v4822
    %v5007 = vpack.c.b16 %v4827, %v4823
    %v5008 = vpack.c.b16 %v4832, %v4828
    %v5009 = vpack.c.b16 %v4833, %v4829
    %v5010 = vpack.c.b16 %v4834, %v4830
    %v5011 = vpack.c.b16 %v4835, %v4831
    %v5012 = vpack.c.b16 %v4840, %v4836
    %v5013 = vpack.c.b16 %v4841, %v4837
    %v5014 = vpack.c.b16 %v4842, %v4838
    %v5015 = vpack.c.b16 %v4843, %v4839
    %v5016 = vpack.c.b16 %v4848, %v4844
    %v5017 = vpack.c.b16 %v4849, %v4845
    %v5018 = vpack.c.b16 %v4850, %v4846
    %v5019 = vpack.c.b16 %v4851, %v4847
    %v5020 = vpack.c.b16 %v4856, %v4852
    %v5021 = vpack.c.b16 %v4857, %v4853
    %v5022 = vpack.c.b16 %v4858, %v4854
    %v5023 = vpack.c.b16 %v4859, %v4855
    %v5024 = vpack.c.b16 %v4864, %v4860
    %v5025 = vpack.c.b16 %v4865, %v4861
    %v5026 = vpack.c.b16 %v4866, %v4862
    %v5027 = vpack.c.b16 %v4867, %v4863
    %v5028 = vpack.c.b16 %v4872, %v4868
    %v5029 = vpack.c.b16 %v4873, %v4869
    %v5030 = vpack.c.b16 %v4874, %v4870
    %v5031 = vpack.c.b16 %v4875, %v4871
    %v5032 = vpack.c.b16 %v4880, %v4876
    %v5033 = vpack.c.b16 %v4881, %v4877
    %v5034 = vpack.c.b16 %v4882, %v4878
    %v5035 = vpack.c.b16 %v4883, %v4879
    %v5036 = vpack.c.b16 %v4888, %v4884
    %v5037 = vpack.c.b16 %v4889, %v4885
    %v5038 = vpack.c.b16 %v4890, %v4886
    %v5039 = vpack.c.b16 %v4891, %v4887
    %v5040 = vpack.c.b16 %v4896, %v4892
    %v5041 = vpack.c.b16 %v4897, %v4893
    %v5042 = vpack.c.b16 %v4898, %v4894
    %v5043 = vpack.c.b16 %v4899, %v4895
    %v5044 = vpack.c.b16 %v4904, %v4900
    %v5045 = vpack.c.b16 %v4905, %v4901
    %v5046 = vpack.c.b16 %v4906, %v4902
    %v5047 = vpack.c.b16 %v4907, %v4903
    %v5048 = vpack.c.b16 %v4912, %v4908
    %v5049 = vpack.c.b16 %v4913, %v4909
    %v5050 = vpack.c.b16 %v4914, %v4910
    %v5051 = vpack.c.b16 %v4915, %v4911
    %v5052 = vpack.c.b16 %v4920, %v4916
    %v5053 = vpack.c.b16 %v4921, %v4917
    %v5054 = vpack.c.b16 %v4922, %v4918
    %v5055 = vpack.c.b16 %v4923, %v4919
    %v5056 = vpack.c.b16 %v4928, %v4924
    %v5057 = vpack.c.b16 %v4929, %v4925
    %v5058 = vpack.c.b16 %v4930, %v4926
    %v5059 = vpack.c.b16 %v4931, %v4927
    %5188 = vmatprep.subr.bf16.mxu0 0
    %5189 = vmatpush1.bf16.msra.mxu0 %v4139
    %5190 = vmatprep.subr.bf16.mxu0 0
    %5191 = vmatpush1.bf16.msra.mxu0 %v4138
    %5192 = vmatprep.subr.bf16.mxu0 0
    %5193 = vmatpush1.bf16.msra.mxu0 %v4137
    %5194 = vmatprep.subr.bf16.mxu0 0
    %5195 = vmatpush1.bf16.msra.mxu0 %v4136
    %5196 = vmatprep.subr.bf16.mxu0 0
    %5197 = vmatpush1.bf16.msra.mxu0 %v4135
    %5198 = vmatprep.subr.bf16.mxu0 0
    %5199 = vmatpush1.bf16.msra.mxu0 %v4134
    %5200 = vmatprep.subr.bf16.mxu0 0
    %5201 = vmatpush1.bf16.msra.mxu0 %v4133
    %5202 = vmatprep.subr.bf16.mxu0 0
    %5203 = vmatpush1.bf16.msra.mxu0 %v4132
    %5204 = vmatprep.subr.bf16.mxu0 0
    %5205 = vmatpush2.bf16.msra.mxu0 %v4147
    %5206 = vmatprep.subr.bf16.mxu0 0
    %5207 = vmatpush2.bf16.msra.mxu0 %v4146
    %5208 = vmatprep.subr.bf16.mxu0 0
    %5209 = vmatpush2.bf16.msra.mxu0 %v4145
    %5210 = vmatprep.subr.bf16.mxu0 0
    %5211 = vmatpush2.bf16.msra.mxu0 %v4144
    %5212 = vmatprep.subr.bf16.mxu0 0
    %5213 = vmatpush2.bf16.msra.mxu0 %v4143
    %5214 = vmatprep.subr.bf16.mxu0 0
    %5215 = vmatpush2.bf16.msra.mxu0 %v4142
    %5216 = vmatprep.subr.bf16.mxu0 0
    %5217 = vmatpush2.bf16.msra.mxu0 %v4141
    %5218 = vmatprep.subr.bf16.mxu0 0
    %5219 = vmatpush2.bf16.msra.mxu0 %v4140
    %5220 = vmatprep.mubr.bf16.mxu0 %v4933
    %5221 = vmatmul.mubr.bf16.gmra.mxu0 %v4932
    %v5222 = vpop.f32.mrf.mxu0
    %v5223 = vadd.f32 %v4231, %v5222
    %v5224 = vpop.f32.mrf.mxu0
    %v5225 = vpop.f32.mrf.mxu0
    %v5226 = vadd.f32 %v4236, %v5225
    %v5227 = vpop.f32.mrf.mxu0
    %5228 = vmatprep.mubr.bf16.mxu0 %v4937
    %5229 = vmatmul.mubr.bf16.gmra.mxu0 %v4936
    %v5230 = vpop.f32.mrf.mxu0
    %v5231 = vadd.f32 %v4241, %v5230
    %v5232 = vpop.f32.mrf.mxu0
    %v5233 = vpop.f32.mrf.mxu0
    %v5234 = vadd.f32 %v4246, %v5233
    %v5235 = vpop.f32.mrf.mxu0
    %5236 = vmatprep.mubr.bf16.mxu0 %v4941
    %5237 = vmatmul.mubr.bf16.gmra.mxu0 %v4940
    %v5238 = vpop.f32.mrf.mxu0
    %v5239 = vadd.f32 %v4251, %v5238
    %v5240 = vpop.f32.mrf.mxu0
    %v5241 = vpop.f32.mrf.mxu0
    %v5242 = vadd.f32 %v4256, %v5241
    %v5243 = vpop.f32.mrf.mxu0
    %5244 = vmatprep.mubr.bf16.mxu0 %v4945
    %5245 = vmatmul.mubr.bf16.gmra.mxu0 %v4944
    %v5246 = vpop.f32.mrf.mxu0
    %v5247 = vadd.f32 %v4261, %v5246
    %v5248 = vpop.f32.mrf.mxu0
    %v5249 = vpop.f32.mrf.mxu0
    %v5250 = vadd.f32 %v4266, %v5249
    %v5251 = vpop.f32.mrf.mxu0
    %5252 = vmatprep.mubr.bf16.mxu0 %v4949
    %5253 = vmatmul.mubr.bf16.gmra.mxu0 %v4948
    %v5254 = vpop.f32.mrf.mxu0
    %v5255 = vadd.f32 %v4271, %v5254
    %v5256 = vpop.f32.mrf.mxu0
    %v5257 = vpop.f32.mrf.mxu0
    %v5258 = vadd.f32 %v4276, %v5257
    %v5259 = vpop.f32.mrf.mxu0
    %5260 = vmatprep.mubr.bf16.mxu0 %v4953
    %5261 = vmatmul.mubr.bf16.gmra.mxu0 %v4952
    %v5262 = vpop.f32.mrf.mxu0
    %v5263 = vadd.f32 %v4281, %v5262
    %v5264 = vpop.f32.mrf.mxu0
    %v5265 = vpop.f32.mrf.mxu0
    %v5266 = vadd.f32 %v4286, %v5265
    %v5267 = vpop.f32.mrf.mxu0
    %5268 = vmatprep.mubr.bf16.mxu0 %v4957
    %5269 = vmatmul.mubr.bf16.gmra.mxu0 %v4956
    %v5270 = vpop.f32.mrf.mxu0
    %v5271 = vadd.f32 %v4291, %v5270
    %v5272 = vpop.f32.mrf.mxu0
    %v5273 = vpop.f32.mrf.mxu0
    %v5274 = vadd.f32 %v4296, %v5273
    %v5275 = vpop.f32.mrf.mxu0
    %5276 = vmatprep.mubr.bf16.mxu0 %v4961
    %5277 = vmatmul.mubr.bf16.gmra.mxu0 %v4960
    %v5278 = vpop.f32.mrf.mxu0
    %v5279 = vadd.f32 %v4301, %v5278
    %v5280 = vpop.f32.mrf.mxu0
    %v5281 = vpop.f32.mrf.mxu0
    %v5282 = vadd.f32 %v4306, %v5281
    %v5283 = vpop.f32.mrf.mxu0
    %5284 = vmatprep.mubr.bf16.mxu0 %v4965
    %5285 = vmatmul.mubr.bf16.gmra.mxu0 %v4964
    %v5286 = vpop.f32.mrf.mxu0
    %v5287 = vadd.f32 %v4311, %v5286
    %v5288 = vpop.f32.mrf.mxu0
    %v5289 = vpop.f32.mrf.mxu0
    %v5290 = vadd.f32 %v4316, %v5289
    %v5291 = vpop.f32.mrf.mxu0
    %5292 = vmatprep.mubr.bf16.mxu0 %v4969
    %5293 = vmatmul.mubr.bf16.gmra.mxu0 %v4968
    %v5294 = vpop.f32.mrf.mxu0
    %v5295 = vadd.f32 %v4321, %v5294
    %v5296 = vpop.f32.mrf.mxu0
    %v5297 = vpop.f32.mrf.mxu0
    %v5298 = vadd.f32 %v4326, %v5297
    %v5299 = vpop.f32.mrf.mxu0
    %5300 = vmatprep.mubr.bf16.mxu0 %v4973
    %5301 = vmatmul.mubr.bf16.gmra.mxu0 %v4972
    %v5302 = vpop.f32.mrf.mxu0
    %v5303 = vadd.f32 %v4331, %v5302
    %v5304 = vpop.f32.mrf.mxu0
    %v5305 = vpop.f32.mrf.mxu0
    %v5306 = vadd.f32 %v4336, %v5305
    %v5307 = vpop.f32.mrf.mxu0
    %5308 = vmatprep.mubr.bf16.mxu0 %v4977
    %5309 = vmatmul.mubr.bf16.gmra.mxu0 %v4976
    %v5310 = vpop.f32.mrf.mxu0
    %v5311 = vadd.f32 %v4341, %v5310
    %v5312 = vpop.f32.mrf.mxu0
    %v5313 = vpop.f32.mrf.mxu0
    %v5314 = vadd.f32 %v4346, %v5313
    %v5315 = vpop.f32.mrf.mxu0
    %5316 = vmatprep.mubr.bf16.mxu0 %v4981
    %5317 = vmatmul.mubr.bf16.gmra.mxu0 %v4980
    %v5318 = vpop.f32.mrf.mxu0
    %v5319 = vadd.f32 %v4351, %v5318
    %v5320 = vpop.f32.mrf.mxu0
    %v5321 = vpop.f32.mrf.mxu0
    %v5322 = vadd.f32 %v4356, %v5321
    %v5323 = vpop.f32.mrf.mxu0
    %5324 = vmatprep.mubr.bf16.mxu0 %v4985
    %5325 = vmatmul.mubr.bf16.gmra.mxu0 %v4984
    %v5326 = vpop.f32.mrf.mxu0
    %v5327 = vadd.f32 %v4361, %v5326
    %v5328 = vpop.f32.mrf.mxu0
    %v5329 = vpop.f32.mrf.mxu0
    %v5330 = vadd.f32 %v4366, %v5329
    %v5331 = vpop.f32.mrf.mxu0
    %5332 = vmatprep.mubr.bf16.mxu0 %v4989
    %5333 = vmatmul.mubr.bf16.gmra.mxu0 %v4988
    %v5334 = vpop.f32.mrf.mxu0
    %v5335 = vadd.f32 %v4371, %v5334
    %v5336 = vpop.f32.mrf.mxu0
    %v5337 = vpop.f32.mrf.mxu0
    %v5338 = vadd.f32 %v4376, %v5337
    %v5339 = vpop.f32.mrf.mxu0
    %5340 = vmatprep.mubr.bf16.mxu0 %v4993
    %5341 = vmatmul.mubr.bf16.gmra.mxu0 %v4992
    %v5342 = vpop.f32.mrf.mxu0
    %v5343 = vadd.f32 %v4381, %v5342
    %v5344 = vpop.f32.mrf.mxu0
    %v5345 = vpop.f32.mrf.mxu0
    %v5346 = vadd.f32 %v4386, %v5345
    %v5347 = vpop.f32.mrf.mxu0
    %5348 = vmatprep.mubr.bf16.mxu0 %v4997
    %5349 = vmatmul.mubr.bf16.gmra.mxu0 %v4996
    %v5350 = vpop.f32.mrf.mxu0
    %v5351 = vadd.f32 %v4391, %v5350
    %v5352 = vpop.f32.mrf.mxu0
    %v5353 = vpop.f32.mrf.mxu0
    %v5354 = vadd.f32 %v4396, %v5353
    %v5355 = vpop.f32.mrf.mxu0
    %5356 = vmatprep.mubr.bf16.mxu0 %v5001
    %5357 = vmatmul.mubr.bf16.gmra.mxu0 %v5000
    %v5358 = vpop.f32.mrf.mxu0
    %v5359 = vadd.f32 %v4401, %v5358
    %v5360 = vpop.f32.mrf.mxu0
    %v5361 = vpop.f32.mrf.mxu0
    %v5362 = vadd.f32 %v4406, %v5361
    %v5363 = vpop.f32.mrf.mxu0
    %5364 = vmatprep.mubr.bf16.mxu0 %v5005
    %5365 = vmatmul.mubr.bf16.gmra.mxu0 %v5004
    %v5366 = vpop.f32.mrf.mxu0
    %v5367 = vadd.f32 %v4411, %v5366
    %v5368 = vpop.f32.mrf.mxu0
    %v5369 = vpop.f32.mrf.mxu0
    %v5370 = vadd.f32 %v4416, %v5369
    %v5371 = vpop.f32.mrf.mxu0
    %5372 = vmatprep.mubr.bf16.mxu0 %v5009
    %5373 = vmatmul.mubr.bf16.gmra.mxu0 %v5008
    %v5374 = vpop.f32.mrf.mxu0
    %v5375 = vadd.f32 %v4421, %v5374
    %v5376 = vpop.f32.mrf.mxu0
    %v5377 = vpop.f32.mrf.mxu0
    %v5378 = vadd.f32 %v4426, %v5377
    %v5379 = vpop.f32.mrf.mxu0
    %5380 = vmatprep.mubr.bf16.mxu0 %v5013
    %5381 = vmatmul.mubr.bf16.gmra.mxu0 %v5012
    %v5382 = vpop.f32.mrf.mxu0
    %v5383 = vadd.f32 %v4431, %v5382
    %v5384 = vpop.f32.mrf.mxu0
    %v5385 = vpop.f32.mrf.mxu0
    %v5386 = vadd.f32 %v4436, %v5385
    %v5387 = vpop.f32.mrf.mxu0
    %5388 = vmatprep.mubr.bf16.mxu0 %v5017
    %5389 = vmatmul.mubr.bf16.gmra.mxu0 %v5016
    %v5390 = vpop.f32.mrf.mxu0
    %v5391 = vadd.f32 %v4441, %v5390
    %v5392 = vpop.f32.mrf.mxu0
    %v5393 = vpop.f32.mrf.mxu0
    %v5394 = vadd.f32 %v4446, %v5393
    %v5395 = vpop.f32.mrf.mxu0
    %5396 = vmatprep.mubr.bf16.mxu0 %v5021
    %5397 = vmatmul.mubr.bf16.gmra.mxu0 %v5020
    %v5398 = vpop.f32.mrf.mxu0
    %v5399 = vadd.f32 %v4451, %v5398
    %v5400 = vpop.f32.mrf.mxu0
    %v5401 = vpop.f32.mrf.mxu0
    %v5402 = vadd.f32 %v4456, %v5401
    %v5403 = vpop.f32.mrf.mxu0
    %5404 = vmatprep.mubr.bf16.mxu0 %v5025
    %5405 = vmatmul.mubr.bf16.gmra.mxu0 %v5024
    %v5406 = vpop.f32.mrf.mxu0
    %v5407 = vadd.f32 %v4461, %v5406
    %v5408 = vpop.f32.mrf.mxu0
    %v5409 = vpop.f32.mrf.mxu0
    %v5410 = vadd.f32 %v4466, %v5409
    %v5411 = vpop.f32.mrf.mxu0
    %5412 = vmatprep.mubr.bf16.mxu0 %v5029
    %5413 = vmatmul.mubr.bf16.gmra.mxu0 %v5028
    %v5414 = vpop.f32.mrf.mxu0
    %v5415 = vadd.f32 %v4471, %v5414
    %v5416 = vpop.f32.mrf.mxu0
    %v5417 = vpop.f32.mrf.mxu0
    %v5418 = vadd.f32 %v4476, %v5417
    %v5419 = vpop.f32.mrf.mxu0
    %5420 = vmatprep.mubr.bf16.mxu0 %v5033
    %5421 = vmatmul.mubr.bf16.gmra.mxu0 %v5032
    %v5422 = vpop.f32.mrf.mxu0
    %v5423 = vadd.f32 %v4481, %v5422
    %v5424 = vpop.f32.mrf.mxu0
    %v5425 = vpop.f32.mrf.mxu0
    %v5426 = vadd.f32 %v4486, %v5425
    %v5427 = vpop.f32.mrf.mxu0
    %5428 = vmatprep.mubr.bf16.mxu0 %v5037
    %5429 = vmatmul.mubr.bf16.gmra.mxu0 %v5036
    %v5430 = vpop.f32.mrf.mxu0
    %v5431 = vadd.f32 %v4491, %v5430
    %v5432 = vpop.f32.mrf.mxu0
    %v5433 = vpop.f32.mrf.mxu0
    %v5434 = vadd.f32 %v4496, %v5433
    %v5435 = vpop.f32.mrf.mxu0
    %5436 = vmatprep.mubr.bf16.mxu0 %v5041
    %5437 = vmatmul.mubr.bf16.gmra.mxu0 %v5040
    %v5438 = vpop.f32.mrf.mxu0
    %v5439 = vadd.f32 %v4501, %v5438
    %v5440 = vpop.f32.mrf.mxu0
    %v5441 = vpop.f32.mrf.mxu0
    %v5442 = vadd.f32 %v4506, %v5441
    %v5443 = vpop.f32.mrf.mxu0
    %5444 = vmatprep.mubr.bf16.mxu0 %v5045
    %5445 = vmatmul.mubr.bf16.gmra.mxu0 %v5044
    %v5446 = vpop.f32.mrf.mxu0
    %v5447 = vadd.f32 %v4511, %v5446
    %v5448 = vpop.f32.mrf.mxu0
    %v5449 = vpop.f32.mrf.mxu0
    %v5450 = vadd.f32 %v4516, %v5449
    %v5451 = vpop.f32.mrf.mxu0
    %5452 = vmatprep.mubr.bf16.mxu0 %v5049
    %5453 = vmatmul.mubr.bf16.gmra.mxu0 %v5048
    %v5454 = vpop.f32.mrf.mxu0
    %v5455 = vadd.f32 %v4521, %v5454
    %v5456 = vpop.f32.mrf.mxu0
    %v5457 = vpop.f32.mrf.mxu0
    %v5458 = vadd.f32 %v4526, %v5457
    %v5459 = vpop.f32.mrf.mxu0
    %5460 = vmatprep.mubr.bf16.mxu0 %v5053
    %5461 = vmatmul.mubr.bf16.gmra.mxu0 %v5052
    %v5462 = vpop.f32.mrf.mxu0
    %v5463 = vadd.f32 %v4531, %v5462
    %v5464 = vpop.f32.mrf.mxu0
    %v5465 = vpop.f32.mrf.mxu0
    %v5466 = vadd.f32 %v4536, %v5465
    %v5467 = vpop.f32.mrf.mxu0
    %5468 = vmatprep.mubr.bf16.mxu0 %v5057
    %5469 = vmatmul.mubr.bf16.gmra.mxu0 %v5056
    %v5470 = vpop.f32.mrf.mxu0
    %v5471 = vadd.f32 %v4541, %v5470
    %v5472 = vpop.f32.mrf.mxu0
    %v5473 = vpop.f32.mrf.mxu0
    %v5474 = vadd.f32 %v4546, %v5473
    %v5475 = vpop.f32.mrf.mxu0
    %5476 = vdwg.mxu0
    %5477 = vmatprep.subr.bf16.mxu0 0
    %5478 = vmatpush1.bf16.msra.mxu0 %v4155
    %5479 = vmatprep.subr.bf16.mxu0 0
    %5480 = vmatpush1.bf16.msra.mxu0 %v4154
    %5481 = vmatprep.subr.bf16.mxu0 0
    %5482 = vmatpush1.bf16.msra.mxu0 %v4153
    %5483 = vmatprep.subr.bf16.mxu0 0
    %5484 = vmatpush1.bf16.msra.mxu0 %v4152
    %5485 = vmatprep.subr.bf16.mxu0 0
    %5486 = vmatpush1.bf16.msra.mxu0 %v4151
    %5487 = vmatprep.subr.bf16.mxu0 0
    %5488 = vmatpush1.bf16.msra.mxu0 %v4150
    %5489 = vmatprep.subr.bf16.mxu0 0
    %5490 = vmatpush1.bf16.msra.mxu0 %v4149
    %5491 = vmatprep.subr.bf16.mxu0 0
    %5492 = vmatpush1.bf16.msra.mxu0 %v4148
    %5493 = vmatprep.subr.bf16.mxu0 0
    %5494 = vmatpush2.bf16.msra.mxu0 %v4163
    %5495 = vmatprep.subr.bf16.mxu0 0
    %5496 = vmatpush2.bf16.msra.mxu0 %v4162
    %5497 = vmatprep.subr.bf16.mxu0 0
    %5498 = vmatpush2.bf16.msra.mxu0 %v4161
    %5499 = vmatprep.subr.bf16.mxu0 0
    %5500 = vmatpush2.bf16.msra.mxu0 %v4160
    %5501 = vmatprep.subr.bf16.mxu0 0
    %5502 = vmatpush2.bf16.msra.mxu0 %v4159
    %5503 = vmatprep.subr.bf16.mxu0 0
    %5504 = vmatpush2.bf16.msra.mxu0 %v4158
    %5505 = vmatprep.subr.bf16.mxu0 0
    %5506 = vmatpush2.bf16.msra.mxu0 %v4157
    %5507 = vmatprep.subr.bf16.mxu0 0
    %5508 = vmatpush2.bf16.msra.mxu0 %v4156
    %5509 = vmatprep.mubr.bf16.mxu0 %v4935
    %5510 = vmatmul.mubr.bf16.gmra.mxu0 %v4934
    %v5511 = vpop.f32.mrf.mxu0
    %v5512 = vadd.f32 %v5223, %v5511
    %v5513 = vpop.f32.mrf.mxu0
    %v5514 = vpop.f32.mrf.mxu0
    %v5515 = vadd.f32 %v5226, %v5514
    %v5516 = vpop.f32.mrf.mxu0
    %5517 = vmatprep.mubr.bf16.mxu0 %v4939
    %5518 = vmatmul.mubr.bf16.gmra.mxu0 %v4938
    %v5519 = vpop.f32.mrf.mxu0
    %v5520 = vadd.f32 %v5231, %v5519
    %v5521 = vpop.f32.mrf.mxu0
    %v5522 = vpop.f32.mrf.mxu0
    %v5523 = vadd.f32 %v5234, %v5522
    %v5524 = vpop.f32.mrf.mxu0
    %5525 = vmatprep.mubr.bf16.mxu0 %v4943
    %5526 = vmatmul.mubr.bf16.gmra.mxu0 %v4942
    %v5527 = vpop.f32.mrf.mxu0
    %v5528 = vadd.f32 %v5239, %v5527
    %v5529 = vpop.f32.mrf.mxu0
    %v5530 = vpop.f32.mrf.mxu0
    %v5531 = vadd.f32 %v5242, %v5530
    %v5532 = vpop.f32.mrf.mxu0
    %5533 = vmatprep.mubr.bf16.mxu0 %v4947
    %5534 = vmatmul.mubr.bf16.gmra.mxu0 %v4946
    %v5535 = vpop.f32.mrf.mxu0
    %v5536 = vadd.f32 %v5247, %v5535
    %v5537 = vpop.f32.mrf.mxu0
    %v5538 = vpop.f32.mrf.mxu0
    %v5539 = vadd.f32 %v5250, %v5538
    %v5540 = vpop.f32.mrf.mxu0
    %5541 = vmatprep.mubr.bf16.mxu0 %v4951
    %5542 = vmatmul.mubr.bf16.gmra.mxu0 %v4950
    %v5543 = vpop.f32.mrf.mxu0
    %v5544 = vadd.f32 %v5255, %v5543
    %v5545 = vpop.f32.mrf.mxu0
    %v5546 = vpop.f32.mrf.mxu0
    %v5547 = vadd.f32 %v5258, %v5546
    %v5548 = vpop.f32.mrf.mxu0
    %5549 = vmatprep.mubr.bf16.mxu0 %v4955
    %5550 = vmatmul.mubr.bf16.gmra.mxu0 %v4954
    %v5551 = vpop.f32.mrf.mxu0
    %v5552 = vadd.f32 %v5263, %v5551
    %v5553 = vpop.f32.mrf.mxu0
    %v5554 = vpop.f32.mrf.mxu0
    %v5555 = vadd.f32 %v5266, %v5554
    %v5556 = vpop.f32.mrf.mxu0
    %5557 = vmatprep.mubr.bf16.mxu0 %v4959
    %5558 = vmatmul.mubr.bf16.gmra.mxu0 %v4958
    %v5559 = vpop.f32.mrf.mxu0
    %v5560 = vadd.f32 %v5271, %v5559
    %v5561 = vpop.f32.mrf.mxu0
    %v5562 = vpop.f32.mrf.mxu0
    %v5563 = vadd.f32 %v5274, %v5562
    %v5564 = vpop.f32.mrf.mxu0
    %5565 = vmatprep.mubr.bf16.mxu0 %v4963
    %5566 = vmatmul.mubr.bf16.gmra.mxu0 %v4962
    %v5567 = vpop.f32.mrf.mxu0
    %v5568 = vadd.f32 %v5279, %v5567
    %v5569 = vpop.f32.mrf.mxu0
    %v5570 = vpop.f32.mrf.mxu0
    %v5571 = vadd.f32 %v5282, %v5570
    %v5572 = vpop.f32.mrf.mxu0
    %5573 = vmatprep.mubr.bf16.mxu0 %v4967
    %5574 = vmatmul.mubr.bf16.gmra.mxu0 %v4966
    %v5575 = vpop.f32.mrf.mxu0
    %v5576 = vadd.f32 %v5287, %v5575
    %v5577 = vpop.f32.mrf.mxu0
    %v5578 = vpop.f32.mrf.mxu0
    %v5579 = vadd.f32 %v5290, %v5578
    %v5580 = vpop.f32.mrf.mxu0
    %5581 = vmatprep.mubr.bf16.mxu0 %v4971
    %5582 = vmatmul.mubr.bf16.gmra.mxu0 %v4970
    %v5583 = vpop.f32.mrf.mxu0
    %v5584 = vadd.f32 %v5295, %v5583
    %v5585 = vpop.f32.mrf.mxu0
    %v5586 = vpop.f32.mrf.mxu0
    %v5587 = vadd.f32 %v5298, %v5586
    %v5588 = vpop.f32.mrf.mxu0
    %5589 = vmatprep.mubr.bf16.mxu0 %v4975
    %5590 = vmatmul.mubr.bf16.gmra.mxu0 %v4974
    %v5591 = vpop.f32.mrf.mxu0
    %v5592 = vadd.f32 %v5303, %v5591
    %v5593 = vpop.f32.mrf.mxu0
    %v5594 = vpop.f32.mrf.mxu0
    %v5595 = vadd.f32 %v5306, %v5594
    %v5596 = vpop.f32.mrf.mxu0
    %5597 = vmatprep.mubr.bf16.mxu0 %v4979
    %5598 = vmatmul.mubr.bf16.gmra.mxu0 %v4978
    %v5599 = vpop.f32.mrf.mxu0
    %v5600 = vadd.f32 %v5311, %v5599
    %v5601 = vpop.f32.mrf.mxu0
    %v5602 = vpop.f32.mrf.mxu0
    %v5603 = vadd.f32 %v5314, %v5602
    %v5604 = vpop.f32.mrf.mxu0
    %5605 = vmatprep.mubr.bf16.mxu0 %v4983
    %5606 = vmatmul.mubr.bf16.gmra.mxu0 %v4982
    %v5607 = vpop.f32.mrf.mxu0
    %v5608 = vadd.f32 %v5319, %v5607
    %v5609 = vpop.f32.mrf.mxu0
    %v5610 = vpop.f32.mrf.mxu0
    %v5611 = vadd.f32 %v5322, %v5610
    %v5612 = vpop.f32.mrf.mxu0
    %5613 = vmatprep.mubr.bf16.mxu0 %v4987
    %5614 = vmatmul.mubr.bf16.gmra.mxu0 %v4986
    %v5615 = vpop.f32.mrf.mxu0
    %v5616 = vadd.f32 %v5327, %v5615
    %v5617 = vpop.f32.mrf.mxu0
    %v5618 = vpop.f32.mrf.mxu0
    %v5619 = vadd.f32 %v5330, %v5618
    %v5620 = vpop.f32.mrf.mxu0
    %5621 = vmatprep.mubr.bf16.mxu0 %v4991
    %5622 = vmatmul.mubr.bf16.gmra.mxu0 %v4990
    %v5623 = vpop.f32.mrf.mxu0
    %v5624 = vadd.f32 %v5335, %v5623
    %v5625 = vpop.f32.mrf.mxu0
    %v5626 = vpop.f32.mrf.mxu0
    %v5627 = vadd.f32 %v5338, %v5626
    %v5628 = vpop.f32.mrf.mxu0
    %5629 = vmatprep.mubr.bf16.mxu0 %v4995
    %5630 = vmatmul.mubr.bf16.gmra.mxu0 %v4994
    %v5631 = vpop.f32.mrf.mxu0
    %v5632 = vadd.f32 %v5343, %v5631
    %v5633 = vpop.f32.mrf.mxu0
    %v5634 = vpop.f32.mrf.mxu0
    %v5635 = vadd.f32 %v5346, %v5634
    %v5636 = vpop.f32.mrf.mxu0
    %5637 = vmatprep.mubr.bf16.mxu0 %v4999
    %5638 = vmatmul.mubr.bf16.gmra.mxu0 %v4998
    %v5639 = vpop.f32.mrf.mxu0
    %v5640 = vadd.f32 %v5351, %v5639
    %v5641 = vpop.f32.mrf.mxu0
    %v5642 = vpop.f32.mrf.mxu0
    %v5643 = vadd.f32 %v5354, %v5642
    %v5644 = vpop.f32.mrf.mxu0
    %5645 = vmatprep.mubr.bf16.mxu0 %v5003
    %5646 = vmatmul.mubr.bf16.gmra.mxu0 %v5002
    %v5647 = vpop.f32.mrf.mxu0
    %v5648 = vadd.f32 %v5359, %v5647
    %v5649 = vpop.f32.mrf.mxu0
    %v5650 = vpop.f32.mrf.mxu0
    %v5651 = vadd.f32 %v5362, %v5650
    %v5652 = vpop.f32.mrf.mxu0
    %5653 = vmatprep.mubr.bf16.mxu0 %v5007
    %5654 = vmatmul.mubr.bf16.gmra.mxu0 %v5006
    %v5655 = vpop.f32.mrf.mxu0
    %v5656 = vadd.f32 %v5367, %v5655
    %v5657 = vpop.f32.mrf.mxu0
    %v5658 = vpop.f32.mrf.mxu0
    %v5659 = vadd.f32 %v5370, %v5658
    %v5660 = vpop.f32.mrf.mxu0
    %5661 = vmatprep.mubr.bf16.mxu0 %v5011
    %5662 = vmatmul.mubr.bf16.gmra.mxu0 %v5010
    %v5663 = vpop.f32.mrf.mxu0
    %v5664 = vadd.f32 %v5375, %v5663
    %v5665 = vpop.f32.mrf.mxu0
    %v5666 = vpop.f32.mrf.mxu0
    %v5667 = vadd.f32 %v5378, %v5666
    %v5668 = vpop.f32.mrf.mxu0
    %5669 = vmatprep.mubr.bf16.mxu0 %v5015
    %5670 = vmatmul.mubr.bf16.gmra.mxu0 %v5014
    %v5671 = vpop.f32.mrf.mxu0
    %v5672 = vadd.f32 %v5383, %v5671
    %v5673 = vpop.f32.mrf.mxu0
    %v5674 = vpop.f32.mrf.mxu0
    %v5675 = vadd.f32 %v5386, %v5674
    %v5676 = vpop.f32.mrf.mxu0
    %5677 = vmatprep.mubr.bf16.mxu0 %v5019
    %5678 = vmatmul.mubr.bf16.gmra.mxu0 %v5018
    %v5679 = vpop.f32.mrf.mxu0
    %v5680 = vadd.f32 %v5391, %v5679
    %v5681 = vpop.f32.mrf.mxu0
    %v5682 = vpop.f32.mrf.mxu0
    %v5683 = vadd.f32 %v5394, %v5682
    %v5684 = vpop.f32.mrf.mxu0
    %5685 = vmatprep.mubr.bf16.mxu0 %v5023
    %5686 = vmatmul.mubr.bf16.gmra.mxu0 %v5022
    %v5687 = vpop.f32.mrf.mxu0
    %v5688 = vadd.f32 %v5399, %v5687
    %v5689 = vpop.f32.mrf.mxu0
    %v5690 = vpop.f32.mrf.mxu0
    %v5691 = vadd.f32 %v5402, %v5690
    %v5692 = vpop.f32.mrf.mxu0
    %5693 = vmatprep.mubr.bf16.mxu0 %v5027
    %5694 = vmatmul.mubr.bf16.gmra.mxu0 %v5026
    %v5695 = vpop.f32.mrf.mxu0
    %v5696 = vadd.f32 %v5407, %v5695
    %v5697 = vpop.f32.mrf.mxu0
    %v5698 = vpop.f32.mrf.mxu0
    %v5699 = vadd.f32 %v5410, %v5698
    %v5700 = vpop.f32.mrf.mxu0
    %5701 = vmatprep.mubr.bf16.mxu0 %v5031
    %5702 = vmatmul.mubr.bf16.gmra.mxu0 %v5030
    %v5703 = vpop.f32.mrf.mxu0
    %v5704 = vadd.f32 %v5415, %v5703
    %v5705 = vpop.f32.mrf.mxu0
    %v5706 = vpop.f32.mrf.mxu0
    %v5707 = vadd.f32 %v5418, %v5706
    %v5708 = vpop.f32.mrf.mxu0
    %5709 = vmatprep.mubr.bf16.mxu0 %v5035
    %5710 = vmatmul.mubr.bf16.gmra.mxu0 %v5034
    %v5711 = vpop.f32.mrf.mxu0
    %v5712 = vadd.f32 %v5423, %v5711
    %v5713 = vpop.f32.mrf.mxu0
    %v5714 = vpop.f32.mrf.mxu0
    %v5715 = vadd.f32 %v5426, %v5714
    %v5716 = vpop.f32.mrf.mxu0
    %5717 = vmatprep.mubr.bf16.mxu0 %v5039
    %5718 = vmatmul.mubr.bf16.gmra.mxu0 %v5038
    %v5719 = vpop.f32.mrf.mxu0
    %v5720 = vadd.f32 %v5431, %v5719
    %v5721 = vpop.f32.mrf.mxu0
    %v5722 = vpop.f32.mrf.mxu0
    %v5723 = vadd.f32 %v5434, %v5722
    %v5724 = vpop.f32.mrf.mxu0
    %5725 = vmatprep.mubr.bf16.mxu0 %v5043
    %5726 = vmatmul.mubr.bf16.gmra.mxu0 %v5042
    %v5727 = vpop.f32.mrf.mxu0
    %v5728 = vadd.f32 %v5439, %v5727
    %v5729 = vpop.f32.mrf.mxu0
    %v5730 = vpop.f32.mrf.mxu0
    %v5731 = vadd.f32 %v5442, %v5730
    %v5732 = vpop.f32.mrf.mxu0
    %5733 = vmatprep.mubr.bf16.mxu0 %v5047
    %5734 = vmatmul.mubr.bf16.gmra.mxu0 %v5046
    %v5735 = vpop.f32.mrf.mxu0
    %v5736 = vadd.f32 %v5447, %v5735
    %v5737 = vpop.f32.mrf.mxu0
    %v5738 = vpop.f32.mrf.mxu0
    %v5739 = vadd.f32 %v5450, %v5738
    %v5740 = vpop.f32.mrf.mxu0
    %5741 = vmatprep.mubr.bf16.mxu0 %v5051
    %5742 = vmatmul.mubr.bf16.gmra.mxu0 %v5050
    %v5743 = vpop.f32.mrf.mxu0
    %v5744 = vadd.f32 %v5455, %v5743
    %v5745 = vpop.f32.mrf.mxu0
    %v5746 = vpop.f32.mrf.mxu0
    %v5747 = vadd.f32 %v5458, %v5746
    %v5748 = vpop.f32.mrf.mxu0
    %5749 = vmatprep.mubr.bf16.mxu0 %v5055
    %5750 = vmatmul.mubr.bf16.gmra.mxu0 %v5054
    %v5751 = vpop.f32.mrf.mxu0
    %v5752 = vadd.f32 %v5463, %v5751
    %v5753 = vpop.f32.mrf.mxu0
    %v5754 = vpop.f32.mrf.mxu0
    %v5755 = vadd.f32 %v5466, %v5754
    %v5756 = vpop.f32.mrf.mxu0
    %5757 = vmatprep.mubr.bf16.mxu0 %v5059
    %5758 = vmatmul.mubr.bf16.gmra.mxu0 %v5058
    %v5759 = vpop.f32.mrf.mxu0
    %v5760 = vadd.f32 %v5471, %v5759
    %v5761 = vpop.f32.mrf.mxu0
    %v5762 = vpop.f32.mrf.mxu0
    %v5763 = vadd.f32 %v5474, %v5762
    %v5764 = vpop.f32.mrf.mxu0
    %5765 = vdwg.mxu0
    %vm5766 = vcmp.ge.f32.partialorder %v5512, 0.0
    %vm5767 = vcmp.ge.f32.partialorder %v5515, 0.0
    %vm5768 = vcmp.ge.f32.partialorder %v5520, 0.0
    %vm5769 = vcmp.ge.f32.partialorder %v5523, 0.0
    %vm5770 = vcmp.ge.f32.partialorder %v5528, 0.0
    %vm5771 = vcmp.ge.f32.partialorder %v5531, 0.0
    %vm5772 = vcmp.ge.f32.partialorder %v5536, 0.0
    %vm5773 = vcmp.ge.f32.partialorder %v5539, 0.0
    %vm5774 = vcmp.ge.f32.partialorder %v5544, 0.0
    %vm5775 = vcmp.ge.f32.partialorder %v5547, 0.0
    %vm5776 = vcmp.ge.f32.partialorder %v5552, 0.0
    %vm5777 = vcmp.ge.f32.partialorder %v5555, 0.0
    %vm5778 = vcmp.ge.f32.partialorder %v5560, 0.0
    %vm5779 = vcmp.ge.f32.partialorder %v5563, 0.0
    %vm5780 = vcmp.ge.f32.partialorder %v5568, 0.0
    %vm5781 = vcmp.ge.f32.partialorder %v5571, 0.0
    %vm5782 = vcmp.ge.f32.partialorder %v5576, 0.0
    %vm5783 = vcmp.ge.f32.partialorder %v5579, 0.0
    %vm5784 = vcmp.ge.f32.partialorder %v5584, 0.0
    %vm5785 = vcmp.ge.f32.partialorder %v5587, 0.0
    %vm5786 = vcmp.ge.f32.partialorder %v5592, 0.0
    %vm5787 = vcmp.ge.f32.partialorder %v5595, 0.0
    %vm5788 = vcmp.ge.f32.partialorder %v5600, 0.0
    %vm5789 = vcmp.ge.f32.partialorder %v5603, 0.0
    %vm5790 = vcmp.ge.f32.partialorder %v5608, 0.0
    %vm5791 = vcmp.ge.f32.partialorder %v5611, 0.0
    %vm5792 = vcmp.ge.f32.partialorder %v5616, 0.0
    %vm5793 = vcmp.ge.f32.partialorder %v5619, 0.0
    %vm5794 = vcmp.ge.f32.partialorder %v5624, 0.0
    %vm5795 = vcmp.ge.f32.partialorder %v5627, 0.0
    %vm5796 = vcmp.ge.f32.partialorder %v5632, 0.0
    %vm5797 = vcmp.ge.f32.partialorder %v5635, 0.0
    %vm5798 = vcmp.ge.f32.partialorder %v5640, 0.0
    %vm5799 = vcmp.ge.f32.partialorder %v5643, 0.0
    %vm5800 = vcmp.ge.f32.partialorder %v5648, 0.0
    %vm5801 = vcmp.ge.f32.partialorder %v5651, 0.0
    %vm5802 = vcmp.ge.f32.partialorder %v5656, 0.0
    %vm5803 = vcmp.ge.f32.partialorder %v5659, 0.0
    %vm5804 = vcmp.ge.f32.partialorder %v5664, 0.0
    %vm5805 = vcmp.ge.f32.partialorder %v5667, 0.0
    %vm5806 = vcmp.ge.f32.partialorder %v5672, 0.0
    %vm5807 = vcmp.ge.f32.partialorder %v5675, 0.0
    %vm5808 = vcmp.ge.f32.partialorder %v5680, 0.0
    %vm5809 = vcmp.ge.f32.partialorder %v5683, 0.0
    %vm5810 = vcmp.ge.f32.partialorder %v5688, 0.0
    %vm5811 = vcmp.ge.f32.partialorder %v5691, 0.0
    %vm5812 = vcmp.ge.f32.partialorder %v5696, 0.0
    %vm5813 = vcmp.ge.f32.partialorder %v5699, 0.0
    %vm5814 = vcmp.ge.f32.partialorder %v5704, 0.0
    %vm5815 = vcmp.ge.f32.partialorder %v5707, 0.0
    %vm5816 = vcmp.ge.f32.partialorder %v5712, 0.0
    %vm5817 = vcmp.ge.f32.partialorder %v5715, 0.0
    %vm5818 = vcmp.ge.f32.partialorder %v5720, 0.0
    %vm5819 = vcmp.ge.f32.partialorder %v5723, 0.0
    %vm5820 = vcmp.ge.f32.partialorder %v5728, 0.0
    %vm5821 = vcmp.ge.f32.partialorder %v5731, 0.0
    %vm5822 = vcmp.ge.f32.partialorder %v5736, 0.0
    %vm5823 = vcmp.ge.f32.partialorder %v5739, 0.0
    %vm5824 = vcmp.ge.f32.partialorder %v5744, 0.0
    %vm5825 = vcmp.ge.f32.partialorder %v5747, 0.0
    %vm5826 = vcmp.ge.f32.partialorder %v5752, 0.0
    %vm5827 = vcmp.ge.f32.partialorder %v5755, 0.0
    %vm5828 = vcmp.ge.f32.partialorder %v5760, 0.0
    %vm5829 = vcmp.ge.f32.partialorder %v5763, 0.0
    %v5830 = vmul.f32 %v5512, 0.2
    %v5831 = vmul.f32 %v5515, 0.2
    %v5832 = vmul.f32 %v5520, 0.2
    %v5833 = vmul.f32 %v5523, 0.2
    %v5834 = vmul.f32 %v5528, 0.2
    %v5835 = vmul.f32 %v5531, 0.2
    %v5836 = vmul.f32 %v5536, 0.2
    %v5837 = vmul.f32 %v5539, 0.2
    %v5838 = vmul.f32 %v5544, 0.2
    %v5839 = vmul.f32 %v5547, 0.2
    %v5840 = vmul.f32 %v5552, 0.2
    %v5841 = vmul.f32 %v5555, 0.2
    %v5842 = vmul.f32 %v5560, 0.2
    %v5843 = vmul.f32 %v5563, 0.2
    %v5844 = vmul.f32 %v5568, 0.2
    %v5845 = vmul.f32 %v5571, 0.2
    %v5846 = vmul.f32 %v5576, 0.2
    %v5847 = vmul.f32 %v5579, 0.2
    %v5848 = vmul.f32 %v5584, 0.2
    %v5849 = vmul.f32 %v5587, 0.2
    %v5850 = vmul.f32 %v5592, 0.2
    %v5851 = vmul.f32 %v5595, 0.2
    %v5852 = vmul.f32 %v5600, 0.2
    %v5853 = vmul.f32 %v5603, 0.2
    %v5854 = vmul.f32 %v5608, 0.2
    %v5855 = vmul.f32 %v5611, 0.2
    %v5856 = vmul.f32 %v5616, 0.2
    %v5857 = vmul.f32 %v5619, 0.2
    %v5858 = vmul.f32 %v5624, 0.2
    %v5859 = vmul.f32 %v5627, 0.2
    %v5860 = vmul.f32 %v5632, 0.2
    %v5861 = vmul.f32 %v5635, 0.2
    %v5862 = vmul.f32 %v5640, 0.2
    %v5863 = vmul.f32 %v5643, 0.2
    %v5864 = vmul.f32 %v5648, 0.2
    %v5865 = vmul.f32 %v5651, 0.2
    %v5866 = vmul.f32 %v5656, 0.2
    %v5867 = vmul.f32 %v5659, 0.2
    %v5868 = vmul.f32 %v5664, 0.2
    %v5869 = vmul.f32 %v5667, 0.2
    %v5870 = vmul.f32 %v5672, 0.2
    %v5871 = vmul.f32 %v5675, 0.2
    %v5872 = vmul.f32 %v5680, 0.2
    %v5873 = vmul.f32 %v5683, 0.2
    %v5874 = vmul.f32 %v5688, 0.2
    %v5875 = vmul.f32 %v5691, 0.2
    %v5876 = vmul.f32 %v5696, 0.2
    %v5877 = vmul.f32 %v5699, 0.2
    %v5878 = vmul.f32 %v5704, 0.2
    %v5879 = vmul.f32 %v5707, 0.2
    %v5880 = vmul.f32 %v5712, 0.2
    %v5881 = vmul.f32 %v5715, 0.2
    %v5882 = vmul.f32 %v5720, 0.2
    %v5883 = vmul.f32 %v5723, 0.2
    %v5884 = vmul.f32 %v5728, 0.2
    %v5885 = vmul.f32 %v5731, 0.2
    %v5886 = vmul.f32 %v5736, 0.2
    %v5887 = vmul.f32 %v5739, 0.2
    %v5888 = vmul.f32 %v5744, 0.2
    %v5889 = vmul.f32 %v5747, 0.2
    %v5890 = vmul.f32 %v5752, 0.2
    %v5891 = vmul.f32 %v5755, 0.2
    %v5892 = vmul.f32 %v5760, 0.2
    %v5893 = vmul.f32 %v5763, 0.2
    %v5894 = vsel %vm5766, %v5512, %v5830
    %v5895 = vsel %vm5767, %v5515, %v5831
    %v5896 = vsel %vm5768, %v5520, %v5832
    %v5897 = vsel %vm5769, %v5523, %v5833
    %v5898 = vsel %vm5770, %v5528, %v5834
    %v5899 = vsel %vm5771, %v5531, %v5835
    %v5900 = vsel %vm5772, %v5536, %v5836
    %v5901 = vsel %vm5773, %v5539, %v5837
    %v5902 = vsel %vm5774, %v5544, %v5838
    %v5903 = vsel %vm5775, %v5547, %v5839
    %v5904 = vsel %vm5776, %v5552, %v5840
    %v5905 = vsel %vm5777, %v5555, %v5841
    %v5906 = vsel %vm5778, %v5560, %v5842
    %v5907 = vsel %vm5779, %v5563, %v5843
    %v5908 = vsel %vm5780, %v5568, %v5844
    %v5909 = vsel %vm5781, %v5571, %v5845
    %v5910 = vsel %vm5782, %v5576, %v5846
    %v5911 = vsel %vm5783, %v5579, %v5847
    %v5912 = vsel %vm5784, %v5584, %v5848
    %v5913 = vsel %vm5785, %v5587, %v5849
    %v5914 = vsel %vm5786, %v5592, %v5850
    %v5915 = vsel %vm5787, %v5595, %v5851
    %v5916 = vsel %vm5788, %v5600, %v5852
    %v5917 = vsel %vm5789, %v5603, %v5853
    %v5918 = vsel %vm5790, %v5608, %v5854
    %v5919 = vsel %vm5791, %v5611, %v5855
    %v5920 = vsel %vm5792, %v5616, %v5856
    %v5921 = vsel %vm5793, %v5619, %v5857
    %v5922 = vsel %vm5794, %v5624, %v5858
    %v5923 = vsel %vm5795, %v5627, %v5859
    %v5924 = vsel %vm5796, %v5632, %v5860
    %v5925 = vsel %vm5797, %v5635, %v5861
    %v5926 = vsel %vm5798, %v5640, %v5862
    %v5927 = vsel %vm5799, %v5643, %v5863
    %v5928 = vsel %vm5800, %v5648, %v5864
    %v5929 = vsel %vm5801, %v5651, %v5865
    %v5930 = vsel %vm5802, %v5656, %v5866
    %v5931 = vsel %vm5803, %v5659, %v5867
    %v5932 = vsel %vm5804, %v5664, %v5868
    %v5933 = vsel %vm5805, %v5667, %v5869
    %v5934 = vsel %vm5806, %v5672, %v5870
    %v5935 = vsel %vm5807, %v5675, %v5871
    %v5936 = vsel %vm5808, %v5680, %v5872
    %v5937 = vsel %vm5809, %v5683, %v5873
    %v5938 = vsel %vm5810, %v5688, %v5874
    %v5939 = vsel %vm5811, %v5691, %v5875
    %v5940 = vsel %vm5812, %v5696, %v5876
    %v5941 = vsel %vm5813, %v5699, %v5877
    %v5942 = vsel %vm5814, %v5704, %v5878
    %v5943 = vsel %vm5815, %v5707, %v5879
    %v5944 = vsel %vm5816, %v5712, %v5880
    %v5945 = vsel %vm5817, %v5715, %v5881
    %v5946 = vsel %vm5818, %v5720, %v5882
    %v5947 = vsel %vm5819, %v5723, %v5883
    %v5948 = vsel %vm5820, %v5728, %v5884
    %v5949 = vsel %vm5821, %v5731, %v5885
    %v5950 = vsel %vm5822, %v5736, %v5886
    %v5951 = vsel %vm5823, %v5739, %v5887
    %v5952 = vsel %vm5824, %v5744, %v5888
    %v5953 = vsel %vm5825, %v5747, %v5889
    %v5954 = vsel %vm5826, %v5752, %v5890
    %v5955 = vsel %vm5827, %v5755, %v5891
    %v5956 = vsel %vm5828, %v5760, %v5892
    %v5957 = vsel %vm5829, %v5763, %v5893
    %v5958 = vld [vmem:[%s7] sm:$0xff]
    %v5959 = vld [vmem:[%s7 + $0x8] sm:$0xff]
    %v5960 = vpack.c.bf16 %v5895, %v5894
    %v5961 = vpack.c.bf16 %v5897, %v5896
    %v5962 = vpack.c.bf16 %v5899, %v5898
    %v5963 = vpack.c.bf16 %v5901, %v5900
    %v5964 = vpack.c.bf16 %v5903, %v5902
    %v5965 = vpack.c.bf16 %v5905, %v5904
    %v5966 = vpack.c.bf16 %v5907, %v5906
    %v5967 = vpack.c.bf16 %v5909, %v5908
    %v5968 = vpack.c.bf16 %v5911, %v5910
    %v5969 = vpack.c.bf16 %v5913, %v5912
    %v5970 = vpack.c.bf16 %v5915, %v5914
    %v5971 = vpack.c.bf16 %v5917, %v5916
    %v5972 = vpack.c.bf16 %v5919, %v5918
    %v5973 = vpack.c.bf16 %v5921, %v5920
    %v5974 = vpack.c.bf16 %v5923, %v5922
    %v5975 = vpack.c.bf16 %v5925, %v5924
    %v5976 = vpack.c.bf16 %v5927, %v5926
    %v5977 = vpack.c.bf16 %v5929, %v5928
    %v5978 = vpack.c.bf16 %v5931, %v5930
    %v5979 = vpack.c.bf16 %v5933, %v5932
    %v5980 = vpack.c.bf16 %v5935, %v5934
    %v5981 = vpack.c.bf16 %v5937, %v5936
    %v5982 = vpack.c.bf16 %v5939, %v5938
    %v5983 = vpack.c.bf16 %v5941, %v5940
    %v5984 = vpack.c.bf16 %v5943, %v5942
    %v5985 = vpack.c.bf16 %v5945, %v5944
    %v5986 = vpack.c.bf16 %v5947, %v5946
    %v5987 = vpack.c.bf16 %v5949, %v5948
    %v5988 = vpack.c.bf16 %v5951, %v5950
    %v5989 = vpack.c.bf16 %v5953, %v5952
    %v5990 = vpack.c.bf16 %v5955, %v5954
    %v5991 = vpack.c.bf16 %v5957, %v5956
    %v5994 = vunpack.c.l.b16 %v5958
    %v5995 = vunpack.c.h.b16 %v5958
    %v5996 = vunpack.c.l.b16 %v5959
    %v5997 = vunpack.c.h.b16 %v5959
    %v5998 = vpack.c.b16 %v5994, %v5994
    %v5999 = vpack.c.b16 %v5995, %v5995
    %v6000 = vpack.c.b16 %v5996, %v5996
    %v6001 = vpack.c.b16 %v5997, %v5997
    %6006 = vmatprep.subr.bf16.mxu0 0
    %6007 = vmatpush1.bf16.msra.mxu0 %v5967
    %6008 = vmatprep.subr.bf16.mxu0 0
    %6009 = vmatpush1.bf16.msra.mxu0 %v5966
    %6010 = vmatprep.subr.bf16.mxu0 0
    %6011 = vmatpush1.bf16.msra.mxu0 %v5965
    %6012 = vmatprep.subr.bf16.mxu0 0
    %6013 = vmatpush1.bf16.msra.mxu0 %v5964
    %6014 = vmatprep.subr.bf16.mxu0 0
    %6015 = vmatpush1.bf16.msra.mxu0 %v5963
    %6016 = vmatprep.subr.bf16.mxu0 0
    %6017 = vmatpush1.bf16.msra.mxu0 %v5962
    %6018 = vmatprep.subr.bf16.mxu0 0
    %6019 = vmatpush1.bf16.msra.mxu0 %v5961
    %6020 = vmatprep.subr.bf16.mxu0 0
    %6021 = vmatpush1.bf16.msra.mxu0 %v5960
    %6022 = vmatprep.subr.bf16.mxu0 0
    %6023 = vmatpush2.bf16.msra.mxu0 %v5975
    %6024 = vmatprep.subr.bf16.mxu0 0
    %6025 = vmatpush2.bf16.msra.mxu0 %v5974
    %6026 = vmatprep.subr.bf16.mxu0 0
    %6027 = vmatpush2.bf16.msra.mxu0 %v5973
    %6028 = vmatprep.subr.bf16.mxu0 0
    %6029 = vmatpush2.bf16.msra.mxu0 %v5972
    %6030 = vmatprep.subr.bf16.mxu0 0
    %6031 = vmatpush2.bf16.msra.mxu0 %v5971
    %6032 = vmatprep.subr.bf16.mxu0 0
    %6033 = vmatpush2.bf16.msra.mxu0 %v5970
    %6034 = vmatprep.subr.bf16.mxu0 0
    %6035 = vmatpush2.bf16.msra.mxu0 %v5969
    %6036 = vmatprep.subr.bf16.mxu0 0
    %6037 = vmatpush2.bf16.msra.mxu0 %v5968
    %6038 = vmatprep.mubr.bf16.mxu0 %v5999
    %6039 = vmatmul.mubr.bf16.gmra.mxu0 %v5998
    %v6040 = vpop.f32.mrf.mxu0
    %v6041 = vadd.f32 0.0, %v6040
    %v6042 = vpop.f32.mrf.mxu0
    %v6043 = vpop.f32.mrf.mxu0
    %v6044 = vpop.f32.mrf.mxu0
    %6045 = vdwg.mxu0
    %6046 = vmatprep.subr.bf16.mxu0 0
    %6047 = vmatpush1.bf16.msra.mxu0 %v5983
    %6048 = vmatprep.subr.bf16.mxu0 0
    %6049 = vmatpush1.bf16.msra.mxu0 %v5982
    %6050 = vmatprep.subr.bf16.mxu0 0
    %6051 = vmatpush1.bf16.msra.mxu0 %v5981
    %6052 = vmatprep.subr.bf16.mxu0 0
    %6053 = vmatpush1.bf16.msra.mxu0 %v5980
    %6054 = vmatprep.subr.bf16.mxu0 0
    %6055 = vmatpush1.bf16.msra.mxu0 %v5979
    %6056 = vmatprep.subr.bf16.mxu0 0
    %6057 = vmatpush1.bf16.msra.mxu0 %v5978
    %6058 = vmatprep.subr.bf16.mxu0 0
    %6059 = vmatpush1.bf16.msra.mxu0 %v5977
    %6060 = vmatprep.subr.bf16.mxu0 0
    %6061 = vmatpush1.bf16.msra.mxu0 %v5976
    %6062 = vmatprep.subr.bf16.mxu0 0
    %6063 = vmatpush2.bf16.msra.mxu0 %v5991
    %6064 = vmatprep.subr.bf16.mxu0 0
    %6065 = vmatpush2.bf16.msra.mxu0 %v5990
    %6066 = vmatprep.subr.bf16.mxu0 0
    %6067 = vmatpush2.bf16.msra.mxu0 %v5989
    %6068 = vmatprep.subr.bf16.mxu0 0
    %6069 = vmatpush2.bf16.msra.mxu0 %v5988
    %6070 = vmatprep.subr.bf16.mxu0 0
    %6071 = vmatpush2.bf16.msra.mxu0 %v5987
    %6072 = vmatprep.subr.bf16.mxu0 0
    %6073 = vmatpush2.bf16.msra.mxu0 %v5986
    %6074 = vmatprep.subr.bf16.mxu0 0
    %6075 = vmatpush2.bf16.msra.mxu0 %v5985
    %6076 = vmatprep.subr.bf16.mxu0 0
    %6077 = vmatpush2.bf16.msra.mxu0 %v5984
    %6078 = vmatprep.mubr.bf16.mxu0 %v6001
    %6079 = vmatmul.mubr.bf16.gmra.mxu0 %v6000
    %v6080 = vpop.f32.mrf.mxu0
    %v6081 = vadd.f32 %v6041, %v6080
    %v6082 = vpop.f32.mrf.mxu0
    %v6083 = vpop.f32.mrf.mxu0
    %v6084 = vpop.f32.mrf.mxu0
    %6085 = vdwg.mxu0
    %v6086 = vld [vmem:[#allocation2] sm:$0x1]
    %6088 = vset.pattern.permute.xlu0 0
    %6089 = vperm.xlu0 %6088, %v6086
    %v6090 = vpop.permute.xlu0 %6089
    %v6092 = vlaneseq
    %v6093 = vshrl.u32 %v6092, 7
    %v6094 = vsub.s32 0, %v6093
    %v6095 = vrot.slane %v6090, %v6094
    %v6096 = vadd.f32 %v6081, %v6095
    %v6097 = vand.u32 2147483647, %v6096
    %v6098 = vsub.f32 0.0, %v6097
    %v6099 = vmul.f32 %v6098, 1.442695
    %v6100 = vpow.pop %v6099
    %v6101 = vadd.f32 %v6100, 1.0
    %v6102 = vrcp.pop %v6101
    %v6103 = vmul.f32 1.0, %v6102
    %vm6104 = vcmp.ge.f32.partialorder %v6096, 0.0
    %v6105 = vmul.f32 %v6100, %v6103
    %v6106 = vsel %vm6104, %v6103, %v6105
    %6107 = vst [vmem:[#allocation8] sm:$0x1] %v6106
    // Predicated region
    $region46: #{tpu_custom_call.1} parent=1 // pred_check
      _
    $region47: #{tpu_custom_call.1} parent=1 // pred_check_branch
      %6109 = sbr.rel (0) target = $region49
    $region48: #{tpu_custom_call.1} parent=1 // pred_region
      %s6111 = ssub.s32 16, 16
      %6112 = vsyncadd [#allocation5], %s6111
      %s6114 = sshll.u32 [#allocation8], 4
      %s6115 = int_to_ptr.vmem [resolvable:$true] %s6114
      %6117 = dma.vmem_to_hbm [thread:$0]  %s6115, 16, %s9, [#allocation5]
    $region49: #{tpu_custom_call.1} parent=1 // pred_fallthru
      _
    // Predicated region
    $region50: #{tpu_custom_call.1} parent=1 // pred_check
      _
    $region51: #{tpu_custom_call.1} parent=1 // pred_check_branch
      %6119 = sbr.rel (0) target = $region53
    $region52: #{tpu_custom_call.1} parent=1 // pred_region
      %6120 = dma.done [#allocation5], 16
    $region53: #{tpu_custom_call.1} parent=1 // pred_fallthru
      _
    %6121 = vsyncpa [#allocation4], 1
    %6122 = vsyncpa [#allocation7], 1
    %6123 = vsyncpa [#allocation5], 1

</llo_original>
